<compile_context>
chip_gen: v6e
topology: v6e:2x2x1
jax: 0.10.0
libtpu: 0.0.40
codegen_flags: <defaults>
</compile_context>

<pallas_src>
import functools

import jax
import jax.numpy as jnp
import numpy as np
from jax import lax
from jax.experimental import pallas as pl
from jax.experimental.pallas import tpu as pltpu


# -----------------------------------------------------------------------------
# Pallas kernel: one (batch, L-tile) pair per grid step.
# -----------------------------------------------------------------------------
def _transformer_layer_kernel(
    # inputs -------------------------------------------------------------
    x_ref,      # (TL, C)  f32   query-side activation tile
    src_ref,    # (S,  C)  f32   full source slab for this batch element
    wq_ref,     # (C, C)   matmul dtype, stored (in, out)
    wk_ref,     # (C, C)
    wv_ref,     # (C, C)
    wm_ref,     # (C, C)
    w1x_ref,    # (C, 2C)  top half of mlp.w1 (multiplies x)
    w1m_ref,    # (C, 2C)  bottom half of mlp.w1 (multiplies message)
    w2_ref,     # (2C, C)
    hm_ref,     # (C, C)   f32  block-diagonal head mask
    g1_ref,     # (1, C)   f32  norm1 gamma
    b1_ref,     # (1, C)
    g2_ref,     # (1, C)
    b2_ref,     # (1, C)
    # output -------------------------------------------------------------
    out_ref,    # (TL, C)
    # scratch (persists across grid steps) ---------------------------------
    kv_ref,     # (C, C)   f32  block-diag masked K'^T @ (V/S) for current batch
    ksum_ref,   # (1, C)   f32  sum_s K'[s, :]               for current batch
    *,
    s_len: int,
    approx_recip: bool,
    eps: float = 1e-6,
    ln_eps: float = 1e-5,
):
    md = wq_ref.dtype            # MXU operand dtype (f32 or bf16)
    f32 = jnp.float32

    def feature_map(t):          # elu(t) + 1  ==  t + 1 (t > 0) else exp(t)
        return jnp.where(t > 0, t + 1.0, jnp.exp(t))

    # ---- per-batch K/V summary: computed once per batch element ------------
    @pl.when(pl.program_id(1) == 0)
    def _():
        src = src_ref[...].astype(md)                                   # (S, C)
        k = jnp.dot(src, wk_ref[...], preferred_element_type=f32)       # (S, C)
        v = jnp.dot(src, wv_ref[...], preferred_element_type=f32)       # (S, C)
        kfm = feature_map(k)
        vs = v / float(s_len)            # fp16-overflow guard kept from ref
        # KV for ALL heads in one MXU matmul; keep only block-diagonal blocks.
        kv_full = lax.dot_general(
            kfm.astype(md), vs.astype(md), (((0,), (0,)), ((), ())),
            preferred_element_type=f32)                                  # (C, C)
        kv_ref[...] = kv_full * hm_ref[...]
        ksum_ref[...] = jnp.sum(kfm, axis=0, keepdims=True)              # (1, C)

    # ---- query side: one (TL, C) tile per step -----------------------------
    x = x_ref[...]                                                       # f32
    x_m = x.astype(md)
    q = jnp.dot(x_m, wq_ref[...], preferred_element_type=f32)           # (TL, C)
    qfm = feature_map(q)

    # numerator: Q' @ blockdiag(KV)  — single MXU matmul covering all heads
    num = jnp.dot(qfm.astype(md), kv_ref[...].astype(md),
                  preferred_element_type=f32)                            # (TL, C)
    # per-head normalizer, broadcast over each head's D lanes via the mask
    qdot = qfm * ksum_ref[...]                                           # (TL, C)
    denom = jnp.dot(qdot.astype(md), hm_ref[...].astype(md),
                    preferred_element_type=f32)                          # (TL, C)
    z = pl.reciprocal(denom + eps, approx=approx_recip)
    message = num * z * float(s_len)

    # merge projection
    message = jnp.dot(message.astype(md), wm_ref[...],
                      preferred_element_type=f32)

    # LayerNorm 1 (f32)
    mu = jnp.mean(message, axis=-1, keepdims=True)
    var = jnp.mean(jnp.square(message - mu), axis=-1, keepdims=True)
    message = (message - mu) * lax.rsqrt(var + ln_eps)
    message = message * g1_ref[...] + b1_ref[...]

    # MLP on concat([x, message]) WITHOUT the lane concat: split-w1 form
    hidden = jnp.dot(x_m, w1x_ref[...], preferred_element_type=f32)
    hidden = hidden + jnp.dot(message.astype(md), w1m_ref[...],
                              preferred_element_type=f32)
    hidden = jnp.maximum(hidden, 0.0)                                    # ReLU
    message = jnp.dot(hidden.astype(md), w2_ref[...],
                      preferred_element_type=f32)

    # LayerNorm 2 (f32)
    mu = jnp.mean(message, axis=-1, keepdims=True)
    var = jnp.mean(jnp.square(message - mu), axis=-1, keepdims=True)
    message = (message - mu) * lax.rsqrt(var + ln_eps)
    message = message * g2_ref[...] + b2_ref[...]

    out_ref[...] = (x + message).astype(out_ref.dtype)


# -----------------------------------------------------------------------------
# Wrapper
# -----------------------------------------------------------------------------
def transformer_layer(x, source, params, *, nhead, block_l=None,
                      matmul_dtype=jnp.float32, approx_reciprocal=False):
    """x: [N, L, C], source: [N, S, C] -> [N, L, C].

    Weights in `params` are stored (in_features, out_features) so the hot path
    is plain `x @ W` on the MXU (nn.Linear keeps (out, in): transpose once when
    importing a checkpoint).
    """
    N, L, C = x.shape
    S = source.shape[1]
    assert C % nhead == 0
    head_dim = C // nhead

    if block_l is None:
        # v5e MXU is 128 rows wide, v6e/v7x 256: use a large L tile that
        # divides L, capped to bound VMEM on v7x (64 MiB physical).
        block_l = L
        for cand in (512, 256, 128):
            if L % cand == 0:
                block_l = cand
                break
    assert L % block_l == 0 and (block_l % 8 == 0 or block_l == L)
    num_l = L // block_l

    md = jnp.dtype(matmul_dtype)
    # Cast weights once in the wrapper (halves weight DMA bytes when bf16).
    wq = params["wq"].astype(md)
    wk = params["wk"].astype(md)
    wv = params["wv"].astype(md)
    wm = params["wm"].astype(md)
    # Split mlp.w1 so the kernel never builds the (TL, 2C) lane concatenation.
    w1x = params["w1"][:C].astype(md)   # rows that multiply x
    w1m = params["w1"][C:].astype(md)   # rows that multiply message
    w2 = params["w2"].astype(md)

    # Static block-diagonal head mask (1 inside each head's DxD block).
    hid = jnp.arange(C, dtype=jnp.int32) // head_dim
    head_mask = (hid[:, None] == hid[None, :]).astype(jnp.float32)

    kernel = functools.partial(
        _transformer_layer_kernel, s_len=S, approx_recip=approx_reciprocal)

    full = lambda shape: pl.BlockSpec(shape, lambda b, l: (0, 0))
    # TODO(synk): grid-invariant weight specs could use pipeline_mode=
    #             pl.Buffered(1) to drop their unused second pipeline buffer
    #             on VMEM-tight chips (v7x).

    grid_spec = pltpu.PrefetchScalarGridSpec(
        num_scalar_prefetch=0,
        grid=(N, num_l),
        in_specs=[
            pl.BlockSpec((None, block_l, C), lambda b, l: (b, l, 0)),  # x
            pl.BlockSpec((None, S, C), lambda b, l: (b, 0, 0)),        # source
            full((C, C)),       # wq
            full((C, C)),       # wk
            full((C, C)),       # wv
            full((C, C)),       # merge
            full((C, 2 * C)),   # w1 (x half)
            full((C, 2 * C)),   # w1 (message half)
            full((2 * C, C)),   # w2
            full((C, C)),       # block-diagonal head mask
            full((1, C)),       # norm1 gamma
            full((1, C)),       # norm1 beta
            full((1, C)),       # norm2 gamma
            full((1, C)),       # norm2 beta
        ],
        out_specs=pl.BlockSpec((None, block_l, C), lambda b, l: (b, l, 0)),
        scratch_shapes=[
            pltpu.VMEM((C, C), jnp.float32),   # block-diag masked KV
            pltpu.VMEM((1, C), jnp.float32),   # Ksum
        ],
    )

    return pl.pallas_call(
        kernel,
        out_shape=jax.ShapeDtypeStruct((N, L, C), x.dtype),
        grid_spec=grid_spec,
        compiler_params=pltpu.CompilerParams(
            # batch axis parallel (megacore / v7x two TCs); L-tile axis must
            # stay sequential because the KV/Ksum scratch is reused across it.
            dimension_semantics=("parallel", "arbitrary"),
            vmem_limit_bytes=48 * 1024 * 1024,
        ),
    )(x, source, wq, wk, wv, wm, w1x, w1m, w2, head_mask,
      params["g1"], params["b1"], params["g2"], params["b2"])


# -----------------------------------------------------------------------------
# Pure-JAX reference (mirrors the PyTorch forward) for verification.
# -----------------------------------------------------------------------------
def transformer_layer_ref(x, source, params, *, nhead):
    N, L, C = x.shape
    S = source.shape[1]
    D = C // nhead

    q = (x @ params["wq"]).reshape(N, L, nhead, D)
    k = (source @ params["wk"]).reshape(N, S, nhead, D)
    v = (source @ params["wv"]).reshape(N, S, nhead, D)

    fm = lambda t: jax.nn.elu(t) + 1.0
    Q, K = fm(q), fm(k)
    V = v / S
    KV = jnp.einsum("nshd,nshv->nhdv", K, V)
    Z = 1.0 / (jnp.einsum("nlhd,nhd->nlh", Q, K.sum(axis=1)) + 1e-6)
    msg = jnp.einsum("nlhd,nhdv,nlh->nlhv", Q, KV, Z) * S
    msg = msg.reshape(N, L, C) @ params["wm"]

    def ln(t, g, b):
        mu = t.mean(-1, keepdims=True)
        var = ((t - mu) ** 2).mean(-1, keepdims=True)
        return (t - mu) / jnp.sqrt(var + 1e-5) * g + b

    msg = ln(msg, params["g1"], params["b1"])
    hidden = jnp.maximum(jnp.concatenate([x, msg], axis=-1) @ params["w1"], 0.0)
    msg = hidden @ params["w2"]
    msg = ln(msg, params["g2"], params["b2"])
    return x + msg


# -----------------------------------------------------------------------------
# Main
# -----------------------------------------------------------------------------
if __name__ == "__main__":
    # Small but MXU / lane-friendly shapes (LoFTR uses d_model=256, nhead=8;
    # C is kept a multiple of 128 so every store is a full-lane vst).
    N, L, S = 2, 256, 192
    D_MODEL, NHEAD = 128, 8

    key = jax.random.PRNGKey(0)
    keys = jax.random.split(key, 10)

    x = jax.random.normal(keys[0], (N, L, D_MODEL), dtype=jnp.float32)
    source = jax.random.normal(keys[1], (N, S, D_MODEL), dtype=jnp.float32)

    scale = 0.05
    params = {
        # nn.Linear stores (out, in); we keep (in, out) so the kernel does x @ W.
        "wq": scale * jax.random.normal(keys[2], (D_MODEL, D_MODEL), jnp.float32),
        "wk": scale * jax.random.normal(keys[3], (D_MODEL, D_MODEL), jnp.float32),
        "wv": scale * jax.random.normal(keys[4], (D_MODEL, D_MODEL), jnp.float32),
        "wm": scale * jax.random.normal(keys[5], (D_MODEL, D_MODEL), jnp.float32),
        "w1": scale * jax.random.normal(keys[6], (2 * D_MODEL, 2 * D_MODEL), jnp.float32),
        "w2": scale * jax.random.normal(keys[7], (2 * D_MODEL, D_MODEL), jnp.float32),
        "g1": jnp.ones((1, D_MODEL), jnp.float32),
        "b1": jnp.zeros((1, D_MODEL), jnp.float32),
        "g2": jnp.ones((1, D_MODEL), jnp.float32),
        "b2": jnp.zeros((1, D_MODEL), jnp.float32),
    }

    ref = transformer_layer_ref(x, source, params, nhead=NHEAD)

    # Exact path (f32 MXU operands, exact reciprocal): tight correctness check.
    out_f32 = transformer_layer(
        x, source, params, nhead=NHEAD, block_l=128,
        matmul_dtype=jnp.float32, approx_reciprocal=False)
    out_f32 = jax.block_until_ready(out_f32)
    np.testing.assert_allclose(np.asarray(out_f32), np.asarray(ref),
                               rtol=2e-3, atol=2e-3)

    # Fast path (bf16 MXU operands + approx reciprocal, per v6e/v7x review):
    # same structure, looser numerical check.
    out_bf16 = transformer_layer(
        x, source, params, nhead=NHEAD, block_l=128,
        matmul_dtype=jnp.bfloat16, approx_reciprocal=True)
    out_bf16 = jax.block_until_ready(out_bf16)
    assert np.all(np.isfinite(np.asarray(out_bf16)))
    np.testing.assert_allclose(np.asarray(out_bf16), np.asarray(ref),
                               rtol=1e-1, atol=1e-1)

    print("KERNEL_OK")
</pallas_src>

<mosaic_0001>
module attributes {stable_mosaic.version = 11 : i64} {
  func.func @_transformer_layer_kernel(%arg0: i32, %arg1: i32, %arg2: memref<1x128x128xf32, #tpu.memory_space<vmem>>, %arg3: memref<1x192x128xf32, #tpu.memory_space<vmem>>, %arg4: memref<128x128xf32, #tpu.memory_space<vmem>>, %arg5: memref<128x128xf32, #tpu.memory_space<vmem>>, %arg6: memref<128x128xf32, #tpu.memory_space<vmem>>, %arg7: memref<128x128xf32, #tpu.memory_space<vmem>>, %arg8: memref<128x256xf32, #tpu.memory_space<vmem>>, %arg9: memref<128x256xf32, #tpu.memory_space<vmem>>, %arg10: memref<256x128xf32, #tpu.memory_space<vmem>>, %arg11: memref<128x128xf32, #tpu.memory_space<vmem>>, %arg12: memref<1x128xf32, #tpu.memory_space<vmem>>, %arg13: memref<1x128xf32, #tpu.memory_space<vmem>>, %arg14: memref<1x128xf32, #tpu.memory_space<vmem>>, %arg15: memref<1x128xf32, #tpu.memory_space<vmem>>, %arg16: memref<1x128x128xf32, #tpu.memory_space<vmem>>, %arg17: memref<128x128xf32, #tpu.memory_space<vmem>>, %arg18: memref<1x128xf32, #tpu.memory_space<vmem>>) attributes {dimension_semantics = [#tpu.dimension_semantics<parallel>, #tpu.dimension_semantics<arbitrary>], iteration_bounds = array<i64: 2, 2>, scalar_prefetch = 0 : i64, scratch_operands = 2 : i64, tpu.core_type = #tpu.core_type<tc>, window_params = [{transform_indices = @transform_0, window_bounds = array<i64: 1, 128, 128>}, {transform_indices = @transform_1, window_bounds = array<i64: 1, 192, 128>}, {pipeline_mode = #tpu.pipeline_mode<synchronous>, transform_indices = @transform_2, window_bounds = array<i64: 128, 128>}, {pipeline_mode = #tpu.pipeline_mode<synchronous>, transform_indices = @transform_3, window_bounds = array<i64: 128, 128>}, {pipeline_mode = #tpu.pipeline_mode<synchronous>, transform_indices = @transform_4, window_bounds = array<i64: 128, 128>}, {pipeline_mode = #tpu.pipeline_mode<synchronous>, transform_indices = @transform_5, window_bounds = array<i64: 128, 128>}, {pipeline_mode = #tpu.pipeline_mode<synchronous>, transform_indices = @transform_6, window_bounds = array<i64: 128, 256>}, {pipeline_mode = #tpu.pipeline_mode<synchronous>, transform_indices = @transform_7, window_bounds = array<i64: 128, 256>}, {pipeline_mode = #tpu.pipeline_mode<synchronous>, transform_indices = @transform_8, window_bounds = array<i64: 256, 128>}, {pipeline_mode = #tpu.pipeline_mode<synchronous>, transform_indices = @transform_9, window_bounds = array<i64: 128, 128>}, {pipeline_mode = #tpu.pipeline_mode<synchronous>, transform_indices = @transform_10, window_bounds = array<i64: 1, 128>}, {pipeline_mode = #tpu.pipeline_mode<synchronous>, transform_indices = @transform_11, window_bounds = array<i64: 1, 128>}, {pipeline_mode = #tpu.pipeline_mode<synchronous>, transform_indices = @transform_12, window_bounds = array<i64: 1, 128>}, {pipeline_mode = #tpu.pipeline_mode<synchronous>, transform_indices = @transform_13, window_bounds = array<i64: 1, 128>}, {transform_indices = @transform_14, window_bounds = array<i64: 1, 128, 128>}]} {
    %c0_i32 = arith.constant 0 : i32
    %0 = arith.cmpi eq, %arg1, %c0_i32 : i32
    %1 = arith.extui %0 : i1 to i32
    %c0_i32_0 = arith.constant 0 : i32
    %2 = arith.cmpi ne, %1, %c0_i32_0 : i32
    scf.if %2 {
      %c0_51 = arith.constant 0 : index
      %c0_52 = arith.constant 0 : index
      %c0_53 = arith.constant 0 : index
      %89 = vector.load %arg3[%c0_51, %c0_52, %c0_53] : memref<1x192x128xf32, #tpu.memory_space<vmem>>, vector<1x192x128xf32>
      %90 = vector.shape_cast %89 : vector<1x192x128xf32> to vector<192x128xf32>
      %c0_54 = arith.constant 0 : index
      %c0_55 = arith.constant 0 : index
      %91 = vector.load %arg5[%c0_54, %c0_55] : memref<128x128xf32, #tpu.memory_space<vmem>>, vector<128x128xf32>
      %cst_56 = arith.constant dense<0.000000e+00> : vector<192x128xf32>
      %92 = tpu.matmul %90, %91, %cst_56 {dimension_numbers = #tpu.dot_dimension_numbers<[1], [0], [0], [1], [0, 0, 1, 1], [], []>} : vector<192x128xf32>, vector<128x128xf32>, vector<192x128xf32> -> vector<192x128xf32>
      %c0_57 = arith.constant 0 : index
      %c0_58 = arith.constant 0 : index
      %93 = vector.load %arg6[%c0_57, %c0_58] : memref<128x128xf32, #tpu.memory_space<vmem>>, vector<128x128xf32>
      %cst_59 = arith.constant dense<0.000000e+00> : vector<192x128xf32>
      %94 = tpu.matmul %90, %93, %cst_59 {dimension_numbers = #tpu.dot_dimension_numbers<[1], [0], [0], [1], [0, 0, 1, 1], [], []>} : vector<192x128xf32>, vector<128x128xf32>, vector<192x128xf32> -> vector<192x128xf32>
      %cst_60 = arith.constant 0.000000e+00 : f32
      %95 = vector.broadcast %cst_60 : f32 to vector<192x128xf32>
      %96 = arith.cmpf ogt, %92, %95 : vector<192x128xf32>
      %cst_61 = arith.constant 1.000000e+00 : f32
      %97 = vector.broadcast %cst_61 : f32 to vector<192x128xf32>
      %98 = arith.addf %92, %97 : vector<192x128xf32>
      %99 = math.exp %92 : vector<192x128xf32>
      %100 = arith.select %96, %98, %99 : vector<192x128xi1>, vector<192x128xf32>
      %cst_62 = arith.constant 1.920000e+02 : f32
      %101 = vector.broadcast %cst_62 : f32 to vector<192x128xf32>
      %102 = arith.divf %94, %101 : vector<192x128xf32>
      %cst_63 = arith.constant dense<0.000000e+00> : vector<128x128xf32>
      %103 = tpu.matmul %100, %102, %cst_63 {dimension_numbers = #tpu.dot_dimension_numbers<[0], [0], [1], [1], [0, 1, 1, 1], [], []>} : vector<192x128xf32>, vector<192x128xf32>, vector<128x128xf32> -> vector<128x128xf32>
      %c0_64 = arith.constant 0 : index
      %c0_65 = arith.constant 0 : index
      %104 = vector.load %arg11[%c0_64, %c0_65] : memref<128x128xf32, #tpu.memory_space<vmem>>, vector<128x128xf32>
      %105 = arith.mulf %103, %104 : vector<128x128xf32>
      %c0_66 = arith.constant 0 : index
      %c0_67 = arith.constant 0 : index
      %106 = vector.load %arg17[%c0_66, %c0_67] : memref<128x128xf32, #tpu.memory_space<vmem>>, vector<128x128xf32>
      tpu.vector_store %arg17[%c0_66, %c0_67], %105 {strides = array<i32>} : memref<128x128xf32, #tpu.memory_space<vmem>>, vector<128x128xf32>,
      %cst_68 = arith.constant dense<0.000000e+00> : vector<128xf32>
      %107 = vector.multi_reduction <add>, %100, %cst_68 [0] : vector<192x128xf32> to vector<128xf32>
      %108 = vector.shape_cast %107 : vector<128xf32> to vector<1x128xf32>
      %c0_69 = arith.constant 0 : index
      %c0_70 = arith.constant 0 : index
      %109 = vector.load %arg18[%c0_69, %c0_70] : memref<1x128xf32, #tpu.memory_space<vmem>>, vector<1x128xf32>
      tpu.vector_store %arg18[%c0_69, %c0_70], %108 {strides = array<i32>} : memref<1x128xf32, #tpu.memory_space<vmem>>, vector<1x128xf32>,
    } else {
    }
    %c0 = arith.constant 0 : index
    %c0_1 = arith.constant 0 : index
    %c0_2 = arith.constant 0 : index
    %3 = vector.load %arg2[%c0, %c0_1, %c0_2] : memref<1x128x128xf32, #tpu.memory_space<vmem>>, vector<1x128x128xf32>
    %4 = vector.shape_cast %3 : vector<1x128x128xf32> to vector<128x128xf32>
    %c0_3 = arith.constant 0 : index
    %c0_4 = arith.constant 0 : index
    %5 = vector.load %arg4[%c0_3, %c0_4] : memref<128x128xf32, #tpu.memory_space<vmem>>, vector<128x128xf32>
    %cst = arith.constant dense<0.000000e+00> : vector<128x128xf32>
    %6 = tpu.matmul %4, %5, %cst {dimension_numbers = #tpu.dot_dimension_numbers<[1], [0], [0], [1], [0, 0, 1, 1], [], []>} : vector<128x128xf32>, vector<128x128xf32>, vector<128x128xf32> -> vector<128x128xf32>
    %cst_5 = arith.constant 0.000000e+00 : f32
    %7 = vector.broadcast %cst_5 : f32 to vector<128x128xf32>
    %8 = arith.cmpf ogt, %6, %7 : vector<128x128xf32>
    %cst_6 = arith.constant 1.000000e+00 : f32
    %9 = vector.broadcast %cst_6 : f32 to vector<128x128xf32>
    %10 = arith.addf %6, %9 : vector<128x128xf32>
    %11 = math.exp %6 : vector<128x128xf32>
    %12 = arith.select %8, %10, %11 : vector<128x128xi1>, vector<128x128xf32>
    %c0_7 = arith.constant 0 : index
    %c0_8 = arith.constant 0 : index
    %13 = vector.load %arg17[%c0_7, %c0_8] : memref<128x128xf32, #tpu.memory_space<vmem>>, vector<128x128xf32>
    %cst_9 = arith.constant dense<0.000000e+00> : vector<128x128xf32>
    %14 = tpu.matmul %12, %13, %cst_9 {dimension_numbers = #tpu.dot_dimension_numbers<[1], [0], [0], [1], [0, 0, 1, 1], [], []>} : vector<128x128xf32>, vector<128x128xf32>, vector<128x128xf32> -> vector<128x128xf32>
    %c0_10 = arith.constant 0 : index
    %c0_11 = arith.constant 0 : index
    %15 = vector.load %arg18[%c0_10, %c0_11] : memref<1x128xf32, #tpu.memory_space<vmem>>, vector<1x128xf32>
    %16 = vector.broadcast %15 : vector<1x128xf32> to vector<128x128xf32>
    %17 = arith.mulf %12, %16 : vector<128x128xf32>
    %c0_12 = arith.constant 0 : index
    %c0_13 = arith.constant 0 : index
    %18 = vector.load %arg11[%c0_12, %c0_13] : memref<128x128xf32, #tpu.memory_space<vmem>>, vector<128x128xf32>
    %cst_14 = arith.constant dense<0.000000e+00> : vector<128x128xf32>
    %19 = tpu.matmul %17, %18, %cst_14 {dimension_numbers = #tpu.dot_dimension_numbers<[1], [0], [0], [1], [0, 0, 1, 1], [], []>} : vector<128x128xf32>, vector<128x128xf32>, vector<128x128xf32> -> vector<128x128xf32>
    %cst_15 = arith.constant 9.99999997E-7 : f32
    %20 = vector.broadcast %cst_15 : f32 to vector<128x128xf32>
    %21 = arith.addf %19, %20 : vector<128x128xf32>
    %22 = tpu.reciprocal %21 : vector<128x128xf32> -> vector<128x128xf32>
    %23 = arith.mulf %14, %22 : vector<128x128xf32>
    %cst_16 = arith.constant 1.920000e+02 : f32
    %24 = vector.broadcast %cst_16 : f32 to vector<128x128xf32>
    %25 = arith.mulf %23, %24 : vector<128x128xf32>
    %c0_17 = arith.constant 0 : index
    %c0_18 = arith.constant 0 : index
    %26 = vector.load %arg7[%c0_17, %c0_18] : memref<128x128xf32, #tpu.memory_space<vmem>>, vector<128x128xf32>
    %cst_19 = arith.constant dense<0.000000e+00> : vector<128x128xf32>
    %27 = tpu.matmul %25, %26, %cst_19 {dimension_numbers = #tpu.dot_dimension_numbers<[1], [0], [0], [1], [0, 0, 1, 1], [], []>} : vector<128x128xf32>, vector<128x128xf32>, vector<128x128xf32> -> vector<128x128xf32>
    %cst_20 = arith.constant dense<0.000000e+00> : vector<128xf32>
    %28 = vector.multi_reduction <add>, %27, %cst_20 [1] : vector<128x128xf32> to vector<128xf32>
    %29 = vector.shape_cast %28 : vector<128xf32> to vector<128x1xf32>
    %cst_21 = arith.constant 1.280000e+02 : f32
    %30 = vector.broadcast %cst_21 : f32 to vector<128x1xf32>
    %31 = arith.divf %29, %30 : vector<128x1xf32>
    %32 = vector.broadcast %31 : vector<128x1xf32> to vector<128x128xf32>
    %33 = arith.subf %27, %32 : vector<128x128xf32>
    %34 = arith.mulf %33, %33 : vector<128x128xf32>
    %cst_22 = arith.constant dense<0.000000e+00> : vector<128xf32>
    %35 = vector.multi_reduction <add>, %34, %cst_22 [1] : vector<128x128xf32> to vector<128xf32>
    %36 = vector.shape_cast %35 : vector<128xf32> to vector<128x1xf32>
    %cst_23 = arith.constant 1.280000e+02 : f32
    %37 = vector.broadcast %cst_23 : f32 to vector<128x1xf32>
    %38 = arith.divf %36, %37 : vector<128x1xf32>
    %39 = vector.broadcast %31 : vector<128x1xf32> to vector<128x128xf32>
    %40 = arith.subf %27, %39 : vector<128x128xf32>
    %cst_24 = arith.constant 9.99999974E-6 : f32
    %41 = vector.broadcast %cst_24 : f32 to vector<128x1xf32>
    %42 = arith.addf %38, %41 : vector<128x1xf32>
    %43 = math.rsqrt %42 : vector<128x1xf32>
    %44 = vector.broadcast %43 : vector<128x1xf32> to vector<128x128xf32>
    %45 = arith.mulf %40, %44 : vector<128x128xf32>
    %c0_25 = arith.constant 0 : index
    %c0_26 = arith.constant 0 : index
    %46 = vector.load %arg12[%c0_25, %c0_26] : memref<1x128xf32, #tpu.memory_space<vmem>>, vector<1x128xf32>
    %47 = vector.broadcast %46 : vector<1x128xf32> to vector<128x128xf32>
    %48 = arith.mulf %45, %47 : vector<128x128xf32>
    %c0_27 = arith.constant 0 : index
    %c0_28 = arith.constant 0 : index
    %49 = vector.load %arg13[%c0_27, %c0_28] : memref<1x128xf32, #tpu.memory_space<vmem>>, vector<1x128xf32>
    %50 = vector.broadcast %49 : vector<1x128xf32> to vector<128x128xf32>
    %51 = arith.addf %48, %50 : vector<128x128xf32>
    %c0_29 = arith.constant 0 : index
    %c0_30 = arith.constant 0 : index
    %52 = vector.load %arg8[%c0_29, %c0_30] : memref<128x256xf32, #tpu.memory_space<vmem>>, vector<128x256xf32>
    %cst_31 = arith.constant dense<0.000000e+00> : vector<128x256xf32>
    %53 = tpu.matmul %4, %52, %cst_31 {dimension_numbers = #tpu.dot_dimension_numbers<[1], [0], [0], [1], [0, 0, 1, 1], [], []>} : vector<128x128xf32>, vector<128x256xf32>, vector<128x256xf32> -> vector<128x256xf32>
    %c0_32 = arith.constant 0 : index
    %c0_33 = arith.constant 0 : index
    %54 = vector.load %arg9[%c0_32, %c0_33] : memref<128x256xf32, #tpu.memory_space<vmem>>, vector<128x256xf32>
    %cst_34 = arith.constant dense<0.000000e+00> : vector<128x256xf32>
    %55 = tpu.matmul %51, %54, %cst_34 {dimension_numbers = #tpu.dot_dimension_numbers<[1], [0], [0], [1], [0, 0, 1, 1], [], []>} : vector<128x128xf32>, vector<128x256xf32>, vector<128x256xf32> -> vector<128x256xf32>
    %56 = arith.addf %53, %55 : vector<128x256xf32>
    %cst_35 = arith.constant 0.000000e+00 : f32
    %57 = vector.broadcast %cst_35 : f32 to vector<128x256xf32>
    %58 = arith.maximumf %56, %57 : vector<128x256xf32>
    %c0_36 = arith.constant 0 : index
    %c0_37 = arith.constant 0 : index
    %59 = vector.load %arg10[%c0_36, %c0_37] : memref<256x128xf32, #tpu.memory_space<vmem>>, vector<256x128xf32>
    %cst_38 = arith.constant dense<0.000000e+00> : vector<128x128xf32>
    %60 = tpu.matmul %58, %59, %cst_38 {dimension_numbers = #tpu.dot_dimension_numbers<[1], [0], [0], [1], [0, 0, 1, 1], [], []>} : vector<128x256xf32>, vector<256x128xf32>, vector<128x128xf32> -> vector<128x128xf32>
    %cst_39 = arith.constant dense<0.000000e+00> : vector<128xf32>
    %61 = vector.multi_reduction <add>, %60, %cst_39 [1] : vector<128x128xf32> to vector<128xf32>
    %62 = vector.shape_cast %61 : vector<128xf32> to vector<128x1xf32>
    %cst_40 = arith.constant 1.280000e+02 : f32
    %63 = vector.broadcast %cst_40 : f32 to vector<128x1xf32>
    %64 = arith.divf %62, %63 : vector<128x1xf32>
    %65 = vector.broadcast %64 : vector<128x1xf32> to vector<128x128xf32>
    %66 = arith.subf %60, %65 : vector<128x128xf32>
    %67 = arith.mulf %66, %66 : vector<128x128xf32>
    %cst_41 = arith.constant dense<0.000000e+00> : vector<128xf32>
    %68 = vector.multi_reduction <add>, %67, %cst_41 [1] : vector<128x128xf32> to vector<128xf32>
    %69 = vector.shape_cast %68 : vector<128xf32> to vector<128x1xf32>
    %cst_42 = arith.constant 1.280000e+02 : f32
    %70 = vector.broadcast %cst_42 : f32 to vector<128x1xf32>
    %71 = arith.divf %69, %70 : vector<128x1xf32>
    %72 = vector.broadcast %64 : vector<128x1xf32> to vector<128x128xf32>
    %73 = arith.subf %60, %72 : vector<128x128xf32>
    %cst_43 = arith.constant 9.99999974E-6 : f32
    %74 = vector.broadcast %cst_43 : f32 to vector<128x1xf32>
    %75 = arith.addf %71, %74 : vector<128x1xf32>
    %76 = math.rsqrt %75 : vector<128x1xf32>
    %77 = vector.broadcast %76 : vector<128x1xf32> to vector<128x128xf32>
    %78 = arith.mulf %73, %77 : vector<128x128xf32>
    %c0_44 = arith.constant 0 : index
    %c0_45 = arith.constant 0 : index
    %79 = vector.load %arg14[%c0_44, %c0_45] : memref<1x128xf32, #tpu.memory_space<vmem>>, vector<1x128xf32>
    %80 = vector.broadcast %79 : vector<1x128xf32> to vector<128x128xf32>
    %81 = arith.mulf %78, %80 : vector<128x128xf32>
    %c0_46 = arith.constant 0 : index
    %c0_47 = arith.constant 0 : index
    %82 = vector.load %arg15[%c0_46, %c0_47] : memref<1x128xf32, #tpu.memory_space<vmem>>, vector<1x128xf32>
    %83 = vector.broadcast %82 : vector<1x128xf32> to vector<128x128xf32>
    %84 = arith.addf %81, %83 : vector<128x128xf32>
    %85 = arith.addf %4, %84 : vector<128x128xf32>
    %c0_48 = arith.constant 0 : index
    %c0_49 = arith.constant 0 : index
    %c0_50 = arith.constant 0 : index
    %86 = vector.load %arg16[%c0_48, %c0_49, %c0_50] : memref<1x128x128xf32, #tpu.memory_space<vmem>>, vector<1x128x128xf32>
    %87 = vector.shape_cast %86 : vector<1x128x128xf32> to vector<128x128xf32>
    %88 = vector.shape_cast %85 : vector<128x128xf32> to vector<1x128x128xf32>
    tpu.vector_store %arg16[%c0_48, %c0_49, %c0_50], %88 {strides = array<i32>} : memref<1x128x128xf32, #tpu.memory_space<vmem>>, vector<1x128x128xf32>,
    return
  }
  func.func @transform_0(%arg0: i32, %arg1: i32) -> (i32, i32, i32) {
    %c0_i32 = arith.constant 0 : i32
    %c0_i32_0 = arith.constant 0 : i32
    return %arg0, %arg1, %c0_i32 : i32, i32, i32
  }
  func.func @transform_1(%arg0: i32, %arg1: i32) -> (i32, i32, i32) {
    %c0_i32 = arith.constant 0 : i32
    %c0_i32_0 = arith.constant 0 : i32
    %c0_i32_1 = arith.constant 0 : i32
    return %arg0, %c0_i32, %c0_i32_0 : i32, i32, i32
  }
  func.func @transform_2(%arg0: i32, %arg1: i32) -> (i32, i32) {
    %c0_i32 = arith.constant 0 : i32
    %c0_i32_0 = arith.constant 0 : i32
    %c0_i32_1 = arith.constant 0 : i32
    return %c0_i32, %c0_i32_0 : i32, i32
  }
  func.func @transform_3(%arg0: i32, %arg1: i32) -> (i32, i32) {
    %c0_i32 = arith.constant 0 : i32
    %c0_i32_0 = arith.constant 0 : i32
    %c0_i32_1 = arith.constant 0 : i32
    return %c0_i32, %c0_i32_0 : i32, i32
  }
  func.func @transform_4(%arg0: i32, %arg1: i32) -> (i32, i32) {
    %c0_i32 = arith.constant 0 : i32
    %c0_i32_0 = arith.constant 0 : i32
    %c0_i32_1 = arith.constant 0 : i32
    return %c0_i32, %c0_i32_0 : i32, i32
  }
  func.func @transform_5(%arg0: i32, %arg1: i32) -> (i32, i32) {
    %c0_i32 = arith.constant 0 : i32
    %c0_i32_0 = arith.constant 0 : i32
    %c0_i32_1 = arith.constant 0 : i32
    return %c0_i32, %c0_i32_0 : i32, i32
  }
  func.func @transform_6(%arg0: i32, %arg1: i32) -> (i32, i32) {
    %c0_i32 = arith.constant 0 : i32
    %c0_i32_0 = arith.constant 0 : i32
    %c0_i32_1 = arith.constant 0 : i32
    return %c0_i32, %c0_i32_0 : i32, i32
  }
  func.func @transform_7(%arg0: i32, %arg1: i32) -> (i32, i32) {
    %c0_i32 = arith.constant 0 : i32
    %c0_i32_0 = arith.constant 0 : i32
    %c0_i32_1 = arith.constant 0 : i32
    return %c0_i32, %c0_i32_0 : i32, i32
  }
  func.func @transform_8(%arg0: i32, %arg1: i32) -> (i32, i32) {
    %c0_i32 = arith.constant 0 : i32
    %c0_i32_0 = arith.constant 0 : i32
    %c0_i32_1 = arith.constant 0 : i32
    return %c0_i32, %c0_i32_0 : i32, i32
  }
  func.func @transform_9(%arg0: i32, %arg1: i32) -> (i32, i32) {
    %c0_i32 = arith.constant 0 : i32
    %c0_i32_0 = arith.constant 0 : i32
    %c0_i32_1 = arith.constant 0 : i32
    return %c0_i32, %c0_i32_0 : i32, i32
  }
  func.func @transform_10(%arg0: i32, %arg1: i32) -> (i32, i32) {
    %c0_i32 = arith.constant 0 : i32
    %c0_i32_0 = arith.constant 0 : i32
    %c0_i32_1 = arith.constant 0 : i32
    return %c0_i32, %c0_i32_0 : i32, i32
  }
  func.func @transform_11(%arg0: i32, %arg1: i32) -> (i32, i32) {
    %c0_i32 = arith.constant 0 : i32
    %c0_i32_0 = arith.constant 0 : i32
    %c0_i32_1 = arith.constant 0 : i32
    return %c0_i32, %c0_i32_0 : i32, i32
  }
  func.func @transform_12(%arg0: i32, %arg1: i32) -> (i32, i32) {
    %c0_i32 = arith.constant 0 : i32
    %c0_i32_0 = arith.constant 0 : i32
    %c0_i32_1 = arith.constant 0 : i32
    return %c0_i32, %c0_i32_0 : i32, i32
  }
  func.func @transform_13(%arg0: i32, %arg1: i32) -> (i32, i32) {
    %c0_i32 = arith.constant 0 : i32
    %c0_i32_0 = arith.constant 0 : i32
    %c0_i32_1 = arith.constant 0 : i32
    return %c0_i32, %c0_i32_0 : i32, i32
  }
  func.func @transform_14(%arg0: i32, %arg1: i32) -> (i32, i32, i32) {
    %c0_i32 = arith.constant 0 : i32
    %c0_i32_0 = arith.constant 0 : i32
    return %arg0, %arg1, %c0_i32 : i32, i32, i32
  }
}

</mosaic_0001>

<llo_original>
// kernel: tpu_custom_call.1
$region0: #{tpu_custom_call.1}
  #allocation0 [shape = 'u32[]', space=smem, size = 0x4, offset = 0x4, fixed_abs, tag = 'smem constant byte address 0x4 - core index']
  #allocation1 [shape = 'u32[144,128]{1,0:T(1,128)}', space=vmem, size = 0x12000, scoped, tag = 'internal scratch']
  #allocation2 [shape = 'f32[128,128]{1,0:T(8,128)}', space=vmem, size = 0x10000, scoped, tag = 'scratch operand']
  #allocation3 [shape = 'f32[1,128]{1,0:T(1,128)}', space=vmem, size = 0x200, scoped, tag = 'scratch operand']
  %s0 = inlined_call_operand.hbm [shape: f32[2,256,128], index: 0, kind: input, shape index: {}]
  %s1 = inlined_call_operand.hbm [shape: f32[2,192,128], index: 1, kind: input, shape index: {}]
  %s2 = inlined_call_operand.hbm [shape: f32[128,128], index: 2, kind: input, shape index: {}]
  %s3 = inlined_call_operand.hbm [shape: f32[128,128], index: 3, kind: input, shape index: {}]
  %s4 = inlined_call_operand.hbm [shape: f32[128,128], index: 4, kind: input, shape index: {}]
  %s5 = inlined_call_operand.hbm [shape: f32[128,128], index: 5, kind: input, shape index: {}]
  %s6 = inlined_call_operand.hbm [shape: f32[128,256], index: 6, kind: input, shape index: {}]
  %s7 = inlined_call_operand.hbm [shape: f32[128,256], index: 7, kind: input, shape index: {}]
  %s8 = inlined_call_operand.hbm [shape: f32[256,128], index: 8, kind: input, shape index: {}]
  %s9 = inlined_call_operand.hbm [shape: f32[128,128], index: 9, kind: input, shape index: {}]
  %s10 = inlined_call_operand.vmem [shape: f32[1,128], index: 10, kind: input, shape index: {}]
  %s11 = inlined_call_operand.vmem [shape: f32[1,128], index: 11, kind: input, shape index: {}]
  %s12 = inlined_call_operand.vmem [shape: f32[1,128], index: 12, kind: input, shape index: {}]
  %s13 = inlined_call_operand.vmem [shape: f32[1,128], index: 13, kind: input, shape index: {}]
  %s14 = inlined_call_operand.hbm [shape: f32[2,256,128], index: 14, kind: output, shape index: {}]
  %s15 = sld [smem:[#allocation0]]
  $region133: #{tpu_custom_call.1} parent=0
    _
  %s17 = ssub.s32 1, %s15
  %s18 = scalar_select 0, %s17, %s15
  $region1: #{tpu_custom_call.1} parent=0
    #allocation4 [shape = 'u8[131072]{0}', space=vmem, size = 0x20000, scoped, tag = 'input window, operand 0']
    #allocation5 [shape = 's32[2]{0}', space=sflag, size = 0x8, scoped, tag = 'scoped memory for tpu_custom_call.1']
    #allocation6 [shape = 's32[2]{0}', space=sflag, size = 0x8, scoped, tag = 'scoped memory for tpu_custom_call.1']
    #allocation7 [shape = 'u8[196608]{0}', space=vmem, size = 0x30000, scoped, tag = 'input window, operand 1']
    #allocation8 [shape = 's32[2]{0}', space=sflag, size = 0x8, scoped, tag = 'scoped memory for tpu_custom_call.1']
    #allocation9 [shape = 'u8[65536]{0}', space=vmem, size = 0x10000, scoped, tag = 'input window, operand 2, single buffered']
    #allocation10 [shape = 'u8[65536]{0}', space=vmem, size = 0x10000, scoped, tag = 'input window, operand 3, single buffered']
    #allocation11 [shape = 's32[1]{0}', space=sflag, size = 0x4, scoped, tag = 'scoped memory for tpu_custom_call.1']
    #allocation12 [shape = 'u8[65536]{0}', space=vmem, size = 0x10000, scoped, tag = 'input window, operand 4, single buffered']
    #allocation13 [shape = 'u8[65536]{0}', space=vmem, size = 0x10000, scoped, tag = 'input window, operand 5, single buffered']
    #allocation14 [shape = 's32[1]{0}', space=sflag, size = 0x4, scoped, tag = 'scoped memory for tpu_custom_call.1']
    #allocation15 [shape = 'u8[131072]{0}', space=vmem, size = 0x20000, scoped, tag = 'input window, operand 6, single buffered']
    #allocation16 [shape = 'u8[131072]{0}', space=vmem, size = 0x20000, scoped, tag = 'input window, operand 7, single buffered']
    #allocation17 [shape = 's32[1]{0}', space=sflag, size = 0x4, scoped, tag = 'scoped memory for tpu_custom_call.1']
    #allocation18 [shape = 'u8[131072]{0}', space=vmem, size = 0x20000, scoped, tag = 'input window, operand 8, single buffered']
    #allocation19 [shape = 'u8[65536]{0}', space=vmem, size = 0x10000, scoped, tag = 'input window, operand 9, single buffered']
    #allocation20 [shape = 's32[1]{0}', space=sflag, size = 0x4, scoped, tag = 'scoped memory for tpu_custom_call.1']
    #allocation21 [shape = 'u8[131072]{0}', space=vmem, size = 0x20000, scoped, tag = 'output window, operand 0']
    %19 = vsyncpa [#allocation5], 0
    %s20 = scalar_lea.sflag [#allocation5], 1
    %21 = vsyncpa %s20, 0
    %22 = vsyncpa [#allocation8], 0
    %s23 = scalar_lea.sflag [#allocation8], 1
    %24 = vsyncpa %s23, 0
    %25 = vsyncpa [#allocation11], 0
    %26 = vsyncpa [#allocation14], 0
    %27 = vsyncpa [#allocation17], 0
    %28 = vsyncpa [#allocation20], 0
    %29 = vsyncpa [#allocation6], 0
    %s30 = scalar_lea.sflag [#allocation6], 1
    %31 = vsyncpa %s30, 0
    loop: start=0, step=1, limit=6
    $region2: #{tpu_custom_call.1} parent=1 // loop_pre_header
      _
    $region3: #{tpu_custom_call.1} parent=1 // loop_header
      %s33 = sphi 0, %s37
      %p34 = scmp.ge.s32.totalorder %s33, 6
      %s40 = sphi 0, %s52
      %s41 = sphi 0, %s48
      %s42 = sphi 0, %s40
      %s43 = sphi 0, %s41
      %s44 = sphi 0, %s42
      %s45 = sphi 0, %s43
      %s57 = sphi 0, %s59
      %s60 = sphi 0, %s57
      %s61 = sphi 0, %s60
      %s77 = sphi 0, %s61
      %s83 = sphi 0, %s85
      %s86 = sphi 0, %s83
      %s87 = sphi 0, %s86
      %s103 = sphi 0, %s87
      %s107 = sphi 0, %s107
      %s109 = sphi 0, %s107
      %s110 = sphi 0, %s109
      %s124 = sphi 0, %s110
      %s128 = sphi 0, %s128
      %s130 = sphi 0, %s128
      %s131 = sphi 0, %s130
      %s145 = sphi 0, %s131
      %s149 = sphi 0, %s149
      %s151 = sphi 0, %s149
      %s152 = sphi 0, %s151
      %s166 = sphi 0, %s152
      %s170 = sphi 0, %s170
      %s172 = sphi 0, %s170
      %s173 = sphi 0, %s172
      %s187 = sphi 0, %s173
      %s191 = sphi 0, %s191
      %s193 = sphi 0, %s191
      %s194 = sphi 0, %s193
      %s208 = sphi 0, %s194
      %s212 = sphi 0, %s212
      %s214 = sphi 0, %s212
      %s215 = sphi 0, %s214
      %s229 = sphi 0, %s215
      %s233 = sphi 0, %s233
      %s235 = sphi 0, %s233
      %s236 = sphi 0, %s235
      %s250 = sphi 0, %s236
      %s254 = sphi 0, %s254
      %s256 = sphi 0, %s254
      %s257 = sphi 0, %s256
      %s271 = sphi 0, %s257
      %s275 = sphi 0, %s275
      %s277 = sphi 0, %s275
      %s278 = sphi 0, %s277
      %s292 = sphi 0, %s278
      %s296 = sphi 0, %s296
      %s298 = sphi 0, %s296
      %s299 = sphi 0, %s298
      %s313 = sphi 0, %s299
      %s317 = sphi 0, %s317
      %s319 = sphi 0, %s317
      %s320 = sphi 0, %s319
      %s334 = sphi 0, %s320
      %s338 = sphi 0, %s338
      %s340 = sphi 0, %s338
      %s341 = sphi 0, %s340
      %s355 = sphi 0, %s341
      %s363 = sphi 0, %s365
      %s366 = sphi 0, %s363
      %s367 = sphi 0, %s366
      %s383 = sphi 0, %s367
    $region4: #{tpu_custom_call.1} parent=1 // loop_header_branch
      %36 = sbr.rel (%p34) target = $region8
    $region5: #{tpu_custom_call.1} parent=1 // loop_body
      %s38 = ssub.s32 %s33, 1
      %s39 = ssub.s32 %s33, 2
      %s46 = sadd.s32 1, %s41
      %p47 = scmp.ge.s32.totalorder %s46, 2
      %s48 = scalar_select %p47, 0, %s46
      %s49 = sadd.s32 1, %s40
      %s50 = scalar_select %p47, %s49, %s40
      %p51 = scmp.ge.s32.totalorder %s50, 2
      %s52 = scalar_select %p51, 0, %s50
      %s53 = ssub.s32 %s40, %s52
      %s54 = ssub.s32 %s41, %s48
      %s55 = sor.u32 %s53, %s54
      %p56 = scmp.eq.s32.totalorder %s55, 0
      %s58 = sadd.s32 %s57, 1
      %s59 = scalar_select %p56, %s57, %s58
      %p62 = pneg %p56
      %p63 = scmp.eq.s32.totalorder %s33, 3
      %p64 = por %p62, %p63
      %p65 = scmp.ne.s32.totalorder %s57, %s60
      %p66 = scmp.eq.s32.totalorder %s33, 0
      %p67 = por %p65, %p66
      %p68 = scmp.ne.s32.totalorder %s57, %s60
      %p69 = scmp.eq.s32.totalorder %s38, 3
      %p70 = por %p68, %p69
      %p71 = scmp.ne.s32.totalorder %s60, %s61
      %p72 = scmp.eq.s32.totalorder %s38, 0
      %p73 = por %p71, %p72
      %p74 = scmp.ne.s32.totalorder %s60, %s61
      %p75 = scmp.eq.s32.totalorder %s39, 3
      %p76 = por %p74, %p75
      %p78 = scmp.ne.s32.totalorder %s61, %s77
      %p79 = scmp.eq.s32.totalorder %s39, 0
      %p80 = por %p78, %p79
      %s81 = ssub.s32 %s40, %s52
      %p82 = scmp.eq.s32.totalorder %s81, 0
      %s84 = sadd.s32 %s83, 1
      %s85 = scalar_select %p82, %s83, %s84
      %p88 = pneg %p82
      %p89 = scmp.eq.s32.totalorder %s33, 3
      %p90 = por %p88, %p89
      %p91 = scmp.ne.s32.totalorder %s83, %s86
      %p92 = scmp.eq.s32.totalorder %s33, 0
      %p93 = por %p91, %p92
      %p94 = scmp.ne.s32.totalorder %s83, %s86
      %p95 = scmp.eq.s32.totalorder %s38, 3
      %p96 = por %p94, %p95
      %p97 = scmp.ne.s32.totalorder %s86, %s87
      %p98 = scmp.eq.s32.totalorder %s38, 0
      %p99 = por %p97, %p98
      %p100 = scmp.ne.s32.totalorder %s86, %s87
      %p101 = scmp.eq.s32.totalorder %s39, 3
      %p102 = por %p100, %p101
      %p104 = scmp.ne.s32.totalorder %s87, %s103
      %p105 = scmp.eq.s32.totalorder %s39, 0
      %p106 = por %p104, %p105
      %s108 = sadd.s32 %s107, 1
      %p111 = scmp.eq.s32.totalorder %s33, 3
      %p112 = scmp.ne.s32.totalorder %s107, %s109
      %p113 = scmp.eq.s32.totalorder %s33, 0
      %p114 = por %p112, %p113
      %p115 = scmp.ne.s32.totalorder %s107, %s109
      %p116 = scmp.eq.s32.totalorder %s38, 3
      %p117 = por %p115, %p116
      %p118 = scmp.ne.s32.totalorder %s109, %s110
      %p119 = scmp.eq.s32.totalorder %s38, 0
      %p120 = por %p118, %p119
      %p121 = scmp.ne.s32.totalorder %s109, %s110
      %p122 = scmp.eq.s32.totalorder %s39, 3
      %p123 = por %p121, %p122
      %p125 = scmp.ne.s32.totalorder %s110, %s124
      %p126 = scmp.eq.s32.totalorder %s39, 0
      %p127 = por %p125, %p126
      %s129 = sadd.s32 %s128, 1
      %p132 = scmp.eq.s32.totalorder %s33, 3
      %p133 = scmp.ne.s32.totalorder %s128, %s130
      %p134 = scmp.eq.s32.totalorder %s33, 0
      %p135 = por %p133, %p134
      %p136 = scmp.ne.s32.totalorder %s128, %s130
      %p137 = scmp.eq.s32.totalorder %s38, 3
      %p138 = por %p136, %p137
      %p139 = scmp.ne.s32.totalorder %s130, %s131
      %p140 = scmp.eq.s32.totalorder %s38, 0
      %p141 = por %p139, %p140
      %p142 = scmp.ne.s32.totalorder %s130, %s131
      %p143 = scmp.eq.s32.totalorder %s39, 3
      %p144 = por %p142, %p143
      %p146 = scmp.ne.s32.totalorder %s131, %s145
      %p147 = scmp.eq.s32.totalorder %s39, 0
      %p148 = por %p146, %p147
      %s150 = sadd.s32 %s149, 1
      %p153 = scmp.eq.s32.totalorder %s33, 3
      %p154 = scmp.ne.s32.totalorder %s149, %s151
      %p155 = scmp.eq.s32.totalorder %s33, 0
      %p156 = por %p154, %p155
      %p157 = scmp.ne.s32.totalorder %s149, %s151
      %p158 = scmp.eq.s32.totalorder %s38, 3
      %p159 = por %p157, %p158
      %p160 = scmp.ne.s32.totalorder %s151, %s152
      %p161 = scmp.eq.s32.totalorder %s38, 0
      %p162 = por %p160, %p161
      %p163 = scmp.ne.s32.totalorder %s151, %s152
      %p164 = scmp.eq.s32.totalorder %s39, 3
      %p165 = por %p163, %p164
      %p167 = scmp.ne.s32.totalorder %s152, %s166
      %p168 = scmp.eq.s32.totalorder %s39, 0
      %p169 = por %p167, %p168
      %s171 = sadd.s32 %s170, 1
      %p174 = scmp.eq.s32.totalorder %s33, 3
      %p175 = scmp.ne.s32.totalorder %s170, %s172
      %p176 = scmp.eq.s32.totalorder %s33, 0
      %p177 = por %p175, %p176
      %p178 = scmp.ne.s32.totalorder %s170, %s172
      %p179 = scmp.eq.s32.totalorder %s38, 3
      %p180 = por %p178, %p179
      %p181 = scmp.ne.s32.totalorder %s172, %s173
      %p182 = scmp.eq.s32.totalorder %s38, 0
      %p183 = por %p181, %p182
      %p184 = scmp.ne.s32.totalorder %s172, %s173
      %p185 = scmp.eq.s32.totalorder %s39, 3
      %p186 = por %p184, %p185
      %p188 = scmp.ne.s32.totalorder %s173, %s187
      %p189 = scmp.eq.s32.totalorder %s39, 0
      %p190 = por %p188, %p189
      %s192 = sadd.s32 %s191, 1
      %p195 = scmp.eq.s32.totalorder %s33, 3
      %p196 = scmp.ne.s32.totalorder %s191, %s193
      %p197 = scmp.eq.s32.totalorder %s33, 0
      %p198 = por %p196, %p197
      %p199 = scmp.ne.s32.totalorder %s191, %s193
      %p200 = scmp.eq.s32.totalorder %s38, 3
      %p201 = por %p199, %p200
      %p202 = scmp.ne.s32.totalorder %s193, %s194
      %p203 = scmp.eq.s32.totalorder %s38, 0
      %p204 = por %p202, %p203
      %p205 = scmp.ne.s32.totalorder %s193, %s194
      %p206 = scmp.eq.s32.totalorder %s39, 3
      %p207 = por %p205, %p206
      %p209 = scmp.ne.s32.totalorder %s194, %s208
      %p210 = scmp.eq.s32.totalorder %s39, 0
      %p211 = por %p209, %p210
      %s213 = sadd.s32 %s212, 1
      %p216 = scmp.eq.s32.totalorder %s33, 3
      %p217 = scmp.ne.s32.totalorder %s212, %s214
      %p218 = scmp.eq.s32.totalorder %s33, 0
      %p219 = por %p217, %p218
      %p220 = scmp.ne.s32.totalorder %s212, %s214
      %p221 = scmp.eq.s32.totalorder %s38, 3
      %p222 = por %p220, %p221
      %p223 = scmp.ne.s32.totalorder %s214, %s215
      %p224 = scmp.eq.s32.totalorder %s38, 0
      %p225 = por %p223, %p224
      %p226 = scmp.ne.s32.totalorder %s214, %s215
      %p227 = scmp.eq.s32.totalorder %s39, 3
      %p228 = por %p226, %p227
      %p230 = scmp.ne.s32.totalorder %s215, %s229
      %p231 = scmp.eq.s32.totalorder %s39, 0
      %p232 = por %p230, %p231
      %s234 = sadd.s32 %s233, 1
      %p237 = scmp.eq.s32.totalorder %s33, 3
      %p238 = scmp.ne.s32.totalorder %s233, %s235
      %p239 = scmp.eq.s32.totalorder %s33, 0
      %p240 = por %p238, %p239
      %p241 = scmp.ne.s32.totalorder %s233, %s235
      %p242 = scmp.eq.s32.totalorder %s38, 3
      %p243 = por %p241, %p242
      %p244 = scmp.ne.s32.totalorder %s235, %s236
      %p245 = scmp.eq.s32.totalorder %s38, 0
      %p246 = por %p244, %p245
      %p247 = scmp.ne.s32.totalorder %s235, %s236
      %p248 = scmp.eq.s32.totalorder %s39, 3
      %p249 = por %p247, %p248
      %p251 = scmp.ne.s32.totalorder %s236, %s250
      %p252 = scmp.eq.s32.totalorder %s39, 0
      %p253 = por %p251, %p252
      %s255 = sadd.s32 %s254, 1
      %p258 = scmp.eq.s32.totalorder %s33, 3
      %p259 = scmp.ne.s32.totalorder %s254, %s256
      %p260 = scmp.eq.s32.totalorder %s33, 0
      %p261 = por %p259, %p260
      %p262 = scmp.ne.s32.totalorder %s254, %s256
      %p263 = scmp.eq.s32.totalorder %s38, 3
      %p264 = por %p262, %p263
      %p265 = scmp.ne.s32.totalorder %s256, %s257
      %p266 = scmp.eq.s32.totalorder %s38, 0
      %p267 = por %p265, %p266
      %p268 = scmp.ne.s32.totalorder %s256, %s257
      %p269 = scmp.eq.s32.totalorder %s39, 3
      %p270 = por %p268, %p269
      %p272 = scmp.ne.s32.totalorder %s257, %s271
      %p273 = scmp.eq.s32.totalorder %s39, 0
      %p274 = por %p272, %p273
      %s276 = sadd.s32 %s275, 1
      %p279 = scmp.eq.s32.totalorder %s33, 3
      %p280 = scmp.ne.s32.totalorder %s275, %s277
      %p281 = scmp.eq.s32.totalorder %s33, 0
      %p282 = por %p280, %p281
      %p283 = scmp.ne.s32.totalorder %s275, %s277
      %p284 = scmp.eq.s32.totalorder %s38, 3
      %p285 = por %p283, %p284
      %p286 = scmp.ne.s32.totalorder %s277, %s278
      %p287 = scmp.eq.s32.totalorder %s38, 0
      %p288 = por %p286, %p287
      %p289 = scmp.ne.s32.totalorder %s277, %s278
      %p290 = scmp.eq.s32.totalorder %s39, 3
      %p291 = por %p289, %p290
      %p293 = scmp.ne.s32.totalorder %s278, %s292
      %p294 = scmp.eq.s32.totalorder %s39, 0
      %p295 = por %p293, %p294
      %s297 = sadd.s32 %s296, 1
      %p300 = scmp.eq.s32.totalorder %s33, 3
      %p301 = scmp.ne.s32.totalorder %s296, %s298
      %p302 = scmp.eq.s32.totalorder %s33, 0
      %p303 = por %p301, %p302
      %p304 = scmp.ne.s32.totalorder %s296, %s298
      %p305 = scmp.eq.s32.totalorder %s38, 3
      %p306 = por %p304, %p305
      %p307 = scmp.ne.s32.totalorder %s298, %s299
      %p308 = scmp.eq.s32.totalorder %s38, 0
      %p309 = por %p307, %p308
      %p310 = scmp.ne.s32.totalorder %s298, %s299
      %p311 = scmp.eq.s32.totalorder %s39, 3
      %p312 = por %p310, %p311
      %p314 = scmp.ne.s32.totalorder %s299, %s313
      %p315 = scmp.eq.s32.totalorder %s39, 0
      %p316 = por %p314, %p315
      %s318 = sadd.s32 %s317, 1
      %p321 = scmp.eq.s32.totalorder %s33, 3
      %p322 = scmp.ne.s32.totalorder %s317, %s319
      %p323 = scmp.eq.s32.totalorder %s33, 0
      %p324 = por %p322, %p323
      %p325 = scmp.ne.s32.totalorder %s317, %s319
      %p326 = scmp.eq.s32.totalorder %s38, 3
      %p327 = por %p325, %p326
      %p328 = scmp.ne.s32.totalorder %s319, %s320
      %p329 = scmp.eq.s32.totalorder %s38, 0
      %p330 = por %p328, %p329
      %p331 = scmp.ne.s32.totalorder %s319, %s320
      %p332 = scmp.eq.s32.totalorder %s39, 3
      %p333 = por %p331, %p332
      %p335 = scmp.ne.s32.totalorder %s320, %s334
      %p336 = scmp.eq.s32.totalorder %s39, 0
      %p337 = por %p335, %p336
      %s339 = sadd.s32 %s338, 1
      %p342 = scmp.eq.s32.totalorder %s33, 3
      %p343 = scmp.ne.s32.totalorder %s338, %s340
      %p344 = scmp.eq.s32.totalorder %s33, 0
      %p345 = por %p343, %p344
      %p346 = scmp.ne.s32.totalorder %s338, %s340
      %p347 = scmp.eq.s32.totalorder %s38, 3
      %p348 = por %p346, %p347
      %p349 = scmp.ne.s32.totalorder %s340, %s341
      %p350 = scmp.eq.s32.totalorder %s38, 0
      %p351 = por %p349, %p350
      %p352 = scmp.ne.s32.totalorder %s340, %s341
      %p353 = scmp.eq.s32.totalorder %s39, 3
      %p354 = por %p352, %p353
      %p356 = scmp.ne.s32.totalorder %s341, %s355
      %p357 = scmp.eq.s32.totalorder %s39, 0
      %p358 = por %p356, %p357
      %s359 = ssub.s32 %s40, %s52
      %s360 = ssub.s32 %s41, %s48
      %s361 = sor.u32 %s359, %s360
      %p362 = scmp.eq.s32.totalorder %s361, 0
      %s364 = sadd.s32 %s363, 1
      %s365 = scalar_select %p362, %s363, %s364
      %p368 = pneg %p362
      %p369 = scmp.eq.s32.totalorder %s33, 3
      %p370 = por %p368, %p369
      %p371 = scmp.ne.s32.totalorder %s363, %s366
      %p372 = scmp.eq.s32.totalorder %s33, 0
      %p373 = por %p371, %p372
      %p374 = scmp.ne.s32.totalorder %s363, %s366
      %p375 = scmp.eq.s32.totalorder %s38, 3
      %p376 = por %p374, %p375
      %p377 = scmp.ne.s32.totalorder %s366, %s367
      %p378 = scmp.eq.s32.totalorder %s38, 0
      %p379 = por %p377, %p378
      %p380 = scmp.ne.s32.totalorder %s366, %s367
      %p381 = scmp.eq.s32.totalorder %s39, 3
      %p382 = por %p380, %p381
      %p384 = scmp.ne.s32.totalorder %s367, %s383
      %p385 = scmp.eq.s32.totalorder %s39, 0
      %p386 = por %p384, %p385
      %p387 = scmp.le.s32.totalorder 1, %s33
      %p388 = scmp.lt.s32.totalorder %s33, 5
      %p389 = pnand %p387, %p388
      %p390 = pneg %p389
      // Predicated region
      $region9: #{tpu_custom_call.1} parent=5 // pred_check
        _
      $region10: #{tpu_custom_call.1} parent=5 // pred_check_branch
        %392 = sbr.rel (%p389) target = $region12
      $region11: #{tpu_custom_call.1} parent=5 // pred_region
        %s393 = ssub.s32 %s33, 1
        // Predicated region
        $region13: #{tpu_custom_call.1} parent=11 // pred_check
          %p394 = pneg %p120
        $region14: #{tpu_custom_call.1} parent=11 // pred_check_branch
          %396 = sbr.rel (%p394) target = $region16
        $region15: #{tpu_custom_call.1} parent=11 // pred_region
          %s398 = ssub.s32 2048, 2048
          %399 = vsyncadd [#allocation8], %s398
          %s400 = sshll.u32 [#allocation9], 4
          %s401 = int_to_ptr.vmem [resolvable:$true] %s400
          %406 = dma.hbm_to_vmem [thread:$0]  %s2, 2048, %s401, [#allocation8], 128, 128, 8
        $region16: #{tpu_custom_call.1} parent=11 // pred_fallthru
          _
        // Predicated region
        $region17: #{tpu_custom_call.1} parent=11 // pred_check
          %p407 = pneg %p141
        $region18: #{tpu_custom_call.1} parent=11 // pred_check_branch
          %409 = sbr.rel (%p407) target = $region20
        $region19: #{tpu_custom_call.1} parent=11 // pred_region
          %s411 = ssub.s32 2048, 2048
          %412 = vsyncadd [#allocation11], %s411
          %s413 = sshll.u32 [#allocation10], 4
          %s414 = int_to_ptr.vmem [resolvable:$true] %s413
          %419 = dma.hbm_to_vmem [thread:$0]  %s3, 2048, %s414, [#allocation11], 128, 128, 8
        $region20: #{tpu_custom_call.1} parent=11 // pred_fallthru
          _
        // Predicated region
        $region21: #{tpu_custom_call.1} parent=11 // pred_check
          %p420 = pneg %p162
        $region22: #{tpu_custom_call.1} parent=11 // pred_check_branch
          %422 = sbr.rel (%p420) target = $region24
        $region23: #{tpu_custom_call.1} parent=11 // pred_region
          %s424 = ssub.s32 2048, 2048
          %425 = vsyncadd [#allocation11], %s424
          %s426 = sshll.u32 [#allocation12], 4
          %s427 = int_to_ptr.vmem [resolvable:$true] %s426
          %432 = dma.hbm_to_vmem [thread:$0]  %s4, 2048, %s427, [#allocation11], 128, 128, 8
        $region24: #{tpu_custom_call.1} parent=11 // pred_fallthru
          _
        // Predicated region
        $region25: #{tpu_custom_call.1} parent=11 // pred_check
          %p433 = pneg %p183
        $region26: #{tpu_custom_call.1} parent=11 // pred_check_branch
          %435 = sbr.rel (%p433) target = $region28
        $region27: #{tpu_custom_call.1} parent=11 // pred_region
          %s437 = ssub.s32 2048, 2048
          %438 = vsyncadd [#allocation14], %s437
          %s439 = sshll.u32 [#allocation13], 4
          %s440 = int_to_ptr.vmem [resolvable:$true] %s439
          %445 = dma.hbm_to_vmem [thread:$0]  %s5, 2048, %s440, [#allocation14], 128, 128, 8
        $region28: #{tpu_custom_call.1} parent=11 // pred_fallthru
          _
        // Predicated region
        $region29: #{tpu_custom_call.1} parent=11 // pred_check
          %p446 = pneg %p204
        $region30: #{tpu_custom_call.1} parent=11 // pred_check_branch
          %448 = sbr.rel (%p446) target = $region32
        $region31: #{tpu_custom_call.1} parent=11 // pred_region
          %s450 = ssub.s32 4096, 4096
          %451 = vsyncadd [#allocation14], %s450
          %s452 = sshll.u32 [#allocation15], 4
          %s453 = int_to_ptr.vmem [resolvable:$true] %s452
          %458 = dma.hbm_to_vmem [thread:$0]  %s6, 4096, %s453, [#allocation14], 256, 256, 16
        $region32: #{tpu_custom_call.1} parent=11 // pred_fallthru
          _
        // Predicated region
        $region33: #{tpu_custom_call.1} parent=11 // pred_check
          %p459 = pneg %p225
        $region34: #{tpu_custom_call.1} parent=11 // pred_check_branch
          %461 = sbr.rel (%p459) target = $region36
        $region35: #{tpu_custom_call.1} parent=11 // pred_region
          %s463 = ssub.s32 4096, 4096
          %464 = vsyncadd [#allocation17], %s463
          %s465 = sshll.u32 [#allocation16], 4
          %s466 = int_to_ptr.vmem [resolvable:$true] %s465
          %471 = dma.hbm_to_vmem [thread:$0]  %s7, 4096, %s466, [#allocation17], 256, 256, 16
        $region36: #{tpu_custom_call.1} parent=11 // pred_fallthru
          _
        // Predicated region
        $region37: #{tpu_custom_call.1} parent=11 // pred_check
          %p472 = pneg %p246
        $region38: #{tpu_custom_call.1} parent=11 // pred_check_branch
          %474 = sbr.rel (%p472) target = $region40
        $region39: #{tpu_custom_call.1} parent=11 // pred_region
          %s476 = ssub.s32 4096, 4096
          %477 = vsyncadd [#allocation17], %s476
          %s478 = sshll.u32 [#allocation18], 4
          %s479 = int_to_ptr.vmem [resolvable:$true] %s478
          %484 = dma.hbm_to_vmem [thread:$0]  %s8, 4096, %s479, [#allocation17], 128, 128, 8
        $region40: #{tpu_custom_call.1} parent=11 // pred_fallthru
          _
        // Predicated region
        $region41: #{tpu_custom_call.1} parent=11 // pred_check
          %p485 = pneg %p267
        $region42: #{tpu_custom_call.1} parent=11 // pred_check_branch
          %487 = sbr.rel (%p485) target = $region44
        $region43: #{tpu_custom_call.1} parent=11 // pred_region
          %s489 = ssub.s32 2048, 2048
          %490 = vsyncadd [#allocation20], %s489
          %s491 = sshll.u32 [#allocation19], 4
          %s492 = int_to_ptr.vmem [resolvable:$true] %s491
          %497 = dma.hbm_to_vmem [thread:$0]  %s9, 2048, %s492, [#allocation20], 128, 128, 8
        $region44: #{tpu_custom_call.1} parent=11 // pred_fallthru
          _
        // Predicated region
        $region45: #{tpu_custom_call.1} parent=11 // pred_check
          %p498 = pneg %p288
        $region46: #{tpu_custom_call.1} parent=11 // pred_check_branch
          %500 = sbr.rel (%p498) target = $region48
        $region47: #{tpu_custom_call.1} parent=11 // pred_region
          _
        $region48: #{tpu_custom_call.1} parent=11 // pred_fallthru
          _
        // Predicated region
        $region49: #{tpu_custom_call.1} parent=11 // pred_check
          %p501 = pneg %p309
        $region50: #{tpu_custom_call.1} parent=11 // pred_check_branch
          %503 = sbr.rel (%p501) target = $region52
        $region51: #{tpu_custom_call.1} parent=11 // pred_region
          _
        $region52: #{tpu_custom_call.1} parent=11 // pred_fallthru
          _
        // Predicated region
        $region53: #{tpu_custom_call.1} parent=11 // pred_check
          %p504 = pneg %p330
        $region54: #{tpu_custom_call.1} parent=11 // pred_check_branch
          %506 = sbr.rel (%p504) target = $region56
        $region55: #{tpu_custom_call.1} parent=11 // pred_region
          _
        $region56: #{tpu_custom_call.1} parent=11 // pred_fallthru
          _
        // Predicated region
        $region57: #{tpu_custom_call.1} parent=11 // pred_check
          %p507 = pneg %p351
        $region58: #{tpu_custom_call.1} parent=11 // pred_check_branch
          %509 = sbr.rel (%p507) target = $region60
        $region59: #{tpu_custom_call.1} parent=11 // pred_region
          _
        $region60: #{tpu_custom_call.1} parent=11 // pred_fallthru
          _
      $region12: #{tpu_custom_call.1} parent=5 // pred_fallthru
        _
      %p510 = scmp.lt.s32.totalorder %s33, 4
      // Predicated region
      $region61: #{tpu_custom_call.1} parent=5 // pred_check
        %p511 = pneg %p510
      $region62: #{tpu_custom_call.1} parent=5 // pred_check_branch
        %513 = sbr.rel (%p511) target = $region64
      $region63: #{tpu_custom_call.1} parent=5 // pred_region
        // Predicated region
        $region65: #{tpu_custom_call.1} parent=63 // pred_check
          %p514 = pneg %p67
        $region66: #{tpu_custom_call.1} parent=63 // pred_check_branch
          %516 = sbr.rel (%p514) target = $region68
        $region67: #{tpu_custom_call.1} parent=63 // pred_region
          %s517 = sand.u32 %s57, 1
          %s518 = scalar_lea.sflag [#allocation5], %s517
          %s519 = sand.u32 %s57, 1
          %s520 = smul.addr %s519, 128
          %s521 = scalar_lea.vmem [#allocation4], %s520
          %s522 = smul.u32 16, %s41
          %s524 = ssub.s32 2048, 2048
          %525 = vsyncadd %s518, %s524
          %s526 = smul.addr %s40, 32
          %s527 = sadd.s32 %s522, %s526
          %s528 = smul.addr %s527, 128
          %s529 = scalar_lea.hbm %s0, %s528
          %s530 = sshll.u32 %s521, 4
          %s531 = int_to_ptr.vmem [resolvable:$true] %s530
          %536 = dma.hbm_to_vmem [thread:$0]  %s529, 2048, %s531, %s518, 128, 128, 8
        $region68: #{tpu_custom_call.1} parent=63 // pred_fallthru
          _
        // Predicated region
        $region69: #{tpu_custom_call.1} parent=63 // pred_check
          %p537 = pneg %p93
        $region70: #{tpu_custom_call.1} parent=63 // pred_check_branch
          %539 = sbr.rel (%p537) target = $region72
        $region71: #{tpu_custom_call.1} parent=63 // pred_region
          %s540 = sand.u32 %s33, 1
          %s541 = scalar_lea.sflag [#allocation8], %s540
          %s542 = sand.u32 %s83, 1
          %s543 = smul.addr %s542, 192
          %s544 = scalar_lea.vmem [#allocation7], %s543
          %s546 = ssub.s32 3072, 3072
          %547 = vsyncadd %s541, %s546
          %s548 = smul.addr %s40, 24
          %s549 = smul.addr %s548, 128
          %s550 = scalar_lea.hbm %s1, %s549
          %s551 = sshll.u32 %s544, 4
          %s552 = int_to_ptr.vmem [resolvable:$true] %s551
          %557 = dma.hbm_to_vmem [thread:$0]  %s550, 3072, %s552, %s541, 128, 128, 8
        $region72: #{tpu_custom_call.1} parent=63 // pred_fallthru
          _
      $region64: #{tpu_custom_call.1} parent=5 // pred_fallthru
        _
      %p558 = scmp.le.s32.totalorder 1, %s33
      %p559 = scmp.lt.s32.totalorder %s33, 5
      %p560 = pnand %p558, %p559
      %p561 = pneg %p560
      // Predicated region
      $region73: #{tpu_custom_call.1} parent=5 // pred_check
        _
      $region74: #{tpu_custom_call.1} parent=5 // pred_check_branch
        %563 = sbr.rel (%p560) target = $region76
      $region75: #{tpu_custom_call.1} parent=5 // pred_region
        %s564 = ssub.s32 %s33, 1
        %s565 = sand.u32 %s60, 1
        %s566 = scalar_lea.sflag [#allocation5], %s565
        %s567 = sand.u32 %s60, 1
        %s568 = smul.addr %s567, 128
        %s569 = scalar_lea.vmem [#allocation4], %s568
        // Predicated region
        $region77: #{tpu_custom_call.1} parent=75 // pred_check
          %p570 = pneg %p73
        $region78: #{tpu_custom_call.1} parent=75 // pred_check_branch
          %572 = sbr.rel (%p570) target = $region80
        $region79: #{tpu_custom_call.1} parent=75 // pred_region
          %573 = dma.done %s566, 2048
        $region80: #{tpu_custom_call.1} parent=75 // pred_fallthru
          _
        %s574 = sand.u32 %s38, 1
        %s575 = scalar_lea.sflag [#allocation8], %s574
        %s576 = sand.u32 %s86, 1
        %s577 = smul.addr %s576, 192
        %s578 = scalar_lea.vmem [#allocation7], %s577
        // Predicated region
        $region81: #{tpu_custom_call.1} parent=75 // pred_check
          %p579 = pneg %p99
        $region82: #{tpu_custom_call.1} parent=75 // pred_check_branch
          %581 = sbr.rel (%p579) target = $region84
        $region83: #{tpu_custom_call.1} parent=75 // pred_region
          %582 = dma.done %s575, 3072
        $region84: #{tpu_custom_call.1} parent=75 // pred_fallthru
          _
        // Predicated region
        $region85: #{tpu_custom_call.1} parent=75 // pred_check
          %p583 = pneg %p120
        $region86: #{tpu_custom_call.1} parent=75 // pred_check_branch
          %585 = sbr.rel (%p583) target = $region88
        $region87: #{tpu_custom_call.1} parent=75 // pred_region
          %586 = dma.done [#allocation8], 2048
        $region88: #{tpu_custom_call.1} parent=75 // pred_fallthru
          _
        // Predicated region
        $region89: #{tpu_custom_call.1} parent=75 // pred_check
          %p587 = pneg %p141
        $region90: #{tpu_custom_call.1} parent=75 // pred_check_branch
          %589 = sbr.rel (%p587) target = $region92
        $region91: #{tpu_custom_call.1} parent=75 // pred_region
          %590 = dma.done [#allocation11], 2048
        $region92: #{tpu_custom_call.1} parent=75 // pred_fallthru
          _
        // Predicated region
        $region93: #{tpu_custom_call.1} parent=75 // pred_check
          %p591 = pneg %p162
        $region94: #{tpu_custom_call.1} parent=75 // pred_check_branch
          %593 = sbr.rel (%p591) target = $region96
        $region95: #{tpu_custom_call.1} parent=75 // pred_region
          %594 = dma.done [#allocation11], 2048
        $region96: #{tpu_custom_call.1} parent=75 // pred_fallthru
          _
        // Predicated region
        $region97: #{tpu_custom_call.1} parent=75 // pred_check
          %p595 = pneg %p183
        $region98: #{tpu_custom_call.1} parent=75 // pred_check_branch
          %597 = sbr.rel (%p595) target = $region100
        $region99: #{tpu_custom_call.1} parent=75 // pred_region
          %598 = dma.done [#allocation14], 2048
        $region100: #{tpu_custom_call.1} parent=75 // pred_fallthru
          _
        // Predicated region
        $region101: #{tpu_custom_call.1} parent=75 // pred_check
          %p599 = pneg %p204
        $region102: #{tpu_custom_call.1} parent=75 // pred_check_branch
          %601 = sbr.rel (%p599) target = $region104
        $region103: #{tpu_custom_call.1} parent=75 // pred_region
          %602 = dma.done [#allocation14], 4096
        $region104: #{tpu_custom_call.1} parent=75 // pred_fallthru
          _
        // Predicated region
        $region105: #{tpu_custom_call.1} parent=75 // pred_check
          %p603 = pneg %p225
        $region106: #{tpu_custom_call.1} parent=75 // pred_check_branch
          %605 = sbr.rel (%p603) target = $region108
        $region107: #{tpu_custom_call.1} parent=75 // pred_region
          %606 = dma.done [#allocation17], 4096
        $region108: #{tpu_custom_call.1} parent=75 // pred_fallthru
          _
        // Predicated region
        $region109: #{tpu_custom_call.1} parent=75 // pred_check
          %p607 = pneg %p246
        $region110: #{tpu_custom_call.1} parent=75 // pred_check_branch
          %609 = sbr.rel (%p607) target = $region112
        $region111: #{tpu_custom_call.1} parent=75 // pred_region
          %610 = dma.done [#allocation17], 4096
        $region112: #{tpu_custom_call.1} parent=75 // pred_fallthru
          _
        // Predicated region
        $region113: #{tpu_custom_call.1} parent=75 // pred_check
          %p611 = pneg %p267
        $region114: #{tpu_custom_call.1} parent=75 // pred_check_branch
          %613 = sbr.rel (%p611) target = $region116
        $region115: #{tpu_custom_call.1} parent=75 // pred_region
          %614 = dma.done [#allocation20], 2048
        $region116: #{tpu_custom_call.1} parent=75 // pred_fallthru
          _
        %s615 = sand.u32 %s60, 1
        %s616 = scalar_lea.sflag [#allocation5], %s615
        %s617 = sand.u32 %s60, 1
        %s618 = smul.addr %s617, 128
        %s619 = scalar_lea.vmem [#allocation4], %s618
        %p620 = pneg %p73
        %p621 = pneg %p70
        %s622 = sand.u32 %s38, 1
        %s623 = scalar_lea.sflag [#allocation8], %s622
        %s624 = sand.u32 %s86, 1
        %s625 = smul.addr %s624, 192
        %s626 = scalar_lea.vmem [#allocation7], %s625
        %p627 = pneg %p99
        %p628 = pneg %p96
        %p629 = pneg %p120
        %p630 = pneg %p117
        %p631 = pneg %p141
        %p632 = pneg %p138
        %p633 = pneg %p162
        %p634 = pneg %p159
        %p635 = pneg %p183
        %p636 = pneg %p180
        %p637 = pneg %p204
        %p638 = pneg %p201
        %p639 = pneg %p225
        %p640 = pneg %p222
        %p641 = pneg %p246
        %p642 = pneg %p243
        %p643 = pneg %p267
        %p644 = pneg %p264
        %p645 = pneg %p288
        %p646 = pneg %p285
        %p647 = pneg %p309
        %p648 = pneg %p306
        %p649 = pneg %p330
        %p650 = pneg %p327
        %p651 = pneg %p351
        %p652 = pneg %p348
        %p653 = pneg %p379
        %p654 = pneg %p376
        %s655 = sand.u32 %s366, 1
        %s656 = scalar_lea.sflag [#allocation6], %s655
        %s657 = sand.u32 %s366, 1
        %s658 = smul.addr %s657, 128
        %s659 = scalar_lea.vmem [#allocation21], %s658
        %s660 = smul.u32 16, %s43
        %s661 = smul.u32 16, %s43
        %p662 = scmp.eq.s32.totalorder %s43, 0
        // Predicated region
        $region117: #{tpu_custom_call.1} parent=75 // pred_check
          %p663 = pneg %p662
        $region118: #{tpu_custom_call.1} parent=75 // pred_check_branch
          %665 = sbr.rel (%p663) target = $region120
        $region119: #{tpu_custom_call.1} parent=75 // pred_region
          %v666 = vld [vmem:[%s578] sm:$0xff]
          %v667 = vld [vmem:[%s578 + $0x8] sm:$0xff]
          %v668 = vld [vmem:[%s578 + $0x10] sm:$0xff]
          %v669 = vld [vmem:[%s578 + $0x18] sm:$0xff]
          %v670 = vld [vmem:[%s578 + $0x20] sm:$0xff]
          %v671 = vld [vmem:[%s578 + $0x28] sm:$0xff]
          %v672 = vld [vmem:[%s578 + $0x30] sm:$0xff]
          %v673 = vld [vmem:[%s578 + $0x38] sm:$0xff]
          %v674 = vld [vmem:[%s578 + $0x40] sm:$0xff]
          %v675 = vld [vmem:[%s578 + $0x48] sm:$0xff]
          %v676 = vld [vmem:[%s578 + $0x50] sm:$0xff]
          %v677 = vld [vmem:[%s578 + $0x58] sm:$0xff]
          %v678 = vld [vmem:[%s578 + $0x60] sm:$0xff]
          %v679 = vld [vmem:[%s578 + $0x68] sm:$0xff]
          %v680 = vld [vmem:[%s578 + $0x70] sm:$0xff]
          %v681 = vld [vmem:[%s578 + $0x78] sm:$0xff]
          %v682 = vld [vmem:[%s578 + $0x80] sm:$0xff]
          %v683 = vld [vmem:[%s578 + $0x88] sm:$0xff]
          %v684 = vld [vmem:[%s578 + $0x90] sm:$0xff]
          %v685 = vld [vmem:[%s578 + $0x98] sm:$0xff]
          %v686 = vld [vmem:[%s578 + $0xa0] sm:$0xff]
          %v687 = vld [vmem:[%s578 + $0xa8] sm:$0xff]
          %v688 = vld [vmem:[%s578 + $0xb0] sm:$0xff]
          %v689 = vld [vmem:[%s578 + $0xb8] sm:$0xff]
          %v690 = vld [vmem:[#allocation10] sm:$0xff]
          %v691 = vld [vmem:[#allocation10 + $0x8] sm:$0xff]
          %v692 = vld [vmem:[#allocation10 + $0x10] sm:$0xff]
          %v693 = vld [vmem:[#allocation10 + $0x18] sm:$0xff]
          %v694 = vld [vmem:[#allocation10 + $0x20] sm:$0xff]
          %v695 = vld [vmem:[#allocation10 + $0x28] sm:$0xff]
          %v696 = vld [vmem:[#allocation10 + $0x30] sm:$0xff]
          %v697 = vld [vmem:[#allocation10 + $0x38] sm:$0xff]
          %v698 = vld [vmem:[#allocation10 + $0x40] sm:$0xff]
          %v699 = vld [vmem:[#allocation10 + $0x48] sm:$0xff]
          %v700 = vld [vmem:[#allocation10 + $0x50] sm:$0xff]
          %v701 = vld [vmem:[#allocation10 + $0x58] sm:$0xff]
          %v702 = vld [vmem:[#allocation10 + $0x60] sm:$0xff]
          %v703 = vld [vmem:[#allocation10 + $0x68] sm:$0xff]
          %v704 = vld [vmem:[#allocation10 + $0x70] sm:$0xff]
          %v705 = vld [vmem:[#allocation10 + $0x78] sm:$0xff]
          %706 = vmatprep.subr.mxu0 0.0
          %707 = vmatpush1.msra.mxu0 %v705
          %708 = vmatprep.subr.mxu0 0.0
          %709 = vmatpush1.msra.mxu0 %v704
          %710 = vmatprep.subr.mxu0 0.0
          %711 = vmatpush1.msra.mxu0 %v703
          %712 = vmatprep.subr.mxu0 0.0
          %713 = vmatpush1.msra.mxu0 %v702
          %714 = vmatprep.subr.mxu0 0.0
          %715 = vmatpush1.msra.mxu0 %v701
          %716 = vmatprep.subr.mxu0 0.0
          %717 = vmatpush1.msra.mxu0 %v700
          %718 = vmatprep.subr.mxu0 0.0
          %719 = vmatpush1.msra.mxu0 %v699
          %720 = vmatprep.subr.mxu0 0.0
          %721 = vmatpush1.msra.mxu0 %v698
          %722 = vmatprep.subr.mxu0 0.0
          %723 = vmatpush1.msra.mxu0 %v697
          %724 = vmatprep.subr.mxu0 0.0
          %725 = vmatpush1.msra.mxu0 %v696
          %726 = vmatprep.subr.mxu0 0.0
          %727 = vmatpush1.msra.mxu0 %v695
          %728 = vmatprep.subr.mxu0 0.0
          %729 = vmatpush1.msra.mxu0 %v694
          %730 = vmatprep.subr.mxu0 0.0
          %731 = vmatpush1.msra.mxu0 %v693
          %732 = vmatprep.subr.mxu0 0.0
          %733 = vmatpush1.msra.mxu0 %v692
          %734 = vmatprep.subr.mxu0 0.0
          %735 = vmatpush1.msra.mxu0 %v691
          %736 = vmatprep.subr.mxu0 0.0
          %737 = vmatpush1.msra.mxu0 %v690
          %738 = vmatprep.subr.mxu0 0.0
          %739 = vmatpush2.msra.mxu0 0.0
          %740 = vmatprep.subr.mxu0 0.0
          %741 = vmatpush2.msra.mxu0 0.0
          %742 = vmatprep.subr.mxu0 0.0
          %743 = vmatpush2.msra.mxu0 0.0
          %744 = vmatprep.subr.mxu0 0.0
          %745 = vmatpush2.msra.mxu0 0.0
          %746 = vmatprep.subr.mxu0 0.0
          %747 = vmatpush2.msra.mxu0 0.0
          %748 = vmatprep.subr.mxu0 0.0
          %749 = vmatpush2.msra.mxu0 0.0
          %750 = vmatprep.subr.mxu0 0.0
          %751 = vmatpush2.msra.mxu0 0.0
          %752 = vmatprep.subr.mxu0 0.0
          %753 = vmatpush2.msra.mxu0 0.0
          %754 = vmatprep.subr.mxu0 0.0
          %755 = vmatpush2.msra.mxu0 0.0
          %756 = vmatprep.subr.mxu0 0.0
          %757 = vmatpush2.msra.mxu0 0.0
          %758 = vmatprep.subr.mxu0 0.0
          %759 = vmatpush2.msra.mxu0 0.0
          %760 = vmatprep.subr.mxu0 0.0
          %761 = vmatpush2.msra.mxu0 0.0
          %762 = vmatprep.subr.mxu0 0.0
          %763 = vmatpush2.msra.mxu0 0.0
          %764 = vmatprep.subr.mxu0 0.0
          %765 = vmatpush2.msra.mxu0 0.0
          %766 = vmatprep.subr.mxu0 0.0
          %767 = vmatpush2.msra.mxu0 0.0
          %768 = vmatprep.subr.mxu0 0.0
          %769 = vmatpush2.msra.mxu0 0.0
          %770 = vmatprep.mubr.f32.mxu0 0.0
          %771 = vmatmul.mubr.f32.gmra.mxu0 %v666
          %v772 = vpop.f32.mrf.mxu0
          %v773 = vadd.f32 0.0, %v772
          %v774 = vpop.f32.mrf.mxu0
          %775 = vmatprep.mubr.f32.mxu0 0.0
          %776 = vmatmul.mubr.f32.gmra.mxu0 %v667
          %v777 = vpop.f32.mrf.mxu0
          %v778 = vadd.f32 0.0, %v777
          %v779 = vpop.f32.mrf.mxu0
          %780 = vmatprep.mubr.f32.mxu0 0.0
          %781 = vmatmul.mubr.f32.gmra.mxu0 %v668
          %v782 = vpop.f32.mrf.mxu0
          %v783 = vadd.f32 0.0, %v782
          %v784 = vpop.f32.mrf.mxu0
          %785 = vmatprep.mubr.f32.mxu0 0.0
          %786 = vmatmul.mubr.f32.gmra.mxu0 %v669
          %v787 = vpop.f32.mrf.mxu0
          %v788 = vadd.f32 0.0, %v787
          %v789 = vpop.f32.mrf.mxu0
          %790 = vmatprep.mubr.f32.mxu0 0.0
          %791 = vmatmul.mubr.f32.gmra.mxu0 %v670
          %v792 = vpop.f32.mrf.mxu0
          %v793 = vadd.f32 0.0, %v792
          %v794 = vpop.f32.mrf.mxu0
          %795 = vmatprep.mubr.f32.mxu0 0.0
          %796 = vmatmul.mubr.f32.gmra.mxu0 %v671
          %v797 = vpop.f32.mrf.mxu0
          %v798 = vadd.f32 0.0, %v797
          %v799 = vpop.f32.mrf.mxu0
          %800 = vmatprep.mubr.f32.mxu0 0.0
          %801 = vmatmul.mubr.f32.gmra.mxu0 %v672
          %v802 = vpop.f32.mrf.mxu0
          %v803 = vadd.f32 0.0, %v802
          %v804 = vpop.f32.mrf.mxu0
          %805 = vmatprep.mubr.f32.mxu0 0.0
          %806 = vmatmul.mubr.f32.gmra.mxu0 %v673
          %v807 = vpop.f32.mrf.mxu0
          %v808 = vadd.f32 0.0, %v807
          %v809 = vpop.f32.mrf.mxu0
          %810 = vmatprep.mubr.f32.mxu0 0.0
          %811 = vmatmul.mubr.f32.gmra.mxu0 %v674
          %v812 = vpop.f32.mrf.mxu0
          %v813 = vadd.f32 0.0, %v812
          %v814 = vpop.f32.mrf.mxu0
          %815 = vmatprep.mubr.f32.mxu0 0.0
          %816 = vmatmul.mubr.f32.gmra.mxu0 %v675
          %v817 = vpop.f32.mrf.mxu0
          %v818 = vadd.f32 0.0, %v817
          %v819 = vpop.f32.mrf.mxu0
          %820 = vmatprep.mubr.f32.mxu0 0.0
          %821 = vmatmul.mubr.f32.gmra.mxu0 %v676
          %v822 = vpop.f32.mrf.mxu0
          %v823 = vadd.f32 0.0, %v822
          %v824 = vpop.f32.mrf.mxu0
          %825 = vmatprep.mubr.f32.mxu0 0.0
          %826 = vmatmul.mubr.f32.gmra.mxu0 %v677
          %v827 = vpop.f32.mrf.mxu0
          %v828 = vadd.f32 0.0, %v827
          %v829 = vpop.f32.mrf.mxu0
          %830 = vmatprep.mubr.f32.mxu0 0.0
          %831 = vmatmul.mubr.f32.gmra.mxu0 %v678
          %v832 = vpop.f32.mrf.mxu0
          %v833 = vadd.f32 0.0, %v832
          %v834 = vpop.f32.mrf.mxu0
          %835 = vmatprep.mubr.f32.mxu0 0.0
          %836 = vmatmul.mubr.f32.gmra.mxu0 %v679
          %v837 = vpop.f32.mrf.mxu0
          %v838 = vadd.f32 0.0, %v837
          %v839 = vpop.f32.mrf.mxu0
          %840 = vmatprep.mubr.f32.mxu0 0.0
          %841 = vmatmul.mubr.f32.gmra.mxu0 %v680
          %v842 = vpop.f32.mrf.mxu0
          %v843 = vadd.f32 0.0, %v842
          %v844 = vpop.f32.mrf.mxu0
          %845 = vmatprep.mubr.f32.mxu0 0.0
          %846 = vmatmul.mubr.f32.gmra.mxu0 %v681
          %v847 = vpop.f32.mrf.mxu0
          %v848 = vadd.f32 0.0, %v847
          %v849 = vpop.f32.mrf.mxu0
          %850 = vmatprep.mubr.f32.mxu0 0.0
          %851 = vmatmul.mubr.f32.gmra.mxu0 %v682
          %v852 = vpop.f32.mrf.mxu0
          %v853 = vadd.f32 0.0, %v852
          %v854 = vpop.f32.mrf.mxu0
          %855 = vmatprep.mubr.f32.mxu0 0.0
          %856 = vmatmul.mubr.f32.gmra.mxu0 %v683
          %v857 = vpop.f32.mrf.mxu0
          %v858 = vadd.f32 0.0, %v857
          %v859 = vpop.f32.mrf.mxu0
          %860 = vmatprep.mubr.f32.mxu0 0.0
          %861 = vmatmul.mubr.f32.gmra.mxu0 %v684
          %v862 = vpop.f32.mrf.mxu0
          %v863 = vadd.f32 0.0, %v862
          %v864 = vpop.f32.mrf.mxu0
          %865 = vmatprep.mubr.f32.mxu0 0.0
          %866 = vmatmul.mubr.f32.gmra.mxu0 %v685
          %v867 = vpop.f32.mrf.mxu0
          %v868 = vadd.f32 0.0, %v867
          %v869 = vpop.f32.mrf.mxu0
          %870 = vmatprep.mubr.f32.mxu0 0.0
          %871 = vmatmul.mubr.f32.gmra.mxu0 %v686
          %v872 = vpop.f32.mrf.mxu0
          %v873 = vadd.f32 0.0, %v872
          %v874 = vpop.f32.mrf.mxu0
          %875 = vmatprep.mubr.f32.mxu0 0.0
          %876 = vmatmul.mubr.f32.gmra.mxu0 %v687
          %v877 = vpop.f32.mrf.mxu0
          %v878 = vadd.f32 0.0, %v877
          %v879 = vpop.f32.mrf.mxu0
          %880 = vmatprep.mubr.f32.mxu0 0.0
          %881 = vmatmul.mubr.f32.gmra.mxu0 %v688
          %v882 = vpop.f32.mrf.mxu0
          %v883 = vadd.f32 0.0, %v882
          %v884 = vpop.f32.mrf.mxu0
          %885 = vmatprep.mubr.f32.mxu0 0.0
          %886 = vmatmul.mubr.f32.gmra.mxu0 %v689
          %v887 = vpop.f32.mrf.mxu0
          %v888 = vadd.f32 0.0, %v887
          %v889 = vpop.f32.mrf.mxu0
          %890 = vdwg.mxu0
          %v891 = vld [vmem:[#allocation12] sm:$0xff]
          %v892 = vld [vmem:[#allocation12 + $0x8] sm:$0xff]
          %v893 = vld [vmem:[#allocation12 + $0x10] sm:$0xff]
          %v894 = vld [vmem:[#allocation12 + $0x18] sm:$0xff]
          %v895 = vld [vmem:[#allocation12 + $0x20] sm:$0xff]
          %v896 = vld [vmem:[#allocation12 + $0x28] sm:$0xff]
          %v897 = vld [vmem:[#allocation12 + $0x30] sm:$0xff]
          %v898 = vld [vmem:[#allocation12 + $0x38] sm:$0xff]
          %v899 = vld [vmem:[#allocation12 + $0x40] sm:$0xff]
          %v900 = vld [vmem:[#allocation12 + $0x48] sm:$0xff]
          %v901 = vld [vmem:[#allocation12 + $0x50] sm:$0xff]
          %v902 = vld [vmem:[#allocation12 + $0x58] sm:$0xff]
          %v903 = vld [vmem:[#allocation12 + $0x60] sm:$0xff]
          %v904 = vld [vmem:[#allocation12 + $0x68] sm:$0xff]
          %v905 = vld [vmem:[#allocation12 + $0x70] sm:$0xff]
          %v906 = vld [vmem:[#allocation12 + $0x78] sm:$0xff]
          %907 = vmatprep.subr.mxu0 0.0
          %908 = vmatpush1.msra.mxu0 %v906
          %909 = vmatprep.subr.mxu0 0.0
          %910 = vmatpush1.msra.mxu0 %v905
          %911 = vmatprep.subr.mxu0 0.0
          %912 = vmatpush1.msra.mxu0 %v904
          %913 = vmatprep.subr.mxu0 0.0
          %914 = vmatpush1.msra.mxu0 %v903
          %915 = vmatprep.subr.mxu0 0.0
          %916 = vmatpush1.msra.mxu0 %v902
          %917 = vmatprep.subr.mxu0 0.0
          %918 = vmatpush1.msra.mxu0 %v901
          %919 = vmatprep.subr.mxu0 0.0
          %920 = vmatpush1.msra.mxu0 %v900
          %921 = vmatprep.subr.mxu0 0.0
          %922 = vmatpush1.msra.mxu0 %v899
          %923 = vmatprep.subr.mxu0 0.0
          %924 = vmatpush1.msra.mxu0 %v898
          %925 = vmatprep.subr.mxu0 0.0
          %926 = vmatpush1.msra.mxu0 %v897
          %927 = vmatprep.subr.mxu0 0.0
          %928 = vmatpush1.msra.mxu0 %v896
          %929 = vmatprep.subr.mxu0 0.0
          %930 = vmatpush1.msra.mxu0 %v895
          %931 = vmatprep.subr.mxu0 0.0
          %932 = vmatpush1.msra.mxu0 %v894
          %933 = vmatprep.subr.mxu0 0.0
          %934 = vmatpush1.msra.mxu0 %v893
          %935 = vmatprep.subr.mxu0 0.0
          %936 = vmatpush1.msra.mxu0 %v892
          %937 = vmatprep.subr.mxu0 0.0
          %938 = vmatpush1.msra.mxu0 %v891
          %939 = vmatprep.subr.mxu0 0.0
          %940 = vmatpush2.msra.mxu0 0.0
          %941 = vmatprep.subr.mxu0 0.0
          %942 = vmatpush2.msra.mxu0 0.0
          %943 = vmatprep.subr.mxu0 0.0
          %944 = vmatpush2.msra.mxu0 0.0
          %945 = vmatprep.subr.mxu0 0.0
          %946 = vmatpush2.msra.mxu0 0.0
          %947 = vmatprep.subr.mxu0 0.0
          %948 = vmatpush2.msra.mxu0 0.0
          %949 = vmatprep.subr.mxu0 0.0
          %950 = vmatpush2.msra.mxu0 0.0
          %951 = vmatprep.subr.mxu0 0.0
          %952 = vmatpush2.msra.mxu0 0.0
          %953 = vmatprep.subr.mxu0 0.0
          %954 = vmatpush2.msra.mxu0 0.0
          %955 = vmatprep.subr.mxu0 0.0
          %956 = vmatpush2.msra.mxu0 0.0
          %957 = vmatprep.subr.mxu0 0.0
          %958 = vmatpush2.msra.mxu0 0.0
          %959 = vmatprep.subr.mxu0 0.0
          %960 = vmatpush2.msra.mxu0 0.0
          %961 = vmatprep.subr.mxu0 0.0
          %962 = vmatpush2.msra.mxu0 0.0
          %963 = vmatprep.subr.mxu0 0.0
          %964 = vmatpush2.msra.mxu0 0.0
          %965 = vmatprep.subr.mxu0 0.0
          %966 = vmatpush2.msra.mxu0 0.0
          %967 = vmatprep.subr.mxu0 0.0
          %968 = vmatpush2.msra.mxu0 0.0
          %969 = vmatprep.subr.mxu0 0.0
          %970 = vmatpush2.msra.mxu0 0.0
          %971 = vmatprep.mubr.f32.mxu0 0.0
          %972 = vmatmul.mubr.f32.gmra.mxu0 %v666
          %v973 = vpop.f32.mrf.mxu0
          %v974 = vadd.f32 0.0, %v973
          %v975 = vpop.f32.mrf.mxu0
          %976 = vmatprep.mubr.f32.mxu0 0.0
          %977 = vmatmul.mubr.f32.gmra.mxu0 %v667
          %v978 = vpop.f32.mrf.mxu0
          %v979 = vadd.f32 0.0, %v978
          %v980 = vpop.f32.mrf.mxu0
          %981 = vmatprep.mubr.f32.mxu0 0.0
          %982 = vmatmul.mubr.f32.gmra.mxu0 %v668
          %v983 = vpop.f32.mrf.mxu0
          %v984 = vadd.f32 0.0, %v983
          %v985 = vpop.f32.mrf.mxu0
          %986 = vmatprep.mubr.f32.mxu0 0.0
          %987 = vmatmul.mubr.f32.gmra.mxu0 %v669
          %v988 = vpop.f32.mrf.mxu0
          %v989 = vadd.f32 0.0, %v988
          %v990 = vpop.f32.mrf.mxu0
          %991 = vmatprep.mubr.f32.mxu0 0.0
          %992 = vmatmul.mubr.f32.gmra.mxu0 %v670
          %v993 = vpop.f32.mrf.mxu0
          %v994 = vadd.f32 0.0, %v993
          %v995 = vpop.f32.mrf.mxu0
          %996 = vmatprep.mubr.f32.mxu0 0.0
          %997 = vmatmul.mubr.f32.gmra.mxu0 %v671
          %v998 = vpop.f32.mrf.mxu0
          %v999 = vadd.f32 0.0, %v998
          %v1000 = vpop.f32.mrf.mxu0
          %1001 = vmatprep.mubr.f32.mxu0 0.0
          %1002 = vmatmul.mubr.f32.gmra.mxu0 %v672
          %v1003 = vpop.f32.mrf.mxu0
          %v1004 = vadd.f32 0.0, %v1003
          %v1005 = vpop.f32.mrf.mxu0
          %1006 = vmatprep.mubr.f32.mxu0 0.0
          %1007 = vmatmul.mubr.f32.gmra.mxu0 %v673
          %v1008 = vpop.f32.mrf.mxu0
          %v1009 = vadd.f32 0.0, %v1008
          %v1010 = vpop.f32.mrf.mxu0
          %1011 = vmatprep.mubr.f32.mxu0 0.0
          %1012 = vmatmul.mubr.f32.gmra.mxu0 %v674
          %v1013 = vpop.f32.mrf.mxu0
          %v1014 = vadd.f32 0.0, %v1013
          %v1015 = vpop.f32.mrf.mxu0
          %1016 = vmatprep.mubr.f32.mxu0 0.0
          %1017 = vmatmul.mubr.f32.gmra.mxu0 %v675
          %v1018 = vpop.f32.mrf.mxu0
          %v1019 = vadd.f32 0.0, %v1018
          %v1020 = vpop.f32.mrf.mxu0
          %1021 = vmatprep.mubr.f32.mxu0 0.0
          %1022 = vmatmul.mubr.f32.gmra.mxu0 %v676
          %v1023 = vpop.f32.mrf.mxu0
          %v1024 = vadd.f32 0.0, %v1023
          %v1025 = vpop.f32.mrf.mxu0
          %1026 = vmatprep.mubr.f32.mxu0 0.0
          %1027 = vmatmul.mubr.f32.gmra.mxu0 %v677
          %v1028 = vpop.f32.mrf.mxu0
          %v1029 = vadd.f32 0.0, %v1028
          %v1030 = vpop.f32.mrf.mxu0
          %1031 = vmatprep.mubr.f32.mxu0 0.0
          %1032 = vmatmul.mubr.f32.gmra.mxu0 %v678
          %v1033 = vpop.f32.mrf.mxu0
          %v1034 = vadd.f32 0.0, %v1033
          %v1035 = vpop.f32.mrf.mxu0
          %1036 = vmatprep.mubr.f32.mxu0 0.0
          %1037 = vmatmul.mubr.f32.gmra.mxu0 %v679
          %v1038 = vpop.f32.mrf.mxu0
          %v1039 = vadd.f32 0.0, %v1038
          %v1040 = vpop.f32.mrf.mxu0
          %1041 = vmatprep.mubr.f32.mxu0 0.0
          %1042 = vmatmul.mubr.f32.gmra.mxu0 %v680
          %v1043 = vpop.f32.mrf.mxu0
          %v1044 = vadd.f32 0.0, %v1043
          %v1045 = vpop.f32.mrf.mxu0
          %1046 = vmatprep.mubr.f32.mxu0 0.0
          %1047 = vmatmul.mubr.f32.gmra.mxu0 %v681
          %v1048 = vpop.f32.mrf.mxu0
          %v1049 = vadd.f32 0.0, %v1048
          %v1050 = vpop.f32.mrf.mxu0
          %1051 = vmatprep.mubr.f32.mxu0 0.0
          %1052 = vmatmul.mubr.f32.gmra.mxu0 %v682
          %v1053 = vpop.f32.mrf.mxu0
          %v1054 = vadd.f32 0.0, %v1053
          %v1055 = vpop.f32.mrf.mxu0
          %1056 = vmatprep.mubr.f32.mxu0 0.0
          %1057 = vmatmul.mubr.f32.gmra.mxu0 %v683
          %v1058 = vpop.f32.mrf.mxu0
          %v1059 = vadd.f32 0.0, %v1058
          %v1060 = vpop.f32.mrf.mxu0
          %1061 = vmatprep.mubr.f32.mxu0 0.0
          %1062 = vmatmul.mubr.f32.gmra.mxu0 %v684
          %v1063 = vpop.f32.mrf.mxu0
          %v1064 = vadd.f32 0.0, %v1063
          %v1065 = vpop.f32.mrf.mxu0
          %1066 = vmatprep.mubr.f32.mxu0 0.0
          %1067 = vmatmul.mubr.f32.gmra.mxu0 %v685
          %v1068 = vpop.f32.mrf.mxu0
          %v1069 = vadd.f32 0.0, %v1068
          %v1070 = vpop.f32.mrf.mxu0
          %1071 = vmatprep.mubr.f32.mxu0 0.0
          %1072 = vmatmul.mubr.f32.gmra.mxu0 %v686
          %v1073 = vpop.f32.mrf.mxu0
          %v1074 = vadd.f32 0.0, %v1073
          %v1075 = vpop.f32.mrf.mxu0
          %1076 = vmatprep.mubr.f32.mxu0 0.0
          %1077 = vmatmul.mubr.f32.gmra.mxu0 %v687
          %v1078 = vpop.f32.mrf.mxu0
          %v1079 = vadd.f32 0.0, %v1078
          %v1080 = vpop.f32.mrf.mxu0
          %1081 = vmatprep.mubr.f32.mxu0 0.0
          %1082 = vmatmul.mubr.f32.gmra.mxu0 %v688
          %v1083 = vpop.f32.mrf.mxu0
          %v1084 = vadd.f32 0.0, %v1083
          %v1085 = vpop.f32.mrf.mxu0
          %1086 = vmatprep.mubr.f32.mxu0 0.0
          %1087 = vmatmul.mubr.f32.gmra.mxu0 %v689
          %v1088 = vpop.f32.mrf.mxu0
          %v1089 = vadd.f32 0.0, %v1088
          %v1090 = vpop.f32.mrf.mxu0
          %1091 = vdwg.mxu0
          %vm1092 = vcmp.gt.f32.partialorder %v773, 0.0
          %vm1093 = vcmp.gt.f32.partialorder %v778, 0.0
          %vm1094 = vcmp.gt.f32.partialorder %v783, 0.0
          %vm1095 = vcmp.gt.f32.partialorder %v788, 0.0
          %vm1096 = vcmp.gt.f32.partialorder %v793, 0.0
          %vm1097 = vcmp.gt.f32.partialorder %v798, 0.0
          %vm1098 = vcmp.gt.f32.partialorder %v803, 0.0
          %vm1099 = vcmp.gt.f32.partialorder %v808, 0.0
          %vm1100 = vcmp.gt.f32.partialorder %v813, 0.0
          %vm1101 = vcmp.gt.f32.partialorder %v818, 0.0
          %vm1102 = vcmp.gt.f32.partialorder %v823, 0.0
          %vm1103 = vcmp.gt.f32.partialorder %v828, 0.0
          %vm1104 = vcmp.gt.f32.partialorder %v833, 0.0
          %vm1105 = vcmp.gt.f32.partialorder %v838, 0.0
          %vm1106 = vcmp.gt.f32.partialorder %v843, 0.0
          %vm1107 = vcmp.gt.f32.partialorder %v848, 0.0
          %vm1108 = vcmp.gt.f32.partialorder %v853, 0.0
          %vm1109 = vcmp.gt.f32.partialorder %v858, 0.0
          %vm1110 = vcmp.gt.f32.partialorder %v863, 0.0
          %vm1111 = vcmp.gt.f32.partialorder %v868, 0.0
          %vm1112 = vcmp.gt.f32.partialorder %v873, 0.0
          %vm1113 = vcmp.gt.f32.partialorder %v878, 0.0
          %vm1114 = vcmp.gt.f32.partialorder %v883, 0.0
          %vm1115 = vcmp.gt.f32.partialorder %v888, 0.0
          %v1116 = vadd.f32 %v773, 1.0
          %v1117 = vadd.f32 %v778, 1.0
          %v1118 = vadd.f32 %v783, 1.0
          %v1119 = vadd.f32 %v788, 1.0
          %v1120 = vadd.f32 %v793, 1.0
          %v1121 = vadd.f32 %v798, 1.0
          %v1122 = vadd.f32 %v803, 1.0
          %v1123 = vadd.f32 %v808, 1.0
          %v1124 = vadd.f32 %v813, 1.0
          %v1125 = vadd.f32 %v818, 1.0
          %v1126 = vadd.f32 %v823, 1.0
          %v1127 = vadd.f32 %v828, 1.0
          %v1128 = vadd.f32 %v833, 1.0
          %v1129 = vadd.f32 %v838, 1.0
          %v1130 = vadd.f32 %v843, 1.0
          %v1131 = vadd.f32 %v848, 1.0
          %v1132 = vadd.f32 %v853, 1.0
          %v1133 = vadd.f32 %v858, 1.0
          %v1134 = vadd.f32 %v863, 1.0
          %v1135 = vadd.f32 %v868, 1.0
          %v1136 = vadd.f32 %v873, 1.0
          %v1137 = vadd.f32 %v878, 1.0
          %v1138 = vadd.f32 %v883, 1.0
          %v1139 = vadd.f32 %v888, 1.0
          %v1140 = vmul.f32 %v773, 1.442695
          %v1141 = vpow.pop %v1140
          %v1142 = vmul.f32 %v778, 1.442695
          %v1143 = vpow.pop %v1142
          %v1144 = vmul.f32 %v783, 1.442695
          %v1145 = vpow.pop %v1144
          %v1146 = vmul.f32 %v788, 1.442695
          %v1147 = vpow.pop %v1146
          %v1148 = vmul.f32 %v793, 1.442695
          %v1149 = vpow.pop %v1148
          %v1150 = vmul.f32 %v798, 1.442695
          %v1151 = vpow.pop %v1150
          %v1152 = vmul.f32 %v803, 1.442695
          %v1153 = vpow.pop %v1152
          %v1154 = vmul.f32 %v808, 1.442695
          %v1155 = vpow.pop %v1154
          %v1156 = vmul.f32 %v813, 1.442695
          %v1157 = vpow.pop %v1156
          %v1158 = vmul.f32 %v818, 1.442695
          %v1159 = vpow.pop %v1158
          %v1160 = vmul.f32 %v823, 1.442695
          %v1161 = vpow.pop %v1160
          %v1162 = vmul.f32 %v828, 1.442695
          %v1163 = vpow.pop %v1162
          %v1164 = vmul.f32 %v833, 1.442695
          %v1165 = vpow.pop %v1164
          %v1166 = vmul.f32 %v838, 1.442695
          %v1167 = vpow.pop %v1166
          %v1168 = vmul.f32 %v843, 1.442695
          %v1169 = vpow.pop %v1168
          %v1170 = vmul.f32 %v848, 1.442695
          %v1171 = vpow.pop %v1170
          %v1172 = vmul.f32 %v853, 1.442695
          %v1173 = vpow.pop %v1172
          %v1174 = vmul.f32 %v858, 1.442695
          %v1175 = vpow.pop %v1174
          %v1176 = vmul.f32 %v863, 1.442695
          %v1177 = vpow.pop %v1176
          %v1178 = vmul.f32 %v868, 1.442695
          %v1179 = vpow.pop %v1178
          %v1180 = vmul.f32 %v873, 1.442695
          %v1181 = vpow.pop %v1180
          %v1182 = vmul.f32 %v878, 1.442695
          %v1183 = vpow.pop %v1182
          %v1184 = vmul.f32 %v883, 1.442695
          %v1185 = vpow.pop %v1184
          %v1186 = vmul.f32 %v888, 1.442695
          %v1187 = vpow.pop %v1186
          %v1188 = vsel %vm1092, %v1116, %v1141
          %v1189 = vsel %vm1093, %v1117, %v1143
          %v1190 = vsel %vm1094, %v1118, %v1145
          %v1191 = vsel %vm1095, %v1119, %v1147
          %v1192 = vsel %vm1096, %v1120, %v1149
          %v1193 = vsel %vm1097, %v1121, %v1151
          %v1194 = vsel %vm1098, %v1122, %v1153
          %v1195 = vsel %vm1099, %v1123, %v1155
          %v1196 = vsel %vm1100, %v1124, %v1157
          %v1197 = vsel %vm1101, %v1125, %v1159
          %v1198 = vsel %vm1102, %v1126, %v1161
          %v1199 = vsel %vm1103, %v1127, %v1163
          %v1200 = vsel %vm1104, %v1128, %v1165
          %v1201 = vsel %vm1105, %v1129, %v1167
          %v1202 = vsel %vm1106, %v1130, %v1169
          %v1203 = vsel %vm1107, %v1131, %v1171
          %v1204 = vsel %vm1108, %v1132, %v1173
          %v1205 = vsel %vm1109, %v1133, %v1175
          %v1206 = vsel %vm1110, %v1134, %v1177
          %v1207 = vsel %vm1111, %v1135, %v1179
          %v1208 = vsel %vm1112, %v1136, %v1181
          %v1209 = vsel %vm1113, %v1137, %v1183
          %v1210 = vsel %vm1114, %v1138, %v1185
          %v1211 = vsel %vm1115, %v1139, %v1187
          %v1212 = vrcp.pop 192.0
          %v1213 = vmul.f32 %v974, %v1212
          %v1214 = vmul.f32 %v979, %v1212
          %v1215 = vmul.f32 %v984, %v1212
          %v1216 = vmul.f32 %v989, %v1212
          %v1217 = vmul.f32 %v994, %v1212
          %v1218 = vmul.f32 %v999, %v1212
          %v1219 = vmul.f32 %v1004, %v1212
          %v1220 = vmul.f32 %v1009, %v1212
          %v1221 = vmul.f32 %v1014, %v1212
          %v1222 = vmul.f32 %v1019, %v1212
          %v1223 = vmul.f32 %v1024, %v1212
          %v1224 = vmul.f32 %v1029, %v1212
          %v1225 = vmul.f32 %v1034, %v1212
          %v1226 = vmul.f32 %v1039, %v1212
          %v1227 = vmul.f32 %v1044, %v1212
          %v1228 = vmul.f32 %v1049, %v1212
          %v1229 = vmul.f32 %v1054, %v1212
          %v1230 = vmul.f32 %v1059, %v1212
          %v1231 = vmul.f32 %v1064, %v1212
          %v1232 = vmul.f32 %v1069, %v1212
          %v1233 = vmul.f32 %v1074, %v1212
          %v1234 = vmul.f32 %v1079, %v1212
          %v1235 = vmul.f32 %v1084, %v1212
          %v1236 = vmul.f32 %v1089, %v1212
          %1237 = vxpose.xlu0.b32.start [1/16] %v1188, 128
          %1238 = vxpose.xlu0.b32.cont [2/16] %v1189, 128
          %1239 = vxpose.xlu0.b32.cont [3/16] %v1190, 128
          %1240 = vxpose.xlu0.b32.cont [4/16] %v1191, 128
          %1241 = vxpose.xlu0.b32.cont [5/16] %v1192, 128
          %1242 = vxpose.xlu0.b32.cont [6/16] %v1193, 128
          %1243 = vxpose.xlu0.b32.cont [7/16] %v1194, 128
          %1244 = vxpose.xlu0.b32.cont [8/16] %v1195, 128
          %1245 = vxpose.xlu0.b32.cont [9/16] %v1196, 128
          %1246 = vxpose.xlu0.b32.cont [10/16] %v1197, 128
          %1247 = vxpose.xlu0.b32.cont [11/16] %v1198, 128
          %1248 = vxpose.xlu0.b32.cont [12/16] %v1199, 128
          %1249 = vxpose.xlu0.b32.cont [13/16] %v1200, 128
          %1250 = vxpose.xlu0.b32.cont [14/16] %v1201, 128
          %1251 = vxpose.xlu0.b32.cont [15/16] %v1202, 128
          %1252 = vxpose.xlu0.b32.end [16/16] %v1203, 128
          %v1253 = vpop.trf.xlu0
          %v1254 = vpop.trf.xlu0
          %v1255 = vpop.trf.xlu0
          %v1256 = vpop.trf.xlu0
          %v1257 = vpop.trf.xlu0
          %v1258 = vpop.trf.xlu0
          %v1259 = vpop.trf.xlu0
          %v1260 = vpop.trf.xlu0
          %v1261 = vpop.trf.xlu0
          %v1262 = vpop.trf.xlu0
          %v1263 = vpop.trf.xlu0
          %v1264 = vpop.trf.xlu0
          %v1265 = vpop.trf.xlu0
          %v1266 = vpop.trf.xlu0
          %v1267 = vpop.trf.xlu0
          %v1268 = vpop.trf.xlu0
          %1269 = vxpose.xlu0.b32.start [1/16] %v1204, 128
          %1270 = vxpose.xlu0.b32.cont [2/16] %v1205, 128
          %1271 = vxpose.xlu0.b32.cont [3/16] %v1206, 128
          %1272 = vxpose.xlu0.b32.cont [4/16] %v1207, 128
          %1273 = vxpose.xlu0.b32.cont [5/16] %v1208, 128
          %1274 = vxpose.xlu0.b32.cont [6/16] %v1209, 128
          %1275 = vxpose.xlu0.b32.cont [7/16] %v1210, 128
          %1276 = vxpose.xlu0.b32.cont [8/16] %v1211, 128
          %1277 = vxpose.xlu0.b32.cont [9/16] 0.0, 128
          %1278 = vxpose.xlu0.b32.cont [10/16] 0.0, 128
          %1279 = vxpose.xlu0.b32.cont [11/16] 0.0, 128
          %1280 = vxpose.xlu0.b32.cont [12/16] 0.0, 128
          %1281 = vxpose.xlu0.b32.cont [13/16] 0.0, 128
          %1282 = vxpose.xlu0.b32.cont [14/16] 0.0, 128
          %1283 = vxpose.xlu0.b32.cont [15/16] 0.0, 128
          %1284 = vxpose.xlu0.b32.end [16/16] 0.0, 128
          %v1285 = vpop.trf.xlu0
          %v1286 = vpop.trf.xlu0
          %v1287 = vpop.trf.xlu0
          %v1288 = vpop.trf.xlu0
          %v1289 = vpop.trf.xlu0
          %v1290 = vpop.trf.xlu0
          %v1291 = vpop.trf.xlu0
          %v1292 = vpop.trf.xlu0
          %v1293 = vpop.trf.xlu0
          %v1294 = vpop.trf.xlu0
          %v1295 = vpop.trf.xlu0
          %v1296 = vpop.trf.xlu0
          %v1297 = vpop.trf.xlu0
          %v1298 = vpop.trf.xlu0
          %v1299 = vpop.trf.xlu0
          %v1300 = vpop.trf.xlu0
          %vm1301 = vcmask 523264
          %v1303 = vsel %vm1301, %v1285, 0
          %v1306 = vsel %vm1301, %v1286, 0
          %v1309 = vsel %vm1301, %v1287, 0
          %v1312 = vsel %vm1301, %v1288, 0
          %v1315 = vsel %vm1301, %v1289, 0
          %v1318 = vsel %vm1301, %v1290, 0
          %v1321 = vsel %vm1301, %v1291, 0
          %v1324 = vsel %vm1301, %v1292, 0
          %v1327 = vsel %vm1301, %v1293, 0
          %v1330 = vsel %vm1301, %v1294, 0
          %v1333 = vsel %vm1301, %v1295, 0
          %v1336 = vsel %vm1301, %v1296, 0
          %v1339 = vsel %vm1301, %v1297, 0
          %v1342 = vsel %vm1301, %v1298, 0
          %v1345 = vsel %vm1301, %v1299, 0
          %v1348 = vsel %vm1301, %v1300, 0
          %1350 = vmatprep.subr.mxu0 0.0
          %1351 = vmatpush1.msra.mxu0 %v1228
          %1352 = vmatprep.subr.mxu0 0.0
          %1353 = vmatpush1.msra.mxu0 %v1227
          %1354 = vmatprep.subr.mxu0 0.0
          %1355 = vmatpush1.msra.mxu0 %v1226
          %1356 = vmatprep.subr.mxu0 0.0
          %1357 = vmatpush1.msra.mxu0 %v1225
          %1358 = vmatprep.subr.mxu0 0.0
          %1359 = vmatpush1.msra.mxu0 %v1224
          %1360 = vmatprep.subr.mxu0 0.0
          %1361 = vmatpush1.msra.mxu0 %v1223
          %1362 = vmatprep.subr.mxu0 0.0
          %1363 = vmatpush1.msra.mxu0 %v1222
          %1364 = vmatprep.subr.mxu0 0.0
          %1365 = vmatpush1.msra.mxu0 %v1221
          %1366 = vmatprep.subr.mxu0 0.0
          %1367 = vmatpush1.msra.mxu0 %v1220
          %1368 = vmatprep.subr.mxu0 0.0
          %1369 = vmatpush1.msra.mxu0 %v1219
          %1370 = vmatprep.subr.mxu0 0.0
          %1371 = vmatpush1.msra.mxu0 %v1218
          %1372 = vmatprep.subr.mxu0 0.0
          %1373 = vmatpush1.msra.mxu0 %v1217
          %1374 = vmatprep.subr.mxu0 0.0
          %1375 = vmatpush1.msra.mxu0 %v1216
          %1376 = vmatprep.subr.mxu0 0.0
          %1377 = vmatpush1.msra.mxu0 %v1215
          %1378 = vmatprep.subr.mxu0 0.0
          %1379 = vmatpush1.msra.mxu0 %v1214
          %1380 = vmatprep.subr.mxu0 0.0
          %1381 = vmatpush1.msra.mxu0 %v1213
          %1382 = vmatprep.subr.mxu0 0.0
          %1383 = vmatpush2.msra.mxu0 0.0
          %1384 = vmatprep.subr.mxu0 0.0
          %1385 = vmatpush2.msra.mxu0 0.0
          %1386 = vmatprep.subr.mxu0 0.0
          %1387 = vmatpush2.msra.mxu0 0.0
          %1388 = vmatprep.subr.mxu0 0.0
          %1389 = vmatpush2.msra.mxu0 0.0
          %1390 = vmatprep.subr.mxu0 0.0
          %1391 = vmatpush2.msra.mxu0 0.0
          %1392 = vmatprep.subr.mxu0 0.0
          %1393 = vmatpush2.msra.mxu0 0.0
          %1394 = vmatprep.subr.mxu0 0.0
          %1395 = vmatpush2.msra.mxu0 0.0
          %1396 = vmatprep.subr.mxu0 0.0
          %1397 = vmatpush2.msra.mxu0 0.0
          %1398 = vmatprep.subr.mxu0 0.0
          %1399 = vmatpush2.msra.mxu0 %v1236
          %1400 = vmatprep.subr.mxu0 0.0
          %1401 = vmatpush2.msra.mxu0 %v1235
          %1402 = vmatprep.subr.mxu0 0.0
          %1403 = vmatpush2.msra.mxu0 %v1234
          %1404 = vmatprep.subr.mxu0 0.0
          %1405 = vmatpush2.msra.mxu0 %v1233
          %1406 = vmatprep.subr.mxu0 0.0
          %1407 = vmatpush2.msra.mxu0 %v1232
          %1408 = vmatprep.subr.mxu0 0.0
          %1409 = vmatpush2.msra.mxu0 %v1231
          %1410 = vmatprep.subr.mxu0 0.0
          %1411 = vmatpush2.msra.mxu0 %v1230
          %1412 = vmatprep.subr.mxu0 0.0
          %1413 = vmatpush2.msra.mxu0 %v1229
          %1414 = vmatprep.mubr.f32.mxu0 %v1303
          %1415 = vmatmul.mubr.f32.gmra.mxu0 %v1253
          %v1416 = vpop.f32.mrf.mxu0
          %v1417 = vadd.f32 0.0, %v1416
          %v1418 = vpop.f32.mrf.mxu0
          %1419 = vmatprep.mubr.f32.mxu0 %v1306
          %1420 = vmatmul.mubr.f32.gmra.mxu0 %v1254
          %v1421 = vpop.f32.mrf.mxu0
          %v1422 = vadd.f32 0.0, %v1421
          %v1423 = vpop.f32.mrf.mxu0
          %1424 = vmatprep.mubr.f32.mxu0 %v1309
          %1425 = vmatmul.mubr.f32.gmra.mxu0 %v1255
          %v1426 = vpop.f32.mrf.mxu0
          %v1427 = vadd.f32 0.0, %v1426
          %v1428 = vpop.f32.mrf.mxu0
          %1429 = vmatprep.mubr.f32.mxu0 %v1312
          %1430 = vmatmul.mubr.f32.gmra.mxu0 %v1256
          %v1431 = vpop.f32.mrf.mxu0
          %v1432 = vadd.f32 0.0, %v1431
          %v1433 = vpop.f32.mrf.mxu0
          %1434 = vmatprep.mubr.f32.mxu0 %v1315
          %1435 = vmatmul.mubr.f32.gmra.mxu0 %v1257
          %v1436 = vpop.f32.mrf.mxu0
          %v1437 = vadd.f32 0.0, %v1436
          %v1438 = vpop.f32.mrf.mxu0
          %1439 = vmatprep.mubr.f32.mxu0 %v1318
          %1440 = vmatmul.mubr.f32.gmra.mxu0 %v1258
          %v1441 = vpop.f32.mrf.mxu0
          %v1442 = vadd.f32 0.0, %v1441
          %v1443 = vpop.f32.mrf.mxu0
          %1444 = vmatprep.mubr.f32.mxu0 %v1321
          %1445 = vmatmul.mubr.f32.gmra.mxu0 %v1259
          %v1446 = vpop.f32.mrf.mxu0
          %v1447 = vadd.f32 0.0, %v1446
          %v1448 = vpop.f32.mrf.mxu0
          %1449 = vmatprep.mubr.f32.mxu0 %v1324
          %1450 = vmatmul.mubr.f32.gmra.mxu0 %v1260
          %v1451 = vpop.f32.mrf.mxu0
          %v1452 = vadd.f32 0.0, %v1451
          %v1453 = vpop.f32.mrf.mxu0
          %1454 = vmatprep.mubr.f32.mxu0 %v1327
          %1455 = vmatmul.mubr.f32.gmra.mxu0 %v1261
          %v1456 = vpop.f32.mrf.mxu0
          %v1457 = vadd.f32 0.0, %v1456
          %v1458 = vpop.f32.mrf.mxu0
          %1459 = vmatprep.mubr.f32.mxu0 %v1330
          %1460 = vmatmul.mubr.f32.gmra.mxu0 %v1262
          %v1461 = vpop.f32.mrf.mxu0
          %v1462 = vadd.f32 0.0, %v1461
          %v1463 = vpop.f32.mrf.mxu0
          %1464 = vmatprep.mubr.f32.mxu0 %v1333
          %1465 = vmatmul.mubr.f32.gmra.mxu0 %v1263
          %v1466 = vpop.f32.mrf.mxu0
          %v1467 = vadd.f32 0.0, %v1466
          %v1468 = vpop.f32.mrf.mxu0
          %1469 = vmatprep.mubr.f32.mxu0 %v1336
          %1470 = vmatmul.mubr.f32.gmra.mxu0 %v1264
          %v1471 = vpop.f32.mrf.mxu0
          %v1472 = vadd.f32 0.0, %v1471
          %v1473 = vpop.f32.mrf.mxu0
          %1474 = vmatprep.mubr.f32.mxu0 %v1339
          %1475 = vmatmul.mubr.f32.gmra.mxu0 %v1265
          %v1476 = vpop.f32.mrf.mxu0
          %v1477 = vadd.f32 0.0, %v1476
          %v1478 = vpop.f32.mrf.mxu0
          %1479 = vmatprep.mubr.f32.mxu0 %v1342
          %1480 = vmatmul.mubr.f32.gmra.mxu0 %v1266
          %v1481 = vpop.f32.mrf.mxu0
          %v1482 = vadd.f32 0.0, %v1481
          %v1483 = vpop.f32.mrf.mxu0
          %1484 = vmatprep.mubr.f32.mxu0 %v1345
          %1485 = vmatmul.mubr.f32.gmra.mxu0 %v1267
          %v1486 = vpop.f32.mrf.mxu0
          %v1487 = vadd.f32 0.0, %v1486
          %v1488 = vpop.f32.mrf.mxu0
          %1489 = vmatprep.mubr.f32.mxu0 %v1348
          %1490 = vmatmul.mubr.f32.gmra.mxu0 %v1268
          %v1491 = vpop.f32.mrf.mxu0
          %v1492 = vadd.f32 0.0, %v1491
          %v1493 = vpop.f32.mrf.mxu0
          %1494 = vdwg.mxu0
          %v1495 = vld [vmem:[#allocation19] sm:$0xff]
          %v1496 = vld [vmem:[#allocation19 + $0x8] sm:$0xff]
          %v1497 = vld [vmem:[#allocation19 + $0x10] sm:$0xff]
          %v1498 = vld [vmem:[#allocation19 + $0x18] sm:$0xff]
          %v1499 = vld [vmem:[#allocation19 + $0x20] sm:$0xff]
          %v1500 = vld [vmem:[#allocation19 + $0x28] sm:$0xff]
          %v1501 = vld [vmem:[#allocation19 + $0x30] sm:$0xff]
          %v1502 = vld [vmem:[#allocation19 + $0x38] sm:$0xff]
          %v1503 = vld [vmem:[#allocation19 + $0x40] sm:$0xff]
          %v1504 = vld [vmem:[#allocation19 + $0x48] sm:$0xff]
          %v1505 = vld [vmem:[#allocation19 + $0x50] sm:$0xff]
          %v1506 = vld [vmem:[#allocation19 + $0x58] sm:$0xff]
          %v1507 = vld [vmem:[#allocation19 + $0x60] sm:$0xff]
          %v1508 = vld [vmem:[#allocation19 + $0x68] sm:$0xff]
          %v1509 = vld [vmem:[#allocation19 + $0x70] sm:$0xff]
          %v1510 = vld [vmem:[#allocation19 + $0x78] sm:$0xff]
          %v1511 = vmul.f32 %v1417, %v1495
          %v1512 = vmul.f32 %v1422, %v1496
          %v1513 = vmul.f32 %v1427, %v1497
          %v1514 = vmul.f32 %v1432, %v1498
          %v1515 = vmul.f32 %v1437, %v1499
          %v1516 = vmul.f32 %v1442, %v1500
          %v1517 = vmul.f32 %v1447, %v1501
          %v1518 = vmul.f32 %v1452, %v1502
          %v1519 = vmul.f32 %v1457, %v1503
          %v1520 = vmul.f32 %v1462, %v1504
          %v1521 = vmul.f32 %v1467, %v1505
          %v1522 = vmul.f32 %v1472, %v1506
          %v1523 = vmul.f32 %v1477, %v1507
          %v1524 = vmul.f32 %v1482, %v1508
          %v1525 = vmul.f32 %v1487, %v1509
          %v1526 = vmul.f32 %v1492, %v1510
          %1527 = vst [vmem:[#allocation2] sm:$0xff] %v1511
          %1528 = vst [vmem:[#allocation2 + $0x8] sm:$0xff] %v1512
          %1529 = vst [vmem:[#allocation2 + $0x10] sm:$0xff] %v1513
          %1530 = vst [vmem:[#allocation2 + $0x18] sm:$0xff] %v1514
          %1531 = vst [vmem:[#allocation2 + $0x20] sm:$0xff] %v1515
          %1532 = vst [vmem:[#allocation2 + $0x28] sm:$0xff] %v1516
          %1533 = vst [vmem:[#allocation2 + $0x30] sm:$0xff] %v1517
          %1534 = vst [vmem:[#allocation2 + $0x38] sm:$0xff] %v1518
          %1535 = vst [vmem:[#allocation2 + $0x40] sm:$0xff] %v1519
          %1536 = vst [vmem:[#allocation2 + $0x48] sm:$0xff] %v1520
          %1537 = vst [vmem:[#allocation2 + $0x50] sm:$0xff] %v1521
          %1538 = vst [vmem:[#allocation2 + $0x58] sm:$0xff] %v1522
          %1539 = vst [vmem:[#allocation2 + $0x60] sm:$0xff] %v1523
          %1540 = vst [vmem:[#allocation2 + $0x68] sm:$0xff] %v1524
          %1541 = vst [vmem:[#allocation2 + $0x70] sm:$0xff] %v1525
          %1542 = vst [vmem:[#allocation2 + $0x78] sm:$0xff] %v1526
          %v1543 = vadd.f32 %v1188, %v1189
          %v1544 = vadd.f32 %v1543, %v1190
          %v1545 = vadd.f32 %v1544, %v1191
          %v1546 = vadd.f32 %v1545, %v1192
          %v1547 = vadd.f32 %v1546, %v1193
          %v1548 = vadd.f32 %v1547, %v1194
          %v1549 = vadd.f32 %v1548, %v1195
          %v1550 = vadd.f32 %v1549, %v1196
          %v1551 = vadd.f32 %v1550, %v1197
          %v1552 = vadd.f32 %v1551, %v1198
          %v1553 = vadd.f32 %v1552, %v1199
          %v1554 = vadd.f32 %v1553, %v1200
          %v1555 = vadd.f32 %v1554, %v1201
          %v1556 = vadd.f32 %v1555, %v1202
          %v1557 = vadd.f32 %v1556, %v1203
          %v1558 = vadd.f32 %v1557, %v1204
          %v1559 = vadd.f32 %v1558, %v1205
          %v1560 = vadd.f32 %v1559, %v1206
          %v1561 = vadd.f32 %v1560, %v1207
          %v1562 = vadd.f32 %v1561, %v1208
          %v1563 = vadd.f32 %v1562, %v1209
          %v1564 = vadd.f32 %v1563, %v1210
          %v1565 = vadd.f32 %v1564, %v1211
          %v1566 = vrot.slane %v1565, 4
          %v1567 = vadd.f32 %v1565, %v1566
          %v1568 = vrot.slane %v1567, 2
          %v1569 = vadd.f32 %v1567, %v1568
          %v1570 = vrot.slane %v1569, 1
          %v1571 = vadd.f32 %v1569, %v1570
          %1572 = vst [vmem:[#allocation3] sm:$0x1] %v1571
        $region120: #{tpu_custom_call.1} parent=75 // pred_fallthru
          _
        %v1573 = vld [vmem:[%s569] sm:$0xff]
        %v1574 = vld [vmem:[%s569 + $0x8] sm:$0xff]
        %v1575 = vld [vmem:[%s569 + $0x10] sm:$0xff]
        %v1576 = vld [vmem:[%s569 + $0x18] sm:$0xff]
        %v1577 = vld [vmem:[%s569 + $0x20] sm:$0xff]
        %v1578 = vld [vmem:[%s569 + $0x28] sm:$0xff]
        %v1579 = vld [vmem:[%s569 + $0x30] sm:$0xff]
        %v1580 = vld [vmem:[%s569 + $0x38] sm:$0xff]
        %v1581 = vld [vmem:[%s569 + $0x40] sm:$0xff]
        %v1582 = vld [vmem:[%s569 + $0x48] sm:$0xff]
        %v1583 = vld [vmem:[%s569 + $0x50] sm:$0xff]
        %v1584 = vld [vmem:[%s569 + $0x58] sm:$0xff]
        %v1585 = vld [vmem:[%s569 + $0x60] sm:$0xff]
        %v1586 = vld [vmem:[%s569 + $0x68] sm:$0xff]
        %v1587 = vld [vmem:[%s569 + $0x70] sm:$0xff]
        %v1588 = vld [vmem:[%s569 + $0x78] sm:$0xff]
        %v1589 = vld [vmem:[#allocation9] sm:$0xff]
        %v1590 = vld [vmem:[#allocation9 + $0x8] sm:$0xff]
        %v1591 = vld [vmem:[#allocation9 + $0x10] sm:$0xff]
        %v1592 = vld [vmem:[#allocation9 + $0x18] sm:$0xff]
        %v1593 = vld [vmem:[#allocation9 + $0x20] sm:$0xff]
        %v1594 = vld [vmem:[#allocation9 + $0x28] sm:$0xff]
        %v1595 = vld [vmem:[#allocation9 + $0x30] sm:$0xff]
        %v1596 = vld [vmem:[#allocation9 + $0x38] sm:$0xff]
        %v1597 = vld [vmem:[#allocation9 + $0x40] sm:$0xff]
        %v1598 = vld [vmem:[#allocation9 + $0x48] sm:$0xff]
        %v1599 = vld [vmem:[#allocation9 + $0x50] sm:$0xff]
        %v1600 = vld [vmem:[#allocation9 + $0x58] sm:$0xff]
        %v1601 = vld [vmem:[#allocation9 + $0x60] sm:$0xff]
        %v1602 = vld [vmem:[#allocation9 + $0x68] sm:$0xff]
        %v1603 = vld [vmem:[#allocation9 + $0x70] sm:$0xff]
        %v1604 = vld [vmem:[#allocation9 + $0x78] sm:$0xff]
        %1605 = vmatprep.subr.mxu0 0.0
        %1606 = vmatpush1.msra.mxu0 %v1604
        %1607 = vmatprep.subr.mxu0 0.0
        %1608 = vmatpush1.msra.mxu0 %v1603
        %1609 = vmatprep.subr.mxu0 0.0
        %1610 = vmatpush1.msra.mxu0 %v1602
        %1611 = vmatprep.subr.mxu0 0.0
        %1612 = vmatpush1.msra.mxu0 %v1601
        %1613 = vmatprep.subr.mxu0 0.0
        %1614 = vmatpush1.msra.mxu0 %v1600
        %1615 = vmatprep.subr.mxu0 0.0
        %1616 = vmatpush1.msra.mxu0 %v1599
        %1617 = vmatprep.subr.mxu0 0.0
        %1618 = vmatpush1.msra.mxu0 %v1598
        %1619 = vmatprep.subr.mxu0 0.0
        %1620 = vmatpush1.msra.mxu0 %v1597
        %1621 = vmatprep.subr.mxu0 0.0
        %1622 = vmatpush1.msra.mxu0 %v1596
        %1623 = vmatprep.subr.mxu0 0.0
        %1624 = vmatpush1.msra.mxu0 %v1595
        %1625 = vmatprep.subr.mxu0 0.0
        %1626 = vmatpush1.msra.mxu0 %v1594
        %1627 = vmatprep.subr.mxu0 0.0
        %1628 = vmatpush1.msra.mxu0 %v1593
        %1629 = vmatprep.subr.mxu0 0.0
        %1630 = vmatpush1.msra.mxu0 %v1592
        %1631 = vmatprep.subr.mxu0 0.0
        %1632 = vmatpush1.msra.mxu0 %v1591
        %1633 = vmatprep.subr.mxu0 0.0
        %1634 = vmatpush1.msra.mxu0 %v1590
        %1635 = vmatprep.subr.mxu0 0.0
        %1636 = vmatpush1.msra.mxu0 %v1589
        %1637 = vmatprep.subr.mxu0 0.0
        %1638 = vmatpush2.msra.mxu0 0.0
        %1639 = vmatprep.subr.mxu0 0.0
        %1640 = vmatpush2.msra.mxu0 0.0
        %1641 = vmatprep.subr.mxu0 0.0
        %1642 = vmatpush2.msra.mxu0 0.0
        %1643 = vmatprep.subr.mxu0 0.0
        %1644 = vmatpush2.msra.mxu0 0.0
        %1645 = vmatprep.subr.mxu0 0.0
        %1646 = vmatpush2.msra.mxu0 0.0
        %1647 = vmatprep.subr.mxu0 0.0
        %1648 = vmatpush2.msra.mxu0 0.0
        %1649 = vmatprep.subr.mxu0 0.0
        %1650 = vmatpush2.msra.mxu0 0.0
        %1651 = vmatprep.subr.mxu0 0.0
        %1652 = vmatpush2.msra.mxu0 0.0
        %1653 = vmatprep.subr.mxu0 0.0
        %1654 = vmatpush2.msra.mxu0 0.0
        %1655 = vmatprep.subr.mxu0 0.0
        %1656 = vmatpush2.msra.mxu0 0.0
        %1657 = vmatprep.subr.mxu0 0.0
        %1658 = vmatpush2.msra.mxu0 0.0
        %1659 = vmatprep.subr.mxu0 0.0
        %1660 = vmatpush2.msra.mxu0 0.0
        %1661 = vmatprep.subr.mxu0 0.0
        %1662 = vmatpush2.msra.mxu0 0.0
        %1663 = vmatprep.subr.mxu0 0.0
        %1664 = vmatpush2.msra.mxu0 0.0
        %1665 = vmatprep.subr.mxu0 0.0
        %1666 = vmatpush2.msra.mxu0 0.0
        %1667 = vmatprep.subr.mxu0 0.0
        %1668 = vmatpush2.msra.mxu0 0.0
        %1669 = vmatprep.mubr.f32.mxu0 0.0
        %1670 = vmatmul.mubr.f32.gmra.mxu0 %v1573
        %v1671 = vpop.f32.mrf.mxu0
        %v1672 = vadd.f32 0.0, %v1671
        %v1673 = vpop.f32.mrf.mxu0
        %1674 = vmatprep.mubr.f32.mxu0 0.0
        %1675 = vmatmul.mubr.f32.gmra.mxu0 %v1574
        %v1676 = vpop.f32.mrf.mxu0
        %v1677 = vadd.f32 0.0, %v1676
        %v1678 = vpop.f32.mrf.mxu0
        %1679 = vmatprep.mubr.f32.mxu0 0.0
        %1680 = vmatmul.mubr.f32.gmra.mxu0 %v1575
        %v1681 = vpop.f32.mrf.mxu0
        %v1682 = vadd.f32 0.0, %v1681
        %v1683 = vpop.f32.mrf.mxu0
        %1684 = vmatprep.mubr.f32.mxu0 0.0
        %1685 = vmatmul.mubr.f32.gmra.mxu0 %v1576
        %v1686 = vpop.f32.mrf.mxu0
        %v1687 = vadd.f32 0.0, %v1686
        %v1688 = vpop.f32.mrf.mxu0
        %1689 = vmatprep.mubr.f32.mxu0 0.0
        %1690 = vmatmul.mubr.f32.gmra.mxu0 %v1577
        %v1691 = vpop.f32.mrf.mxu0
        %v1692 = vadd.f32 0.0, %v1691
        %v1693 = vpop.f32.mrf.mxu0
        %1694 = vmatprep.mubr.f32.mxu0 0.0
        %1695 = vmatmul.mubr.f32.gmra.mxu0 %v1578
        %v1696 = vpop.f32.mrf.mxu0
        %v1697 = vadd.f32 0.0, %v1696
        %v1698 = vpop.f32.mrf.mxu0
        %1699 = vmatprep.mubr.f32.mxu0 0.0
        %1700 = vmatmul.mubr.f32.gmra.mxu0 %v1579
        %v1701 = vpop.f32.mrf.mxu0
        %v1702 = vadd.f32 0.0, %v1701
        %v1703 = vpop.f32.mrf.mxu0
        %1704 = vmatprep.mubr.f32.mxu0 0.0
        %1705 = vmatmul.mubr.f32.gmra.mxu0 %v1580
        %v1706 = vpop.f32.mrf.mxu0
        %v1707 = vadd.f32 0.0, %v1706
        %v1708 = vpop.f32.mrf.mxu0
        %1709 = vmatprep.mubr.f32.mxu0 0.0
        %1710 = vmatmul.mubr.f32.gmra.mxu0 %v1581
        %v1711 = vpop.f32.mrf.mxu0
        %v1712 = vadd.f32 0.0, %v1711
        %v1713 = vpop.f32.mrf.mxu0
        %1714 = vmatprep.mubr.f32.mxu0 0.0
        %1715 = vmatmul.mubr.f32.gmra.mxu0 %v1582
        %v1716 = vpop.f32.mrf.mxu0
        %v1717 = vadd.f32 0.0, %v1716
        %v1718 = vpop.f32.mrf.mxu0
        %1719 = vmatprep.mubr.f32.mxu0 0.0
        %1720 = vmatmul.mubr.f32.gmra.mxu0 %v1583
        %v1721 = vpop.f32.mrf.mxu0
        %v1722 = vadd.f32 0.0, %v1721
        %v1723 = vpop.f32.mrf.mxu0
        %1724 = vmatprep.mubr.f32.mxu0 0.0
        %1725 = vmatmul.mubr.f32.gmra.mxu0 %v1584
        %v1726 = vpop.f32.mrf.mxu0
        %v1727 = vadd.f32 0.0, %v1726
        %v1728 = vpop.f32.mrf.mxu0
        %1729 = vmatprep.mubr.f32.mxu0 0.0
        %1730 = vmatmul.mubr.f32.gmra.mxu0 %v1585
        %v1731 = vpop.f32.mrf.mxu0
        %v1732 = vadd.f32 0.0, %v1731
        %v1733 = vpop.f32.mrf.mxu0
        %1734 = vmatprep.mubr.f32.mxu0 0.0
        %1735 = vmatmul.mubr.f32.gmra.mxu0 %v1586
        %v1736 = vpop.f32.mrf.mxu0
        %v1737 = vadd.f32 0.0, %v1736
        %v1738 = vpop.f32.mrf.mxu0
        %1739 = vmatprep.mubr.f32.mxu0 0.0
        %1740 = vmatmul.mubr.f32.gmra.mxu0 %v1587
        %v1741 = vpop.f32.mrf.mxu0
        %v1742 = vadd.f32 0.0, %v1741
        %v1743 = vpop.f32.mrf.mxu0
        %1744 = vmatprep.mubr.f32.mxu0 0.0
        %1745 = vmatmul.mubr.f32.gmra.mxu0 %v1588
        %v1746 = vpop.f32.mrf.mxu0
        %v1747 = vadd.f32 0.0, %v1746
        %v1748 = vpop.f32.mrf.mxu0
        %1749 = vdwg.mxu0
        %vm1750 = vcmp.gt.f32.partialorder %v1672, 0.0
        %vm1751 = vcmp.gt.f32.partialorder %v1677, 0.0
        %vm1752 = vcmp.gt.f32.partialorder %v1682, 0.0
        %vm1753 = vcmp.gt.f32.partialorder %v1687, 0.0
        %vm1754 = vcmp.gt.f32.partialorder %v1692, 0.0
        %vm1755 = vcmp.gt.f32.partialorder %v1697, 0.0
        %vm1756 = vcmp.gt.f32.partialorder %v1702, 0.0
        %vm1757 = vcmp.gt.f32.partialorder %v1707, 0.0
        %vm1758 = vcmp.gt.f32.partialorder %v1712, 0.0
        %vm1759 = vcmp.gt.f32.partialorder %v1717, 0.0
        %vm1760 = vcmp.gt.f32.partialorder %v1722, 0.0
        %vm1761 = vcmp.gt.f32.partialorder %v1727, 0.0
        %vm1762 = vcmp.gt.f32.partialorder %v1732, 0.0
        %vm1763 = vcmp.gt.f32.partialorder %v1737, 0.0
        %vm1764 = vcmp.gt.f32.partialorder %v1742, 0.0
        %vm1765 = vcmp.gt.f32.partialorder %v1747, 0.0
        %v1766 = vadd.f32 %v1672, 1.0
        %v1767 = vadd.f32 %v1677, 1.0
        %v1768 = vadd.f32 %v1682, 1.0
        %v1769 = vadd.f32 %v1687, 1.0
        %v1770 = vadd.f32 %v1692, 1.0
        %v1771 = vadd.f32 %v1697, 1.0
        %v1772 = vadd.f32 %v1702, 1.0
        %v1773 = vadd.f32 %v1707, 1.0
        %v1774 = vadd.f32 %v1712, 1.0
        %v1775 = vadd.f32 %v1717, 1.0
        %v1776 = vadd.f32 %v1722, 1.0
        %v1777 = vadd.f32 %v1727, 1.0
        %v1778 = vadd.f32 %v1732, 1.0
        %v1779 = vadd.f32 %v1737, 1.0
        %v1780 = vadd.f32 %v1742, 1.0
        %v1781 = vadd.f32 %v1747, 1.0
        %v1782 = vmul.f32 %v1672, 1.442695
        %v1783 = vpow.pop %v1782
        %v1784 = vmul.f32 %v1677, 1.442695
        %v1785 = vpow.pop %v1784
        %v1786 = vmul.f32 %v1682, 1.442695
        %v1787 = vpow.pop %v1786
        %v1788 = vmul.f32 %v1687, 1.442695
        %v1789 = vpow.pop %v1788
        %v1790 = vmul.f32 %v1692, 1.442695
        %v1791 = vpow.pop %v1790
        %v1792 = vmul.f32 %v1697, 1.442695
        %v1793 = vpow.pop %v1792
        %v1794 = vmul.f32 %v1702, 1.442695
        %v1795 = vpow.pop %v1794
        %v1796 = vmul.f32 %v1707, 1.442695
        %v1797 = vpow.pop %v1796
        %v1798 = vmul.f32 %v1712, 1.442695
        %v1799 = vpow.pop %v1798
        %v1800 = vmul.f32 %v1717, 1.442695
        %v1801 = vpow.pop %v1800
        %v1802 = vmul.f32 %v1722, 1.442695
        %v1803 = vpow.pop %v1802
        %v1804 = vmul.f32 %v1727, 1.442695
        %v1805 = vpow.pop %v1804
        %v1806 = vmul.f32 %v1732, 1.442695
        %v1807 = vpow.pop %v1806
        %v1808 = vmul.f32 %v1737, 1.442695
        %v1809 = vpow.pop %v1808
        %v1810 = vmul.f32 %v1742, 1.442695
        %v1811 = vpow.pop %v1810
        %v1812 = vmul.f32 %v1747, 1.442695
        %v1813 = vpow.pop %v1812
        %v1814 = vsel %vm1750, %v1766, %v1783
        %v1815 = vsel %vm1751, %v1767, %v1785
        %v1816 = vsel %vm1752, %v1768, %v1787
        %v1817 = vsel %vm1753, %v1769, %v1789
        %v1818 = vsel %vm1754, %v1770, %v1791
        %v1819 = vsel %vm1755, %v1771, %v1793
        %v1820 = vsel %vm1756, %v1772, %v1795
        %v1821 = vsel %vm1757, %v1773, %v1797
        %v1822 = vsel %vm1758, %v1774, %v1799
        %v1823 = vsel %vm1759, %v1775, %v1801
        %v1824 = vsel %vm1760, %v1776, %v1803
        %v1825 = vsel %vm1761, %v1777, %v1805
        %v1826 = vsel %vm1762, %v1778, %v1807
        %v1827 = vsel %vm1763, %v1779, %v1809
        %v1828 = vsel %vm1764, %v1780, %v1811
        %v1829 = vsel %vm1765, %v1781, %v1813
        %v1830 = vld [vmem:[#allocation2] sm:$0xff]
        %v1831 = vld [vmem:[#allocation2 + $0x8] sm:$0xff]
        %v1832 = vld [vmem:[#allocation2 + $0x10] sm:$0xff]
        %v1833 = vld [vmem:[#allocation2 + $0x18] sm:$0xff]
        %v1834 = vld [vmem:[#allocation2 + $0x20] sm:$0xff]
        %v1835 = vld [vmem:[#allocation2 + $0x28] sm:$0xff]
        %v1836 = vld [vmem:[#allocation2 + $0x30] sm:$0xff]
        %v1837 = vld [vmem:[#allocation2 + $0x38] sm:$0xff]
        %v1838 = vld [vmem:[#allocation2 + $0x40] sm:$0xff]
        %v1839 = vld [vmem:[#allocation2 + $0x48] sm:$0xff]
        %v1840 = vld [vmem:[#allocation2 + $0x50] sm:$0xff]
        %v1841 = vld [vmem:[#allocation2 + $0x58] sm:$0xff]
        %v1842 = vld [vmem:[#allocation2 + $0x60] sm:$0xff]
        %v1843 = vld [vmem:[#allocation2 + $0x68] sm:$0xff]
        %v1844 = vld [vmem:[#allocation2 + $0x70] sm:$0xff]
        %v1845 = vld [vmem:[#allocation2 + $0x78] sm:$0xff]
        %1846 = vmatprep.subr.mxu0 0.0
        %1847 = vmatpush1.msra.mxu0 %v1845
        %1848 = vmatprep.subr.mxu0 0.0
        %1849 = vmatpush1.msra.mxu0 %v1844
        %1850 = vmatprep.subr.mxu0 0.0
        %1851 = vmatpush1.msra.mxu0 %v1843
        %1852 = vmatprep.subr.mxu0 0.0
        %1853 = vmatpush1.msra.mxu0 %v1842
        %1854 = vmatprep.subr.mxu0 0.0
        %1855 = vmatpush1.msra.mxu0 %v1841
        %1856 = vmatprep.subr.mxu0 0.0
        %1857 = vmatpush1.msra.mxu0 %v1840
        %1858 = vmatprep.subr.mxu0 0.0
        %1859 = vmatpush1.msra.mxu0 %v1839
        %1860 = vmatprep.subr.mxu0 0.0
        %1861 = vmatpush1.msra.mxu0 %v1838
        %1862 = vmatprep.subr.mxu0 0.0
        %1863 = vmatpush1.msra.mxu0 %v1837
        %1864 = vmatprep.subr.mxu0 0.0
        %1865 = vmatpush1.msra.mxu0 %v1836
        %1866 = vmatprep.subr.mxu0 0.0
        %1867 = vmatpush1.msra.mxu0 %v1835
        %1868 = vmatprep.subr.mxu0 0.0
        %1869 = vmatpush1.msra.mxu0 %v1834
        %1870 = vmatprep.subr.mxu0 0.0
        %1871 = vmatpush1.msra.mxu0 %v1833
        %1872 = vmatprep.subr.mxu0 0.0
        %1873 = vmatpush1.msra.mxu0 %v1832
        %1874 = vmatprep.subr.mxu0 0.0
        %1875 = vmatpush1.msra.mxu0 %v1831
        %1876 = vmatprep.subr.mxu0 0.0
        %1877 = vmatpush1.msra.mxu0 %v1830
        %1878 = vmatprep.subr.mxu0 0.0
        %1879 = vmatpush2.msra.mxu0 0.0
        %1880 = vmatprep.subr.mxu0 0.0
        %1881 = vmatpush2.msra.mxu0 0.0
        %1882 = vmatprep.subr.mxu0 0.0
        %1883 = vmatpush2.msra.mxu0 0.0
        %1884 = vmatprep.subr.mxu0 0.0
        %1885 = vmatpush2.msra.mxu0 0.0
        %1886 = vmatprep.subr.mxu0 0.0
        %1887 = vmatpush2.msra.mxu0 0.0
        %1888 = vmatprep.subr.mxu0 0.0
        %1889 = vmatpush2.msra.mxu0 0.0
        %1890 = vmatprep.subr.mxu0 0.0
        %1891 = vmatpush2.msra.mxu0 0.0
        %1892 = vmatprep.subr.mxu0 0.0
        %1893 = vmatpush2.msra.mxu0 0.0
        %1894 = vmatprep.subr.mxu0 0.0
        %1895 = vmatpush2.msra.mxu0 0.0
        %1896 = vmatprep.subr.mxu0 0.0
        %1897 = vmatpush2.msra.mxu0 0.0
        %1898 = vmatprep.subr.mxu0 0.0
        %1899 = vmatpush2.msra.mxu0 0.0
        %1900 = vmatprep.subr.mxu0 0.0
        %1901 = vmatpush2.msra.mxu0 0.0
        %1902 = vmatprep.subr.mxu0 0.0
        %1903 = vmatpush2.msra.mxu0 0.0
        %1904 = vmatprep.subr.mxu0 0.0
        %1905 = vmatpush2.msra.mxu0 0.0
        %1906 = vmatprep.subr.mxu0 0.0
        %1907 = vmatpush2.msra.mxu0 0.0
        %1908 = vmatprep.subr.mxu0 0.0
        %1909 = vmatpush2.msra.mxu0 0.0
        %1910 = vmatprep.mubr.f32.mxu0 0.0
        %1911 = vmatmul.mubr.f32.gmra.mxu0 %v1814
        %v1912 = vpop.f32.mrf.mxu0
        %v1913 = vadd.f32 0.0, %v1912
        %v1914 = vpop.f32.mrf.mxu0
        %1915 = vmatprep.mubr.f32.mxu0 0.0
        %1916 = vmatmul.mubr.f32.gmra.mxu0 %v1815
        %v1917 = vpop.f32.mrf.mxu0
        %v1918 = vadd.f32 0.0, %v1917
        %v1919 = vpop.f32.mrf.mxu0
        %1920 = vmatprep.mubr.f32.mxu0 0.0
        %1921 = vmatmul.mubr.f32.gmra.mxu0 %v1816
        %v1922 = vpop.f32.mrf.mxu0
        %v1923 = vadd.f32 0.0, %v1922
        %v1924 = vpop.f32.mrf.mxu0
        %1925 = vmatprep.mubr.f32.mxu0 0.0
        %1926 = vmatmul.mubr.f32.gmra.mxu0 %v1817
        %v1927 = vpop.f32.mrf.mxu0
        %v1928 = vadd.f32 0.0, %v1927
        %v1929 = vpop.f32.mrf.mxu0
        %1930 = vmatprep.mubr.f32.mxu0 0.0
        %1931 = vmatmul.mubr.f32.gmra.mxu0 %v1818
        %v1932 = vpop.f32.mrf.mxu0
        %v1933 = vadd.f32 0.0, %v1932
        %v1934 = vpop.f32.mrf.mxu0
        %1935 = vmatprep.mubr.f32.mxu0 0.0
        %1936 = vmatmul.mubr.f32.gmra.mxu0 %v1819
        %v1937 = vpop.f32.mrf.mxu0
        %v1938 = vadd.f32 0.0, %v1937
        %v1939 = vpop.f32.mrf.mxu0
        %1940 = vmatprep.mubr.f32.mxu0 0.0
        %1941 = vmatmul.mubr.f32.gmra.mxu0 %v1820
        %v1942 = vpop.f32.mrf.mxu0
        %v1943 = vadd.f32 0.0, %v1942
        %v1944 = vpop.f32.mrf.mxu0
        %1945 = vmatprep.mubr.f32.mxu0 0.0
        %1946 = vmatmul.mubr.f32.gmra.mxu0 %v1821
        %v1947 = vpop.f32.mrf.mxu0
        %v1948 = vadd.f32 0.0, %v1947
        %v1949 = vpop.f32.mrf.mxu0
        %1950 = vmatprep.mubr.f32.mxu0 0.0
        %1951 = vmatmul.mubr.f32.gmra.mxu0 %v1822
        %v1952 = vpop.f32.mrf.mxu0
        %v1953 = vadd.f32 0.0, %v1952
        %v1954 = vpop.f32.mrf.mxu0
        %1955 = vmatprep.mubr.f32.mxu0 0.0
        %1956 = vmatmul.mubr.f32.gmra.mxu0 %v1823
        %v1957 = vpop.f32.mrf.mxu0
        %v1958 = vadd.f32 0.0, %v1957
        %v1959 = vpop.f32.mrf.mxu0
        %1960 = vmatprep.mubr.f32.mxu0 0.0
        %1961 = vmatmul.mubr.f32.gmra.mxu0 %v1824
        %v1962 = vpop.f32.mrf.mxu0
        %v1963 = vadd.f32 0.0, %v1962
        %v1964 = vpop.f32.mrf.mxu0
        %1965 = vmatprep.mubr.f32.mxu0 0.0
        %1966 = vmatmul.mubr.f32.gmra.mxu0 %v1825
        %v1967 = vpop.f32.mrf.mxu0
        %v1968 = vadd.f32 0.0, %v1967
        %v1969 = vpop.f32.mrf.mxu0
        %1970 = vmatprep.mubr.f32.mxu0 0.0
        %1971 = vmatmul.mubr.f32.gmra.mxu0 %v1826
        %v1972 = vpop.f32.mrf.mxu0
        %v1973 = vadd.f32 0.0, %v1972
        %v1974 = vpop.f32.mrf.mxu0
        %1975 = vmatprep.mubr.f32.mxu0 0.0
        %1976 = vmatmul.mubr.f32.gmra.mxu0 %v1827
        %v1977 = vpop.f32.mrf.mxu0
        %v1978 = vadd.f32 0.0, %v1977
        %v1979 = vpop.f32.mrf.mxu0
        %1980 = vmatprep.mubr.f32.mxu0 0.0
        %1981 = vmatmul.mubr.f32.gmra.mxu0 %v1828
        %v1982 = vpop.f32.mrf.mxu0
        %v1983 = vadd.f32 0.0, %v1982
        %v1984 = vpop.f32.mrf.mxu0
        %1985 = vmatprep.mubr.f32.mxu0 0.0
        %1986 = vmatmul.mubr.f32.gmra.mxu0 %v1829
        %v1987 = vpop.f32.mrf.mxu0
        %v1988 = vadd.f32 0.0, %v1987
        %v1989 = vpop.f32.mrf.mxu0
        %1990 = vdwg.mxu0
        %v1991 = vld [vmem:[#allocation3] sm:$0x1]
        %v1993 = vlaneseq
        %v1994 = vshrl.u32 %v1993, 7
        %v1995 = vsub.s32 0, %v1994
        %v1996 = vrot.slane %v1991, %v1995
        %v1998 = vmul.f32 %v1814, %v1996
        %v1999 = vmul.f32 %v1815, %v1996
        %v2000 = vmul.f32 %v1816, %v1996
        %v2001 = vmul.f32 %v1817, %v1996
        %v2002 = vmul.f32 %v1818, %v1996
        %v2003 = vmul.f32 %v1819, %v1996
        %v2004 = vmul.f32 %v1820, %v1996
        %v2005 = vmul.f32 %v1821, %v1996
        %v2006 = vmul.f32 %v1822, %v1996
        %v2007 = vmul.f32 %v1823, %v1996
        %v2008 = vmul.f32 %v1824, %v1996
        %v2009 = vmul.f32 %v1825, %v1996
        %v2010 = vmul.f32 %v1826, %v1996
        %v2011 = vmul.f32 %v1827, %v1996
        %v2012 = vmul.f32 %v1828, %v1996
        %v2013 = vmul.f32 %v1829, %v1996
        %v2014 = vld [vmem:[#allocation19] sm:$0xff]
        %v2015 = vld [vmem:[#allocation19 + $0x8] sm:$0xff]
        %v2016 = vld [vmem:[#allocation19 + $0x10] sm:$0xff]
        %v2017 = vld [vmem:[#allocation19 + $0x18] sm:$0xff]
        %v2018 = vld [vmem:[#allocation19 + $0x20] sm:$0xff]
        %v2019 = vld [vmem:[#allocation19 + $0x28] sm:$0xff]
        %v2020 = vld [vmem:[#allocation19 + $0x30] sm:$0xff]
        %v2021 = vld [vmem:[#allocation19 + $0x38] sm:$0xff]
        %v2022 = vld [vmem:[#allocation19 + $0x40] sm:$0xff]
        %v2023 = vld [vmem:[#allocation19 + $0x48] sm:$0xff]
        %v2024 = vld [vmem:[#allocation19 + $0x50] sm:$0xff]
        %v2025 = vld [vmem:[#allocation19 + $0x58] sm:$0xff]
        %v2026 = vld [vmem:[#allocation19 + $0x60] sm:$0xff]
        %v2027 = vld [vmem:[#allocation19 + $0x68] sm:$0xff]
        %v2028 = vld [vmem:[#allocation19 + $0x70] sm:$0xff]
        %v2029 = vld [vmem:[#allocation19 + $0x78] sm:$0xff]
        %2030 = vmatprep.subr.mxu0 0.0
        %2031 = vmatpush1.msra.mxu0 %v2029
        %2032 = vmatprep.subr.mxu0 0.0
        %2033 = vmatpush1.msra.mxu0 %v2028
        %2034 = vmatprep.subr.mxu0 0.0
        %2035 = vmatpush1.msra.mxu0 %v2027
        %2036 = vmatprep.subr.mxu0 0.0
        %2037 = vmatpush1.msra.mxu0 %v2026
        %2038 = vmatprep.subr.mxu0 0.0
        %2039 = vmatpush1.msra.mxu0 %v2025
        %2040 = vmatprep.subr.mxu0 0.0
        %2041 = vmatpush1.msra.mxu0 %v2024
        %2042 = vmatprep.subr.mxu0 0.0
        %2043 = vmatpush1.msra.mxu0 %v2023
        %2044 = vmatprep.subr.mxu0 0.0
        %2045 = vmatpush1.msra.mxu0 %v2022
        %2046 = vmatprep.subr.mxu0 0.0
        %2047 = vmatpush1.msra.mxu0 %v2021
        %2048 = vmatprep.subr.mxu0 0.0
        %2049 = vmatpush1.msra.mxu0 %v2020
        %2050 = vmatprep.subr.mxu0 0.0
        %2051 = vmatpush1.msra.mxu0 %v2019
        %2052 = vmatprep.subr.mxu0 0.0
        %2053 = vmatpush1.msra.mxu0 %v2018
        %2054 = vmatprep.subr.mxu0 0.0
        %2055 = vmatpush1.msra.mxu0 %v2017
        %2056 = vmatprep.subr.mxu0 0.0
        %2057 = vmatpush1.msra.mxu0 %v2016
        %2058 = vmatprep.subr.mxu0 0.0
        %2059 = vmatpush1.msra.mxu0 %v2015
        %2060 = vmatprep.subr.mxu0 0.0
        %2061 = vmatpush1.msra.mxu0 %v2014
        %2062 = vmatprep.subr.mxu0 0.0
        %2063 = vmatpush2.msra.mxu0 0.0
        %2064 = vmatprep.subr.mxu0 0.0
        %2065 = vmatpush2.msra.mxu0 0.0
        %2066 = vmatprep.subr.mxu0 0.0
        %2067 = vmatpush2.msra.mxu0 0.0
        %2068 = vmatprep.subr.mxu0 0.0
        %2069 = vmatpush2.msra.mxu0 0.0
        %2070 = vmatprep.subr.mxu0 0.0
        %2071 = vmatpush2.msra.mxu0 0.0
        %2072 = vmatprep.subr.mxu0 0.0
        %2073 = vmatpush2.msra.mxu0 0.0
        %2074 = vmatprep.subr.mxu0 0.0
        %2075 = vmatpush2.msra.mxu0 0.0
        %2076 = vmatprep.subr.mxu0 0.0
        %2077 = vmatpush2.msra.mxu0 0.0
        %2078 = vmatprep.subr.mxu0 0.0
        %2079 = vmatpush2.msra.mxu0 0.0
        %2080 = vmatprep.subr.mxu0 0.0
        %2081 = vmatpush2.msra.mxu0 0.0
        %2082 = vmatprep.subr.mxu0 0.0
        %2083 = vmatpush2.msra.mxu0 0.0
        %2084 = vmatprep.subr.mxu0 0.0
        %2085 = vmatpush2.msra.mxu0 0.0
        %2086 = vmatprep.subr.mxu0 0.0
        %2087 = vmatpush2.msra.mxu0 0.0
        %2088 = vmatprep.subr.mxu0 0.0
        %2089 = vmatpush2.msra.mxu0 0.0
        %2090 = vmatprep.subr.mxu0 0.0
        %2091 = vmatpush2.msra.mxu0 0.0
        %2092 = vmatprep.subr.mxu0 0.0
        %2093 = vmatpush2.msra.mxu0 0.0
        %2094 = vmatprep.mubr.f32.mxu0 0.0
        %2095 = vmatmul.mubr.f32.gmra.mxu0 %v1998
        %v2096 = vpop.f32.mrf.mxu0
        %v2097 = vadd.f32 1e-06, %v2096
        %v2098 = vpop.f32.mrf.mxu0
        %2099 = vmatprep.mubr.f32.mxu0 0.0
        %2100 = vmatmul.mubr.f32.gmra.mxu0 %v1999
        %v2101 = vpop.f32.mrf.mxu0
        %v2102 = vadd.f32 1e-06, %v2101
        %v2103 = vpop.f32.mrf.mxu0
        %2104 = vmatprep.mubr.f32.mxu0 0.0
        %2105 = vmatmul.mubr.f32.gmra.mxu0 %v2000
        %v2106 = vpop.f32.mrf.mxu0
        %v2107 = vadd.f32 1e-06, %v2106
        %v2108 = vpop.f32.mrf.mxu0
        %2109 = vmatprep.mubr.f32.mxu0 0.0
        %2110 = vmatmul.mubr.f32.gmra.mxu0 %v2001
        %v2111 = vpop.f32.mrf.mxu0
        %v2112 = vadd.f32 1e-06, %v2111
        %v2113 = vpop.f32.mrf.mxu0
        %2114 = vmatprep.mubr.f32.mxu0 0.0
        %2115 = vmatmul.mubr.f32.gmra.mxu0 %v2002
        %v2116 = vpop.f32.mrf.mxu0
        %v2117 = vadd.f32 1e-06, %v2116
        %v2118 = vpop.f32.mrf.mxu0
        %2119 = vmatprep.mubr.f32.mxu0 0.0
        %2120 = vmatmul.mubr.f32.gmra.mxu0 %v2003
        %v2121 = vpop.f32.mrf.mxu0
        %v2122 = vadd.f32 1e-06, %v2121
        %v2123 = vpop.f32.mrf.mxu0
        %2124 = vmatprep.mubr.f32.mxu0 0.0
        %2125 = vmatmul.mubr.f32.gmra.mxu0 %v2004
        %v2126 = vpop.f32.mrf.mxu0
        %v2127 = vadd.f32 1e-06, %v2126
        %v2128 = vpop.f32.mrf.mxu0
        %2129 = vmatprep.mubr.f32.mxu0 0.0
        %2130 = vmatmul.mubr.f32.gmra.mxu0 %v2005
        %v2131 = vpop.f32.mrf.mxu0
        %v2132 = vadd.f32 1e-06, %v2131
        %v2133 = vpop.f32.mrf.mxu0
        %2134 = vmatprep.mubr.f32.mxu0 0.0
        %2135 = vmatmul.mubr.f32.gmra.mxu0 %v2006
        %v2136 = vpop.f32.mrf.mxu0
        %v2137 = vadd.f32 1e-06, %v2136
        %v2138 = vpop.f32.mrf.mxu0
        %2139 = vmatprep.mubr.f32.mxu0 0.0
        %2140 = vmatmul.mubr.f32.gmra.mxu0 %v2007
        %v2141 = vpop.f32.mrf.mxu0
        %v2142 = vadd.f32 1e-06, %v2141
        %v2143 = vpop.f32.mrf.mxu0
        %2144 = vmatprep.mubr.f32.mxu0 0.0
        %2145 = vmatmul.mubr.f32.gmra.mxu0 %v2008
        %v2146 = vpop.f32.mrf.mxu0
        %v2147 = vadd.f32 1e-06, %v2146
        %v2148 = vpop.f32.mrf.mxu0
        %2149 = vmatprep.mubr.f32.mxu0 0.0
        %2150 = vmatmul.mubr.f32.gmra.mxu0 %v2009
        %v2151 = vpop.f32.mrf.mxu0
        %v2152 = vadd.f32 1e-06, %v2151
        %v2153 = vpop.f32.mrf.mxu0
        %2154 = vmatprep.mubr.f32.mxu0 0.0
        %2155 = vmatmul.mubr.f32.gmra.mxu0 %v2010
        %v2156 = vpop.f32.mrf.mxu0
        %v2157 = vadd.f32 1e-06, %v2156
        %v2158 = vpop.f32.mrf.mxu0
        %2159 = vmatprep.mubr.f32.mxu0 0.0
        %2160 = vmatmul.mubr.f32.gmra.mxu0 %v2011
        %v2161 = vpop.f32.mrf.mxu0
        %v2162 = vadd.f32 1e-06, %v2161
        %v2163 = vpop.f32.mrf.mxu0
        %2164 = vmatprep.mubr.f32.mxu0 0.0
        %2165 = vmatmul.mubr.f32.gmra.mxu0 %v2012
        %v2166 = vpop.f32.mrf.mxu0
        %v2167 = vadd.f32 1e-06, %v2166
        %v2168 = vpop.f32.mrf.mxu0
        %2169 = vmatprep.mubr.f32.mxu0 0.0
        %2170 = vmatmul.mubr.f32.gmra.mxu0 %v2013
        %v2171 = vpop.f32.mrf.mxu0
        %v2172 = vadd.f32 1e-06, %v2171
        %v2173 = vpop.f32.mrf.mxu0
        %2174 = vdwg.mxu0
        %v2175 = vrcp.pop %v2097
        %v2176 = vrcp.pop %v2102
        %v2177 = vrcp.pop %v2107
        %v2178 = vrcp.pop %v2112
        %v2179 = vrcp.pop %v2117
        %v2180 = vrcp.pop %v2122
        %v2181 = vrcp.pop %v2127
        %v2182 = vrcp.pop %v2132
        %v2183 = vrcp.pop %v2137
        %v2184 = vrcp.pop %v2142
        %v2185 = vrcp.pop %v2147
        %v2186 = vrcp.pop %v2152
        %v2187 = vrcp.pop %v2157
        %v2188 = vrcp.pop %v2162
        %v2189 = vrcp.pop %v2167
        %v2190 = vrcp.pop %v2172
        %v2191 = vmul.f32 %v1913, %v2175
        %v2192 = vmul.f32 %v1918, %v2176
        %v2193 = vmul.f32 %v1923, %v2177
        %v2194 = vmul.f32 %v1928, %v2178
        %v2195 = vmul.f32 %v1933, %v2179
        %v2196 = vmul.f32 %v1938, %v2180
        %v2197 = vmul.f32 %v1943, %v2181
        %v2198 = vmul.f32 %v1948, %v2182
        %v2199 = vmul.f32 %v1953, %v2183
        %v2200 = vmul.f32 %v1958, %v2184
        %v2201 = vmul.f32 %v1963, %v2185
        %v2202 = vmul.f32 %v1968, %v2186
        %v2203 = vmul.f32 %v1973, %v2187
        %v2204 = vmul.f32 %v1978, %v2188
        %v2205 = vmul.f32 %v1983, %v2189
        %v2206 = vmul.f32 %v1988, %v2190
        %v2207 = vmul.f32 %v2191, 192.0
        %v2208 = vmul.f32 %v2192, 192.0
        %v2209 = vmul.f32 %v2193, 192.0
        %v2210 = vmul.f32 %v2194, 192.0
        %v2211 = vmul.f32 %v2195, 192.0
        %v2212 = vmul.f32 %v2196, 192.0
        %v2213 = vmul.f32 %v2197, 192.0
        %v2214 = vmul.f32 %v2198, 192.0
        %v2215 = vmul.f32 %v2199, 192.0
        %v2216 = vmul.f32 %v2200, 192.0
        %v2217 = vmul.f32 %v2201, 192.0
        %v2218 = vmul.f32 %v2202, 192.0
        %v2219 = vmul.f32 %v2203, 192.0
        %v2220 = vmul.f32 %v2204, 192.0
        %v2221 = vmul.f32 %v2205, 192.0
        %v2222 = vmul.f32 %v2206, 192.0
        %v2223 = vld [vmem:[#allocation13] sm:$0xff]
        %v2224 = vld [vmem:[#allocation13 + $0x8] sm:$0xff]
        %v2225 = vld [vmem:[#allocation13 + $0x10] sm:$0xff]
        %v2226 = vld [vmem:[#allocation13 + $0x18] sm:$0xff]
        %v2227 = vld [vmem:[#allocation13 + $0x20] sm:$0xff]
        %v2228 = vld [vmem:[#allocation13 + $0x28] sm:$0xff]
        %v2229 = vld [vmem:[#allocation13 + $0x30] sm:$0xff]
        %v2230 = vld [vmem:[#allocation13 + $0x38] sm:$0xff]
        %v2231 = vld [vmem:[#allocation13 + $0x40] sm:$0xff]
        %v2232 = vld [vmem:[#allocation13 + $0x48] sm:$0xff]
        %v2233 = vld [vmem:[#allocation13 + $0x50] sm:$0xff]
        %v2234 = vld [vmem:[#allocation13 + $0x58] sm:$0xff]
        %v2235 = vld [vmem:[#allocation13 + $0x60] sm:$0xff]
        %v2236 = vld [vmem:[#allocation13 + $0x68] sm:$0xff]
        %v2237 = vld [vmem:[#allocation13 + $0x70] sm:$0xff]
        %v2238 = vld [vmem:[#allocation13 + $0x78] sm:$0xff]
        %2239 = vmatprep.subr.mxu0 0.0
        %2240 = vmatpush1.msra.mxu0 %v2238
        %2241 = vmatprep.subr.mxu0 0.0
        %2242 = vmatpush1.msra.mxu0 %v2237
        %2243 = vmatprep.subr.mxu0 0.0
        %2244 = vmatpush1.msra.mxu0 %v2236
        %2245 = vmatprep.subr.mxu0 0.0
        %2246 = vmatpush1.msra.mxu0 %v2235
        %2247 = vmatprep.subr.mxu0 0.0
        %2248 = vmatpush1.msra.mxu0 %v2234
        %2249 = vmatprep.subr.mxu0 0.0
        %2250 = vmatpush1.msra.mxu0 %v2233
        %2251 = vmatprep.subr.mxu0 0.0
        %2252 = vmatpush1.msra.mxu0 %v2232
        %2253 = vmatprep.subr.mxu0 0.0
        %2254 = vmatpush1.msra.mxu0 %v2231
        %2255 = vmatprep.subr.mxu0 0.0
        %2256 = vmatpush1.msra.mxu0 %v2230
        %2257 = vmatprep.subr.mxu0 0.0
        %2258 = vmatpush1.msra.mxu0 %v2229
        %2259 = vmatprep.subr.mxu0 0.0
        %2260 = vmatpush1.msra.mxu0 %v2228
        %2261 = vmatprep.subr.mxu0 0.0
        %2262 = vmatpush1.msra.mxu0 %v2227
        %2263 = vmatprep.subr.mxu0 0.0
        %2264 = vmatpush1.msra.mxu0 %v2226
        %2265 = vmatprep.subr.mxu0 0.0
        %2266 = vmatpush1.msra.mxu0 %v2225
        %2267 = vmatprep.subr.mxu0 0.0
        %2268 = vmatpush1.msra.mxu0 %v2224
        %2269 = vmatprep.subr.mxu0 0.0
        %2270 = vmatpush1.msra.mxu0 %v2223
        %2271 = vmatprep.subr.mxu0 0.0
        %2272 = vmatpush2.msra.mxu0 0.0
        %2273 = vmatprep.subr.mxu0 0.0
        %2274 = vmatpush2.msra.mxu0 0.0
        %2275 = vmatprep.subr.mxu0 0.0
        %2276 = vmatpush2.msra.mxu0 0.0
        %2277 = vmatprep.subr.mxu0 0.0
        %2278 = vmatpush2.msra.mxu0 0.0
        %2279 = vmatprep.subr.mxu0 0.0
        %2280 = vmatpush2.msra.mxu0 0.0
        %2281 = vmatprep.subr.mxu0 0.0
        %2282 = vmatpush2.msra.mxu0 0.0
        %2283 = vmatprep.subr.mxu0 0.0
        %2284 = vmatpush2.msra.mxu0 0.0
        %2285 = vmatprep.subr.mxu0 0.0
        %2286 = vmatpush2.msra.mxu0 0.0
        %2287 = vmatprep.subr.mxu0 0.0
        %2288 = vmatpush2.msra.mxu0 0.0
        %2289 = vmatprep.subr.mxu0 0.0
        %2290 = vmatpush2.msra.mxu0 0.0
        %2291 = vmatprep.subr.mxu0 0.0
        %2292 = vmatpush2.msra.mxu0 0.0
        %2293 = vmatprep.subr.mxu0 0.0
        %2294 = vmatpush2.msra.mxu0 0.0
        %2295 = vmatprep.subr.mxu0 0.0
        %2296 = vmatpush2.msra.mxu0 0.0
        %2297 = vmatprep.subr.mxu0 0.0
        %2298 = vmatpush2.msra.mxu0 0.0
        %2299 = vmatprep.subr.mxu0 0.0
        %2300 = vmatpush2.msra.mxu0 0.0
        %2301 = vmatprep.subr.mxu0 0.0
        %2302 = vmatpush2.msra.mxu0 0.0
        %2303 = vmatprep.mubr.f32.mxu0 0.0
        %2304 = vmatmul.mubr.f32.gmra.mxu0 %v2207
        %v2305 = vpop.f32.mrf.mxu0
        %v2306 = vadd.f32 0.0, %v2305
        %v2307 = vpop.f32.mrf.mxu0
        %2308 = vmatprep.mubr.f32.mxu0 0.0
        %2309 = vmatmul.mubr.f32.gmra.mxu0 %v2208
        %v2310 = vpop.f32.mrf.mxu0
        %v2311 = vadd.f32 0.0, %v2310
        %v2312 = vpop.f32.mrf.mxu0
        %2313 = vmatprep.mubr.f32.mxu0 0.0
        %2314 = vmatmul.mubr.f32.gmra.mxu0 %v2209
        %v2315 = vpop.f32.mrf.mxu0
        %v2316 = vadd.f32 0.0, %v2315
        %v2317 = vpop.f32.mrf.mxu0
        %2318 = vmatprep.mubr.f32.mxu0 0.0
        %2319 = vmatmul.mubr.f32.gmra.mxu0 %v2210
        %v2320 = vpop.f32.mrf.mxu0
        %v2321 = vadd.f32 0.0, %v2320
        %v2322 = vpop.f32.mrf.mxu0
        %2323 = vmatprep.mubr.f32.mxu0 0.0
        %2324 = vmatmul.mubr.f32.gmra.mxu0 %v2211
        %v2325 = vpop.f32.mrf.mxu0
        %v2326 = vadd.f32 0.0, %v2325
        %v2327 = vpop.f32.mrf.mxu0
        %2328 = vmatprep.mubr.f32.mxu0 0.0
        %2329 = vmatmul.mubr.f32.gmra.mxu0 %v2212
        %v2330 = vpop.f32.mrf.mxu0
        %v2331 = vadd.f32 0.0, %v2330
        %v2332 = vpop.f32.mrf.mxu0
        %2333 = vmatprep.mubr.f32.mxu0 0.0
        %2334 = vmatmul.mubr.f32.gmra.mxu0 %v2213
        %v2335 = vpop.f32.mrf.mxu0
        %v2336 = vadd.f32 0.0, %v2335
        %v2337 = vpop.f32.mrf.mxu0
        %2338 = vmatprep.mubr.f32.mxu0 0.0
        %2339 = vmatmul.mubr.f32.gmra.mxu0 %v2214
        %v2340 = vpop.f32.mrf.mxu0
        %v2341 = vadd.f32 0.0, %v2340
        %v2342 = vpop.f32.mrf.mxu0
        %2343 = vmatprep.mubr.f32.mxu0 0.0
        %2344 = vmatmul.mubr.f32.gmra.mxu0 %v2215
        %v2345 = vpop.f32.mrf.mxu0
        %v2346 = vadd.f32 0.0, %v2345
        %v2347 = vpop.f32.mrf.mxu0
        %2348 = vmatprep.mubr.f32.mxu0 0.0
        %2349 = vmatmul.mubr.f32.gmra.mxu0 %v2216
        %v2350 = vpop.f32.mrf.mxu0
        %v2351 = vadd.f32 0.0, %v2350
        %v2352 = vpop.f32.mrf.mxu0
        %2353 = vmatprep.mubr.f32.mxu0 0.0
        %2354 = vmatmul.mubr.f32.gmra.mxu0 %v2217
        %v2355 = vpop.f32.mrf.mxu0
        %v2356 = vadd.f32 0.0, %v2355
        %v2357 = vpop.f32.mrf.mxu0
        %2358 = vmatprep.mubr.f32.mxu0 0.0
        %2359 = vmatmul.mubr.f32.gmra.mxu0 %v2218
        %v2360 = vpop.f32.mrf.mxu0
        %v2361 = vadd.f32 0.0, %v2360
        %v2362 = vpop.f32.mrf.mxu0
        %2363 = vmatprep.mubr.f32.mxu0 0.0
        %2364 = vmatmul.mubr.f32.gmra.mxu0 %v2219
        %v2365 = vpop.f32.mrf.mxu0
        %v2366 = vadd.f32 0.0, %v2365
        %v2367 = vpop.f32.mrf.mxu0
        %2368 = vmatprep.mubr.f32.mxu0 0.0
        %2369 = vmatmul.mubr.f32.gmra.mxu0 %v2220
        %v2370 = vpop.f32.mrf.mxu0
        %v2371 = vadd.f32 0.0, %v2370
        %v2372 = vpop.f32.mrf.mxu0
        %2373 = vmatprep.mubr.f32.mxu0 0.0
        %2374 = vmatmul.mubr.f32.gmra.mxu0 %v2221
        %v2375 = vpop.f32.mrf.mxu0
        %v2376 = vadd.f32 0.0, %v2375
        %v2377 = vpop.f32.mrf.mxu0
        %2378 = vmatprep.mubr.f32.mxu0 0.0
        %2379 = vmatmul.mubr.f32.gmra.mxu0 %v2222
        %v2380 = vpop.f32.mrf.mxu0
        %v2381 = vadd.f32 0.0, %v2380
        %v2382 = vpop.f32.mrf.mxu0
        %2383 = vdwg.mxu0
        %2384 = vadd.xlane.f32.xlu0 %v2306
        %v2385 = vpop.xlane.xlu0 %2384
        %2386 = vadd.xlane.f32.xlu0 %v2311
        %v2387 = vpop.xlane.xlu0 %2386
        %2388 = vadd.xlane.f32.xlu0 %v2316
        %v2389 = vpop.xlane.xlu0 %2388
        %2390 = vadd.xlane.f32.xlu0 %v2321
        %v2391 = vpop.xlane.xlu0 %2390
        %2392 = vadd.xlane.f32.xlu0 %v2326
        %v2393 = vpop.xlane.xlu0 %2392
        %2394 = vadd.xlane.f32.xlu0 %v2331
        %v2395 = vpop.xlane.xlu0 %2394
        %2396 = vadd.xlane.f32.xlu0 %v2336
        %v2397 = vpop.xlane.xlu0 %2396
        %2398 = vadd.xlane.f32.xlu0 %v2341
        %v2399 = vpop.xlane.xlu0 %2398
        %2400 = vadd.xlane.f32.xlu0 %v2346
        %v2401 = vpop.xlane.xlu0 %2400
        %2402 = vadd.xlane.f32.xlu0 %v2351
        %v2403 = vpop.xlane.xlu0 %2402
        %2404 = vadd.xlane.f32.xlu0 %v2356
        %v2405 = vpop.xlane.xlu0 %2404
        %2406 = vadd.xlane.f32.xlu0 %v2361
        %v2407 = vpop.xlane.xlu0 %2406
        %2408 = vadd.xlane.f32.xlu0 %v2366
        %v2409 = vpop.xlane.xlu0 %2408
        %2410 = vadd.xlane.f32.xlu0 %v2371
        %v2411 = vpop.xlane.xlu0 %2410
        %2412 = vadd.xlane.f32.xlu0 %v2376
        %v2413 = vpop.xlane.xlu0 %2412
        %2414 = vadd.xlane.f32.xlu0 %v2381
        %v2415 = vpop.xlane.xlu0 %2414
        %v2416 = vrcp.pop 128.0
        %v2417 = vmul.f32 %v2385, %v2416
        %v2418 = vmul.f32 %v2387, %v2416
        %v2419 = vmul.f32 %v2389, %v2416
        %v2420 = vmul.f32 %v2391, %v2416
        %v2421 = vmul.f32 %v2393, %v2416
        %v2422 = vmul.f32 %v2395, %v2416
        %v2423 = vmul.f32 %v2397, %v2416
        %v2424 = vmul.f32 %v2399, %v2416
        %v2425 = vmul.f32 %v2401, %v2416
        %v2426 = vmul.f32 %v2403, %v2416
        %v2427 = vmul.f32 %v2405, %v2416
        %v2428 = vmul.f32 %v2407, %v2416
        %v2429 = vmul.f32 %v2409, %v2416
        %v2430 = vmul.f32 %v2411, %v2416
        %v2431 = vmul.f32 %v2413, %v2416
        %v2432 = vmul.f32 %v2415, %v2416
        %v2433 = vsub.f32 %v2306, %v2417
        %v2434 = vsub.f32 %v2311, %v2418
        %v2435 = vsub.f32 %v2316, %v2419
        %v2436 = vsub.f32 %v2321, %v2420
        %v2437 = vsub.f32 %v2326, %v2421
        %v2438 = vsub.f32 %v2331, %v2422
        %v2439 = vsub.f32 %v2336, %v2423
        %v2440 = vsub.f32 %v2341, %v2424
        %v2441 = vsub.f32 %v2346, %v2425
        %v2442 = vsub.f32 %v2351, %v2426
        %v2443 = vsub.f32 %v2356, %v2427
        %v2444 = vsub.f32 %v2361, %v2428
        %v2445 = vsub.f32 %v2366, %v2429
        %v2446 = vsub.f32 %v2371, %v2430
        %v2447 = vsub.f32 %v2376, %v2431
        %v2448 = vsub.f32 %v2381, %v2432
        %v2449 = vmul.f32 %v2433, %v2433
        %v2450 = vmul.f32 %v2434, %v2434
        %v2451 = vmul.f32 %v2435, %v2435
        %v2452 = vmul.f32 %v2436, %v2436
        %v2453 = vmul.f32 %v2437, %v2437
        %v2454 = vmul.f32 %v2438, %v2438
        %v2455 = vmul.f32 %v2439, %v2439
        %v2456 = vmul.f32 %v2440, %v2440
        %v2457 = vmul.f32 %v2441, %v2441
        %v2458 = vmul.f32 %v2442, %v2442
        %v2459 = vmul.f32 %v2443, %v2443
        %v2460 = vmul.f32 %v2444, %v2444
        %v2461 = vmul.f32 %v2445, %v2445
        %v2462 = vmul.f32 %v2446, %v2446
        %v2463 = vmul.f32 %v2447, %v2447
        %v2464 = vmul.f32 %v2448, %v2448
        %2465 = vadd.xlane.f32.xlu0 %v2449
        %v2466 = vpop.xlane.xlu0 %2465
        %2467 = vadd.xlane.f32.xlu0 %v2450
        %v2468 = vpop.xlane.xlu0 %2467
        %2469 = vadd.xlane.f32.xlu0 %v2451
        %v2470 = vpop.xlane.xlu0 %2469
        %2471 = vadd.xlane.f32.xlu0 %v2452
        %v2472 = vpop.xlane.xlu0 %2471
        %2473 = vadd.xlane.f32.xlu0 %v2453
        %v2474 = vpop.xlane.xlu0 %2473
        %2475 = vadd.xlane.f32.xlu0 %v2454
        %v2476 = vpop.xlane.xlu0 %2475
        %2477 = vadd.xlane.f32.xlu0 %v2455
        %v2478 = vpop.xlane.xlu0 %2477
        %2479 = vadd.xlane.f32.xlu0 %v2456
        %v2480 = vpop.xlane.xlu0 %2479
        %2481 = vadd.xlane.f32.xlu0 %v2457
        %v2482 = vpop.xlane.xlu0 %2481
        %2483 = vadd.xlane.f32.xlu0 %v2458
        %v2484 = vpop.xlane.xlu0 %2483
        %2485 = vadd.xlane.f32.xlu0 %v2459
        %v2486 = vpop.xlane.xlu0 %2485
        %2487 = vadd.xlane.f32.xlu0 %v2460
        %v2488 = vpop.xlane.xlu0 %2487
        %2489 = vadd.xlane.f32.xlu0 %v2461
        %v2490 = vpop.xlane.xlu0 %2489
        %2491 = vadd.xlane.f32.xlu0 %v2462
        %v2492 = vpop.xlane.xlu0 %2491
        %2493 = vadd.xlane.f32.xlu0 %v2463
        %v2494 = vpop.xlane.xlu0 %2493
        %2495 = vadd.xlane.f32.xlu0 %v2464
        %v2496 = vpop.xlane.xlu0 %2495
        %v2497 = vmul.f32 %v2466, %v2416
        %v2498 = vmul.f32 %v2468, %v2416
        %v2499 = vmul.f32 %v2470, %v2416
        %v2500 = vmul.f32 %v2472, %v2416
        %v2501 = vmul.f32 %v2474, %v2416
        %v2502 = vmul.f32 %v2476, %v2416
        %v2503 = vmul.f32 %v2478, %v2416
        %v2504 = vmul.f32 %v2480, %v2416
        %v2505 = vmul.f32 %v2482, %v2416
        %v2506 = vmul.f32 %v2484, %v2416
        %v2507 = vmul.f32 %v2486, %v2416
        %v2508 = vmul.f32 %v2488, %v2416
        %v2509 = vmul.f32 %v2490, %v2416
        %v2510 = vmul.f32 %v2492, %v2416
        %v2511 = vmul.f32 %v2494, %v2416
        %v2512 = vmul.f32 %v2496, %v2416
        %v2513 = vadd.f32 %v2497, 1e-05
        %v2514 = vadd.f32 %v2498, 1e-05
        %v2515 = vadd.f32 %v2499, 1e-05
        %v2516 = vadd.f32 %v2500, 1e-05
        %v2517 = vadd.f32 %v2501, 1e-05
        %v2518 = vadd.f32 %v2502, 1e-05
        %v2519 = vadd.f32 %v2503, 1e-05
        %v2520 = vadd.f32 %v2504, 1e-05
        %v2521 = vadd.f32 %v2505, 1e-05
        %v2522 = vadd.f32 %v2506, 1e-05
        %v2523 = vadd.f32 %v2507, 1e-05
        %v2524 = vadd.f32 %v2508, 1e-05
        %v2525 = vadd.f32 %v2509, 1e-05
        %v2526 = vadd.f32 %v2510, 1e-05
        %v2527 = vadd.f32 %v2511, 1e-05
        %v2528 = vadd.f32 %v2512, 1e-05
        %v2529 = vrsqrt.pop %v2513
        %v2530 = vrsqrt.pop %v2514
        %v2531 = vrsqrt.pop %v2515
        %v2532 = vrsqrt.pop %v2516
        %v2533 = vrsqrt.pop %v2517
        %v2534 = vrsqrt.pop %v2518
        %v2535 = vrsqrt.pop %v2519
        %v2536 = vrsqrt.pop %v2520
        %v2537 = vrsqrt.pop %v2521
        %v2538 = vrsqrt.pop %v2522
        %v2539 = vrsqrt.pop %v2523
        %v2540 = vrsqrt.pop %v2524
        %v2541 = vrsqrt.pop %v2525
        %v2542 = vrsqrt.pop %v2526
        %v2543 = vrsqrt.pop %v2527
        %v2544 = vrsqrt.pop %v2528
        %v2545 = vmul.f32 %v2433, %v2529
        %v2546 = vmul.f32 %v2434, %v2530
        %v2547 = vmul.f32 %v2435, %v2531
        %v2548 = vmul.f32 %v2436, %v2532
        %v2549 = vmul.f32 %v2437, %v2533
        %v2550 = vmul.f32 %v2438, %v2534
        %v2551 = vmul.f32 %v2439, %v2535
        %v2552 = vmul.f32 %v2440, %v2536
        %v2553 = vmul.f32 %v2441, %v2537
        %v2554 = vmul.f32 %v2442, %v2538
        %v2555 = vmul.f32 %v2443, %v2539
        %v2556 = vmul.f32 %v2444, %v2540
        %v2557 = vmul.f32 %v2445, %v2541
        %v2558 = vmul.f32 %v2446, %v2542
        %v2559 = vmul.f32 %v2447, %v2543
        %v2560 = vmul.f32 %v2448, %v2544
        %v2561 = vld [vmem:[%s10] sm:$0x1]
        %v2563 = vlaneseq
        %v2564 = vshrl.u32 %v2563, 7
        %v2565 = vsub.s32 0, %v2564
        %v2566 = vrot.slane %v2561, %v2565
        %v2568 = vmul.f32 %v2545, %v2566
        %v2569 = vmul.f32 %v2546, %v2566
        %v2570 = vmul.f32 %v2547, %v2566
        %v2571 = vmul.f32 %v2548, %v2566
        %v2572 = vmul.f32 %v2549, %v2566
        %v2573 = vmul.f32 %v2550, %v2566
        %v2574 = vmul.f32 %v2551, %v2566
        %v2575 = vmul.f32 %v2552, %v2566
        %v2576 = vmul.f32 %v2553, %v2566
        %v2577 = vmul.f32 %v2554, %v2566
        %v2578 = vmul.f32 %v2555, %v2566
        %v2579 = vmul.f32 %v2556, %v2566
        %v2580 = vmul.f32 %v2557, %v2566
        %v2581 = vmul.f32 %v2558, %v2566
        %v2582 = vmul.f32 %v2559, %v2566
        %v2583 = vmul.f32 %v2560, %v2566
        %v2584 = vld [vmem:[%s11] sm:$0x1]
        %v2586 = vlaneseq
        %v2587 = vshrl.u32 %v2586, 7
        %v2588 = vsub.s32 0, %v2587
        %v2589 = vrot.slane %v2584, %v2588
        %v2591 = vadd.f32 %v2568, %v2589
        %v2592 = vadd.f32 %v2569, %v2589
        %v2593 = vadd.f32 %v2570, %v2589
        %v2594 = vadd.f32 %v2571, %v2589
        %v2595 = vadd.f32 %v2572, %v2589
        %v2596 = vadd.f32 %v2573, %v2589
        %v2597 = vadd.f32 %v2574, %v2589
        %v2598 = vadd.f32 %v2575, %v2589
        %v2599 = vadd.f32 %v2576, %v2589
        %v2600 = vadd.f32 %v2577, %v2589
        %v2601 = vadd.f32 %v2578, %v2589
        %v2602 = vadd.f32 %v2579, %v2589
        %v2603 = vadd.f32 %v2580, %v2589
        %v2604 = vadd.f32 %v2581, %v2589
        %v2605 = vadd.f32 %v2582, %v2589
        %v2606 = vadd.f32 %v2583, %v2589
        %v2607 = vld [vmem:[#allocation15] sm:$0xff]
        %v2608 = vld [vmem:[#allocation15 + $0x8] sm:$0xff]
        %v2609 = vld [vmem:[#allocation15 + $0x10] sm:$0xff]
        %v2610 = vld [vmem:[#allocation15 + $0x18] sm:$0xff]
        %v2611 = vld [vmem:[#allocation15 + $0x20] sm:$0xff]
        %v2612 = vld [vmem:[#allocation15 + $0x28] sm:$0xff]
        %v2613 = vld [vmem:[#allocation15 + $0x30] sm:$0xff]
        %v2614 = vld [vmem:[#allocation15 + $0x38] sm:$0xff]
        %v2615 = vld [vmem:[#allocation15 + $0x40] sm:$0xff]
        %v2616 = vld [vmem:[#allocation15 + $0x48] sm:$0xff]
        %v2617 = vld [vmem:[#allocation15 + $0x50] sm:$0xff]
        %v2618 = vld [vmem:[#allocation15 + $0x58] sm:$0xff]
        %v2619 = vld [vmem:[#allocation15 + $0x60] sm:$0xff]
        %v2620 = vld [vmem:[#allocation15 + $0x68] sm:$0xff]
        %v2621 = vld [vmem:[#allocation15 + $0x70] sm:$0xff]
        %v2622 = vld [vmem:[#allocation15 + $0x78] sm:$0xff]
        %v2623 = vld [vmem:[#allocation15 + $0x80] sm:$0xff]
        %v2624 = vld [vmem:[#allocation15 + $0x88] sm:$0xff]
        %v2625 = vld [vmem:[#allocation15 + $0x90] sm:$0xff]
        %v2626 = vld [vmem:[#allocation15 + $0x98] sm:$0xff]
        %v2627 = vld [vmem:[#allocation15 + $0xa0] sm:$0xff]
        %v2628 = vld [vmem:[#allocation15 + $0xa8] sm:$0xff]
        %v2629 = vld [vmem:[#allocation15 + $0xb0] sm:$0xff]
        %v2630 = vld [vmem:[#allocation15 + $0xb8] sm:$0xff]
        %v2631 = vld [vmem:[#allocation15 + $0xc0] sm:$0xff]
        %v2632 = vld [vmem:[#allocation15 + $0xc8] sm:$0xff]
        %v2633 = vld [vmem:[#allocation15 + $0xd0] sm:$0xff]
        %v2634 = vld [vmem:[#allocation15 + $0xd8] sm:$0xff]
        %v2635 = vld [vmem:[#allocation15 + $0xe0] sm:$0xff]
        %v2636 = vld [vmem:[#allocation15 + $0xe8] sm:$0xff]
        %v2637 = vld [vmem:[#allocation15 + $0xf0] sm:$0xff]
        %v2638 = vld [vmem:[#allocation15 + $0xf8] sm:$0xff]
        %v2639 = vld [vmem:[#allocation16] sm:$0xff]
        %v2640 = vld [vmem:[#allocation16 + $0x8] sm:$0xff]
        %v2641 = vld [vmem:[#allocation16 + $0x10] sm:$0xff]
        %v2642 = vld [vmem:[#allocation16 + $0x18] sm:$0xff]
        %v2643 = vld [vmem:[#allocation16 + $0x20] sm:$0xff]
        %v2644 = vld [vmem:[#allocation16 + $0x28] sm:$0xff]
        %v2645 = vld [vmem:[#allocation16 + $0x30] sm:$0xff]
        %v2646 = vld [vmem:[#allocation16 + $0x38] sm:$0xff]
        %v2647 = vld [vmem:[#allocation16 + $0x40] sm:$0xff]
        %v2648 = vld [vmem:[#allocation16 + $0x48] sm:$0xff]
        %v2649 = vld [vmem:[#allocation16 + $0x50] sm:$0xff]
        %v2650 = vld [vmem:[#allocation16 + $0x58] sm:$0xff]
        %v2651 = vld [vmem:[#allocation16 + $0x60] sm:$0xff]
        %v2652 = vld [vmem:[#allocation16 + $0x68] sm:$0xff]
        %v2653 = vld [vmem:[#allocation16 + $0x70] sm:$0xff]
        %v2654 = vld [vmem:[#allocation16 + $0x78] sm:$0xff]
        %v2655 = vld [vmem:[#allocation16 + $0x80] sm:$0xff]
        %v2656 = vld [vmem:[#allocation16 + $0x88] sm:$0xff]
        %v2657 = vld [vmem:[#allocation16 + $0x90] sm:$0xff]
        %v2658 = vld [vmem:[#allocation16 + $0x98] sm:$0xff]
        %v2659 = vld [vmem:[#allocation16 + $0xa0] sm:$0xff]
        %v2660 = vld [vmem:[#allocation16 + $0xa8] sm:$0xff]
        %v2661 = vld [vmem:[#allocation16 + $0xb0] sm:$0xff]
        %v2662 = vld [vmem:[#allocation16 + $0xb8] sm:$0xff]
        %v2663 = vld [vmem:[#allocation16 + $0xc0] sm:$0xff]
        %v2664 = vld [vmem:[#allocation16 + $0xc8] sm:$0xff]
        %v2665 = vld [vmem:[#allocation16 + $0xd0] sm:$0xff]
        %v2666 = vld [vmem:[#allocation16 + $0xd8] sm:$0xff]
        %v2667 = vld [vmem:[#allocation16 + $0xe0] sm:$0xff]
        %v2668 = vld [vmem:[#allocation16 + $0xe8] sm:$0xff]
        %v2669 = vld [vmem:[#allocation16 + $0xf0] sm:$0xff]
        %v2670 = vld [vmem:[#allocation16 + $0xf8] sm:$0xff]
        %2671 = vmatprep.subr.mxu0 %v2670
        %2672 = vmatpush1.msra.mxu0 %v2669
        %2673 = vmatprep.subr.mxu0 %v2668
        %2674 = vmatpush1.msra.mxu0 %v2667
        %2675 = vmatprep.subr.mxu0 %v2666
        %2676 = vmatpush1.msra.mxu0 %v2665
        %2677 = vmatprep.subr.mxu0 %v2664
        %2678 = vmatpush1.msra.mxu0 %v2663
        %2679 = vmatprep.subr.mxu0 %v2662
        %2680 = vmatpush1.msra.mxu0 %v2661
        %2681 = vmatprep.subr.mxu0 %v2660
        %2682 = vmatpush1.msra.mxu0 %v2659
        %2683 = vmatprep.subr.mxu0 %v2658
        %2684 = vmatpush1.msra.mxu0 %v2657
        %2685 = vmatprep.subr.mxu0 %v2656
        %2686 = vmatpush1.msra.mxu0 %v2655
        %2687 = vmatprep.subr.mxu0 %v2654
        %2688 = vmatpush1.msra.mxu0 %v2653
        %2689 = vmatprep.subr.mxu0 %v2652
        %2690 = vmatpush1.msra.mxu0 %v2651
        %2691 = vmatprep.subr.mxu0 %v2650
        %2692 = vmatpush1.msra.mxu0 %v2649
        %2693 = vmatprep.subr.mxu0 %v2648
        %2694 = vmatpush1.msra.mxu0 %v2647
        %2695 = vmatprep.subr.mxu0 %v2646
        %2696 = vmatpush1.msra.mxu0 %v2645
        %2697 = vmatprep.subr.mxu0 %v2644
        %2698 = vmatpush1.msra.mxu0 %v2643
        %2699 = vmatprep.subr.mxu0 %v2642
        %2700 = vmatpush1.msra.mxu0 %v2641
        %2701 = vmatprep.subr.mxu0 %v2640
        %2702 = vmatpush1.msra.mxu0 %v2639
        %2703 = vmatprep.subr.mxu0 0.0
        %2704 = vmatpush2.msra.mxu0 0.0
        %2705 = vmatprep.subr.mxu0 0.0
        %2706 = vmatpush2.msra.mxu0 0.0
        %2707 = vmatprep.subr.mxu0 0.0
        %2708 = vmatpush2.msra.mxu0 0.0
        %2709 = vmatprep.subr.mxu0 0.0
        %2710 = vmatpush2.msra.mxu0 0.0
        %2711 = vmatprep.subr.mxu0 0.0
        %2712 = vmatpush2.msra.mxu0 0.0
        %2713 = vmatprep.subr.mxu0 0.0
        %2714 = vmatpush2.msra.mxu0 0.0
        %2715 = vmatprep.subr.mxu0 0.0
        %2716 = vmatpush2.msra.mxu0 0.0
        %2717 = vmatprep.subr.mxu0 0.0
        %2718 = vmatpush2.msra.mxu0 0.0
        %2719 = vmatprep.subr.mxu0 0.0
        %2720 = vmatpush2.msra.mxu0 0.0
        %2721 = vmatprep.subr.mxu0 0.0
        %2722 = vmatpush2.msra.mxu0 0.0
        %2723 = vmatprep.subr.mxu0 0.0
        %2724 = vmatpush2.msra.mxu0 0.0
        %2725 = vmatprep.subr.mxu0 0.0
        %2726 = vmatpush2.msra.mxu0 0.0
        %2727 = vmatprep.subr.mxu0 0.0
        %2728 = vmatpush2.msra.mxu0 0.0
        %2729 = vmatprep.subr.mxu0 0.0
        %2730 = vmatpush2.msra.mxu0 0.0
        %2731 = vmatprep.subr.mxu0 0.0
        %2732 = vmatpush2.msra.mxu0 0.0
        %2733 = vmatprep.subr.mxu0 0.0
        %2734 = vmatpush2.msra.mxu0 0.0
        %2735 = vmatprep.mubr.f32.mxu0 0.0
        %2736 = vmatmul.mubr.f32.gmra.mxu0 %v2591
        %v2737 = vpop.f32.mrf.mxu0
        %v2738 = vadd.f32 0.0, %v2737
        %v2739 = vpop.f32.mrf.mxu0
        %v2740 = vadd.f32 0.0, %v2739
        %2741 = vmatprep.mubr.f32.mxu0 0.0
        %2742 = vmatmul.mubr.f32.gmra.mxu0 %v2592
        %v2743 = vpop.f32.mrf.mxu0
        %v2744 = vadd.f32 0.0, %v2743
        %v2745 = vpop.f32.mrf.mxu0
        %v2746 = vadd.f32 0.0, %v2745
        %2747 = vmatprep.mubr.f32.mxu0 0.0
        %2748 = vmatmul.mubr.f32.gmra.mxu0 %v2593
        %v2749 = vpop.f32.mrf.mxu0
        %v2750 = vadd.f32 0.0, %v2749
        %v2751 = vpop.f32.mrf.mxu0
        %v2752 = vadd.f32 0.0, %v2751
        %2753 = vmatprep.mubr.f32.mxu0 0.0
        %2754 = vmatmul.mubr.f32.gmra.mxu0 %v2594
        %v2755 = vpop.f32.mrf.mxu0
        %v2756 = vadd.f32 0.0, %v2755
        %v2757 = vpop.f32.mrf.mxu0
        %v2758 = vadd.f32 0.0, %v2757
        %2759 = vmatprep.mubr.f32.mxu0 0.0
        %2760 = vmatmul.mubr.f32.gmra.mxu0 %v2595
        %v2761 = vpop.f32.mrf.mxu0
        %v2762 = vadd.f32 0.0, %v2761
        %v2763 = vpop.f32.mrf.mxu0
        %v2764 = vadd.f32 0.0, %v2763
        %2765 = vmatprep.mubr.f32.mxu0 0.0
        %2766 = vmatmul.mubr.f32.gmra.mxu0 %v2596
        %v2767 = vpop.f32.mrf.mxu0
        %v2768 = vadd.f32 0.0, %v2767
        %v2769 = vpop.f32.mrf.mxu0
        %v2770 = vadd.f32 0.0, %v2769
        %2771 = vmatprep.mubr.f32.mxu0 0.0
        %2772 = vmatmul.mubr.f32.gmra.mxu0 %v2597
        %v2773 = vpop.f32.mrf.mxu0
        %v2774 = vadd.f32 0.0, %v2773
        %v2775 = vpop.f32.mrf.mxu0
        %v2776 = vadd.f32 0.0, %v2775
        %2777 = vmatprep.mubr.f32.mxu0 0.0
        %2778 = vmatmul.mubr.f32.gmra.mxu0 %v2598
        %v2779 = vpop.f32.mrf.mxu0
        %v2780 = vadd.f32 0.0, %v2779
        %v2781 = vpop.f32.mrf.mxu0
        %v2782 = vadd.f32 0.0, %v2781
        %2783 = vmatprep.mubr.f32.mxu0 0.0
        %2784 = vmatmul.mubr.f32.gmra.mxu0 %v2599
        %v2785 = vpop.f32.mrf.mxu0
        %v2786 = vadd.f32 0.0, %v2785
        %v2787 = vpop.f32.mrf.mxu0
        %v2788 = vadd.f32 0.0, %v2787
        %2789 = vmatprep.mubr.f32.mxu0 0.0
        %2790 = vmatmul.mubr.f32.gmra.mxu0 %v2600
        %v2791 = vpop.f32.mrf.mxu0
        %v2792 = vadd.f32 0.0, %v2791
        %v2793 = vpop.f32.mrf.mxu0
        %v2794 = vadd.f32 0.0, %v2793
        %2795 = vmatprep.mubr.f32.mxu0 0.0
        %2796 = vmatmul.mubr.f32.gmra.mxu0 %v2601
        %v2797 = vpop.f32.mrf.mxu0
        %v2798 = vadd.f32 0.0, %v2797
        %v2799 = vpop.f32.mrf.mxu0
        %v2800 = vadd.f32 0.0, %v2799
        %2801 = vmatprep.mubr.f32.mxu0 0.0
        %2802 = vmatmul.mubr.f32.gmra.mxu0 %v2602
        %v2803 = vpop.f32.mrf.mxu0
        %v2804 = vadd.f32 0.0, %v2803
        %v2805 = vpop.f32.mrf.mxu0
        %v2806 = vadd.f32 0.0, %v2805
        %2807 = vmatprep.mubr.f32.mxu0 0.0
        %2808 = vmatmul.mubr.f32.gmra.mxu0 %v2603
        %v2809 = vpop.f32.mrf.mxu0
        %v2810 = vadd.f32 0.0, %v2809
        %v2811 = vpop.f32.mrf.mxu0
        %v2812 = vadd.f32 0.0, %v2811
        %2813 = vmatprep.mubr.f32.mxu0 0.0
        %2814 = vmatmul.mubr.f32.gmra.mxu0 %v2604
        %v2815 = vpop.f32.mrf.mxu0
        %v2816 = vadd.f32 0.0, %v2815
        %v2817 = vpop.f32.mrf.mxu0
        %v2818 = vadd.f32 0.0, %v2817
        %2819 = vmatprep.mubr.f32.mxu0 0.0
        %2820 = vmatmul.mubr.f32.gmra.mxu0 %v2605
        %v2821 = vpop.f32.mrf.mxu0
        %v2822 = vadd.f32 0.0, %v2821
        %v2823 = vpop.f32.mrf.mxu0
        %v2824 = vadd.f32 0.0, %v2823
        %2825 = vmatprep.mubr.f32.mxu0 0.0
        %2826 = vmatmul.mubr.f32.gmra.mxu0 %v2606
        %v2827 = vpop.f32.mrf.mxu0
        %v2828 = vadd.f32 0.0, %v2827
        %v2829 = vpop.f32.mrf.mxu0
        %v2830 = vadd.f32 0.0, %v2829
        %2831 = vdwg.mxu0
        %2832 = vmatprep.subr.mxu0 %v2638
        %2833 = vmatpush1.msra.mxu0 %v2637
        %2834 = vmatprep.subr.mxu0 %v2636
        %2835 = vmatpush1.msra.mxu0 %v2635
        %2836 = vmatprep.subr.mxu0 %v2634
        %2837 = vmatpush1.msra.mxu0 %v2633
        %2838 = vmatprep.subr.mxu0 %v2632
        %2839 = vmatpush1.msra.mxu0 %v2631
        %2840 = vmatprep.subr.mxu0 %v2630
        %2841 = vmatpush1.msra.mxu0 %v2629
        %2842 = vmatprep.subr.mxu0 %v2628
        %2843 = vmatpush1.msra.mxu0 %v2627
        %2844 = vmatprep.subr.mxu0 %v2626
        %2845 = vmatpush1.msra.mxu0 %v2625
        %2846 = vmatprep.subr.mxu0 %v2624
        %2847 = vmatpush1.msra.mxu0 %v2623
        %2848 = vmatprep.subr.mxu0 %v2622
        %2849 = vmatpush1.msra.mxu0 %v2621
        %2850 = vmatprep.subr.mxu0 %v2620
        %2851 = vmatpush1.msra.mxu0 %v2619
        %2852 = vmatprep.subr.mxu0 %v2618
        %2853 = vmatpush1.msra.mxu0 %v2617
        %2854 = vmatprep.subr.mxu0 %v2616
        %2855 = vmatpush1.msra.mxu0 %v2615
        %2856 = vmatprep.subr.mxu0 %v2614
        %2857 = vmatpush1.msra.mxu0 %v2613
        %2858 = vmatprep.subr.mxu0 %v2612
        %2859 = vmatpush1.msra.mxu0 %v2611
        %2860 = vmatprep.subr.mxu0 %v2610
        %2861 = vmatpush1.msra.mxu0 %v2609
        %2862 = vmatprep.subr.mxu0 %v2608
        %2863 = vmatpush1.msra.mxu0 %v2607
        %2864 = vmatprep.subr.mxu0 0.0
        %2865 = vmatpush2.msra.mxu0 0.0
        %2866 = vmatprep.subr.mxu0 0.0
        %2867 = vmatpush2.msra.mxu0 0.0
        %2868 = vmatprep.subr.mxu0 0.0
        %2869 = vmatpush2.msra.mxu0 0.0
        %2870 = vmatprep.subr.mxu0 0.0
        %2871 = vmatpush2.msra.mxu0 0.0
        %2872 = vmatprep.subr.mxu0 0.0
        %2873 = vmatpush2.msra.mxu0 0.0
        %2874 = vmatprep.subr.mxu0 0.0
        %2875 = vmatpush2.msra.mxu0 0.0
        %2876 = vmatprep.subr.mxu0 0.0
        %2877 = vmatpush2.msra.mxu0 0.0
        %2878 = vmatprep.subr.mxu0 0.0
        %2879 = vmatpush2.msra.mxu0 0.0
        %2880 = vmatprep.subr.mxu0 0.0
        %2881 = vmatpush2.msra.mxu0 0.0
        %2882 = vmatprep.subr.mxu0 0.0
        %2883 = vmatpush2.msra.mxu0 0.0
        %2884 = vmatprep.subr.mxu0 0.0
        %2885 = vmatpush2.msra.mxu0 0.0
        %2886 = vmatprep.subr.mxu0 0.0
        %2887 = vmatpush2.msra.mxu0 0.0
        %2888 = vmatprep.subr.mxu0 0.0
        %2889 = vmatpush2.msra.mxu0 0.0
        %2890 = vmatprep.subr.mxu0 0.0
        %2891 = vmatpush2.msra.mxu0 0.0
        %2892 = vmatprep.subr.mxu0 0.0
        %2893 = vmatpush2.msra.mxu0 0.0
        %2894 = vmatprep.subr.mxu0 0.0
        %2895 = vmatpush2.msra.mxu0 0.0
        %2896 = vmatprep.mubr.f32.mxu0 0.0
        %2897 = vmatmul.mubr.f32.gmra.mxu0 %v1573
        %v2898 = vpop.f32.mrf.mxu0
        %v2899 = vadd.f32 %v2738, %v2898
        %v2900 = vpop.f32.mrf.mxu0
        %v2901 = vadd.f32 %v2740, %v2900
        %2902 = vmatprep.mubr.f32.mxu0 0.0
        %2903 = vmatmul.mubr.f32.gmra.mxu0 %v1574
        %v2904 = vpop.f32.mrf.mxu0
        %v2905 = vadd.f32 %v2744, %v2904
        %v2906 = vpop.f32.mrf.mxu0
        %v2907 = vadd.f32 %v2746, %v2906
        %2908 = vmatprep.mubr.f32.mxu0 0.0
        %2909 = vmatmul.mubr.f32.gmra.mxu0 %v1575
        %v2910 = vpop.f32.mrf.mxu0
        %v2911 = vadd.f32 %v2750, %v2910
        %v2912 = vpop.f32.mrf.mxu0
        %v2913 = vadd.f32 %v2752, %v2912
        %2914 = vmatprep.mubr.f32.mxu0 0.0
        %2915 = vmatmul.mubr.f32.gmra.mxu0 %v1576
        %v2916 = vpop.f32.mrf.mxu0
        %v2917 = vadd.f32 %v2756, %v2916
        %v2918 = vpop.f32.mrf.mxu0
        %v2919 = vadd.f32 %v2758, %v2918
        %2920 = vmatprep.mubr.f32.mxu0 0.0
        %2921 = vmatmul.mubr.f32.gmra.mxu0 %v1577
        %v2922 = vpop.f32.mrf.mxu0
        %v2923 = vadd.f32 %v2762, %v2922
        %v2924 = vpop.f32.mrf.mxu0
        %v2925 = vadd.f32 %v2764, %v2924
        %2926 = vmatprep.mubr.f32.mxu0 0.0
        %2927 = vmatmul.mubr.f32.gmra.mxu0 %v1578
        %v2928 = vpop.f32.mrf.mxu0
        %v2929 = vadd.f32 %v2768, %v2928
        %v2930 = vpop.f32.mrf.mxu0
        %v2931 = vadd.f32 %v2770, %v2930
        %2932 = vmatprep.mubr.f32.mxu0 0.0
        %2933 = vmatmul.mubr.f32.gmra.mxu0 %v1579
        %v2934 = vpop.f32.mrf.mxu0
        %v2935 = vadd.f32 %v2774, %v2934
        %v2936 = vpop.f32.mrf.mxu0
        %v2937 = vadd.f32 %v2776, %v2936
        %2938 = vmatprep.mubr.f32.mxu0 0.0
        %2939 = vmatmul.mubr.f32.gmra.mxu0 %v1580
        %v2940 = vpop.f32.mrf.mxu0
        %v2941 = vadd.f32 %v2780, %v2940
        %v2942 = vpop.f32.mrf.mxu0
        %v2943 = vadd.f32 %v2782, %v2942
        %2944 = vmatprep.mubr.f32.mxu0 0.0
        %2945 = vmatmul.mubr.f32.gmra.mxu0 %v1581
        %v2946 = vpop.f32.mrf.mxu0
        %v2947 = vadd.f32 %v2786, %v2946
        %v2948 = vpop.f32.mrf.mxu0
        %v2949 = vadd.f32 %v2788, %v2948
        %2950 = vmatprep.mubr.f32.mxu0 0.0
        %2951 = vmatmul.mubr.f32.gmra.mxu0 %v1582
        %v2952 = vpop.f32.mrf.mxu0
        %v2953 = vadd.f32 %v2792, %v2952
        %v2954 = vpop.f32.mrf.mxu0
        %v2955 = vadd.f32 %v2794, %v2954
        %2956 = vmatprep.mubr.f32.mxu0 0.0
        %2957 = vmatmul.mubr.f32.gmra.mxu0 %v1583
        %v2958 = vpop.f32.mrf.mxu0
        %v2959 = vadd.f32 %v2798, %v2958
        %v2960 = vpop.f32.mrf.mxu0
        %v2961 = vadd.f32 %v2800, %v2960
        %2962 = vmatprep.mubr.f32.mxu0 0.0
        %2963 = vmatmul.mubr.f32.gmra.mxu0 %v1584
        %v2964 = vpop.f32.mrf.mxu0
        %v2965 = vadd.f32 %v2804, %v2964
        %v2966 = vpop.f32.mrf.mxu0
        %v2967 = vadd.f32 %v2806, %v2966
        %2968 = vmatprep.mubr.f32.mxu0 0.0
        %2969 = vmatmul.mubr.f32.gmra.mxu0 %v1585
        %v2970 = vpop.f32.mrf.mxu0
        %v2971 = vadd.f32 %v2810, %v2970
        %v2972 = vpop.f32.mrf.mxu0
        %v2973 = vadd.f32 %v2812, %v2972
        %2974 = vmatprep.mubr.f32.mxu0 0.0
        %2975 = vmatmul.mubr.f32.gmra.mxu0 %v1586
        %v2976 = vpop.f32.mrf.mxu0
        %v2977 = vadd.f32 %v2816, %v2976
        %v2978 = vpop.f32.mrf.mxu0
        %v2979 = vadd.f32 %v2818, %v2978
        %2980 = vmatprep.mubr.f32.mxu0 0.0
        %2981 = vmatmul.mubr.f32.gmra.mxu0 %v1587
        %v2982 = vpop.f32.mrf.mxu0
        %v2983 = vadd.f32 %v2822, %v2982
        %v2984 = vpop.f32.mrf.mxu0
        %v2985 = vadd.f32 %v2824, %v2984
        %2986 = vmatprep.mubr.f32.mxu0 0.0
        %2987 = vmatmul.mubr.f32.gmra.mxu0 %v1588
        %v2988 = vpop.f32.mrf.mxu0
        %v2989 = vadd.f32 %v2828, %v2988
        %v2990 = vpop.f32.mrf.mxu0
        %v2991 = vadd.f32 %v2830, %v2990
        %2992 = vdwg.mxu0
        %v2993 = vmax.f32 %v2899, 0.0
        %v2994 = vmax.f32 %v2901, 0.0
        %v2995 = vmax.f32 %v2905, 0.0
        %v2996 = vmax.f32 %v2907, 0.0
        %v2997 = vmax.f32 %v2911, 0.0
        %v2998 = vmax.f32 %v2913, 0.0
        %v2999 = vmax.f32 %v2917, 0.0
        %v3000 = vmax.f32 %v2919, 0.0
        %v3001 = vmax.f32 %v2923, 0.0
        %v3002 = vmax.f32 %v2925, 0.0
        %v3003 = vmax.f32 %v2929, 0.0
        %v3004 = vmax.f32 %v2931, 0.0
        %v3005 = vmax.f32 %v2935, 0.0
        %v3006 = vmax.f32 %v2937, 0.0
        %v3007 = vmax.f32 %v2941, 0.0
        %v3008 = vmax.f32 %v2943, 0.0
        %v3009 = vmax.f32 %v2947, 0.0
        %v3010 = vmax.f32 %v2949, 0.0
        %v3011 = vmax.f32 %v2953, 0.0
        %v3012 = vmax.f32 %v2955, 0.0
        %v3013 = vmax.f32 %v2959, 0.0
        %v3014 = vmax.f32 %v2961, 0.0
        %v3015 = vmax.f32 %v2965, 0.0
        %v3016 = vmax.f32 %v2967, 0.0
        %v3017 = vmax.f32 %v2971, 0.0
        %v3018 = vmax.f32 %v2973, 0.0
        %v3019 = vmax.f32 %v2977, 0.0
        %v3020 = vmax.f32 %v2979, 0.0
        %v3021 = vmax.f32 %v2983, 0.0
        %v3022 = vmax.f32 %v2985, 0.0
        %v3023 = vmax.f32 %v2989, 0.0
        %v3024 = vmax.f32 %v2991, 0.0
        %v3025 = vld [vmem:[#allocation18] sm:$0xff]
        %v3026 = vld [vmem:[#allocation18 + $0x8] sm:$0xff]
        %v3027 = vld [vmem:[#allocation18 + $0x10] sm:$0xff]
        %v3028 = vld [vmem:[#allocation18 + $0x18] sm:$0xff]
        %v3029 = vld [vmem:[#allocation18 + $0x20] sm:$0xff]
        %v3030 = vld [vmem:[#allocation18 + $0x28] sm:$0xff]
        %v3031 = vld [vmem:[#allocation18 + $0x30] sm:$0xff]
        %v3032 = vld [vmem:[#allocation18 + $0x38] sm:$0xff]
        %v3033 = vld [vmem:[#allocation18 + $0x40] sm:$0xff]
        %v3034 = vld [vmem:[#allocation18 + $0x48] sm:$0xff]
        %v3035 = vld [vmem:[#allocation18 + $0x50] sm:$0xff]
        %v3036 = vld [vmem:[#allocation18 + $0x58] sm:$0xff]
        %v3037 = vld [vmem:[#allocation18 + $0x60] sm:$0xff]
        %v3038 = vld [vmem:[#allocation18 + $0x68] sm:$0xff]
        %v3039 = vld [vmem:[#allocation18 + $0x70] sm:$0xff]
        %v3040 = vld [vmem:[#allocation18 + $0x78] sm:$0xff]
        %v3041 = vld [vmem:[#allocation18 + $0x80] sm:$0xff]
        %v3042 = vld [vmem:[#allocation18 + $0x88] sm:$0xff]
        %v3043 = vld [vmem:[#allocation18 + $0x90] sm:$0xff]
        %v3044 = vld [vmem:[#allocation18 + $0x98] sm:$0xff]
        %v3045 = vld [vmem:[#allocation18 + $0xa0] sm:$0xff]
        %v3046 = vld [vmem:[#allocation18 + $0xa8] sm:$0xff]
        %v3047 = vld [vmem:[#allocation18 + $0xb0] sm:$0xff]
        %v3048 = vld [vmem:[#allocation18 + $0xb8] sm:$0xff]
        %v3049 = vld [vmem:[#allocation18 + $0xc0] sm:$0xff]
        %v3050 = vld [vmem:[#allocation18 + $0xc8] sm:$0xff]
        %v3051 = vld [vmem:[#allocation18 + $0xd0] sm:$0xff]
        %v3052 = vld [vmem:[#allocation18 + $0xd8] sm:$0xff]
        %v3053 = vld [vmem:[#allocation18 + $0xe0] sm:$0xff]
        %v3054 = vld [vmem:[#allocation18 + $0xe8] sm:$0xff]
        %v3055 = vld [vmem:[#allocation18 + $0xf0] sm:$0xff]
        %v3056 = vld [vmem:[#allocation18 + $0xf8] sm:$0xff]
        %3057 = vmatprep.subr.mxu0 0.0
        %3058 = vmatpush1.msra.mxu0 %v3040
        %3059 = vmatprep.subr.mxu0 0.0
        %3060 = vmatpush1.msra.mxu0 %v3039
        %3061 = vmatprep.subr.mxu0 0.0
        %3062 = vmatpush1.msra.mxu0 %v3038
        %3063 = vmatprep.subr.mxu0 0.0
        %3064 = vmatpush1.msra.mxu0 %v3037
        %3065 = vmatprep.subr.mxu0 0.0
        %3066 = vmatpush1.msra.mxu0 %v3036
        %3067 = vmatprep.subr.mxu0 0.0
        %3068 = vmatpush1.msra.mxu0 %v3035
        %3069 = vmatprep.subr.mxu0 0.0
        %3070 = vmatpush1.msra.mxu0 %v3034
        %3071 = vmatprep.subr.mxu0 0.0
        %3072 = vmatpush1.msra.mxu0 %v3033
        %3073 = vmatprep.subr.mxu0 0.0
        %3074 = vmatpush1.msra.mxu0 %v3032
        %3075 = vmatprep.subr.mxu0 0.0
        %3076 = vmatpush1.msra.mxu0 %v3031
        %3077 = vmatprep.subr.mxu0 0.0
        %3078 = vmatpush1.msra.mxu0 %v3030
        %3079 = vmatprep.subr.mxu0 0.0
        %3080 = vmatpush1.msra.mxu0 %v3029
        %3081 = vmatprep.subr.mxu0 0.0
        %3082 = vmatpush1.msra.mxu0 %v3028
        %3083 = vmatprep.subr.mxu0 0.0
        %3084 = vmatpush1.msra.mxu0 %v3027
        %3085 = vmatprep.subr.mxu0 0.0
        %3086 = vmatpush1.msra.mxu0 %v3026
        %3087 = vmatprep.subr.mxu0 0.0
        %3088 = vmatpush1.msra.mxu0 %v3025
        %3089 = vmatprep.subr.mxu0 0.0
        %3090 = vmatpush2.msra.mxu0 %v3056
        %3091 = vmatprep.subr.mxu0 0.0
        %3092 = vmatpush2.msra.mxu0 %v3055
        %3093 = vmatprep.subr.mxu0 0.0
        %3094 = vmatpush2.msra.mxu0 %v3054
        %3095 = vmatprep.subr.mxu0 0.0
        %3096 = vmatpush2.msra.mxu0 %v3053
        %3097 = vmatprep.subr.mxu0 0.0
        %3098 = vmatpush2.msra.mxu0 %v3052
        %3099 = vmatprep.subr.mxu0 0.0
        %3100 = vmatpush2.msra.mxu0 %v3051
        %3101 = vmatprep.subr.mxu0 0.0
        %3102 = vmatpush2.msra.mxu0 %v3050
        %3103 = vmatprep.subr.mxu0 0.0
        %3104 = vmatpush2.msra.mxu0 %v3049
        %3105 = vmatprep.subr.mxu0 0.0
        %3106 = vmatpush2.msra.mxu0 %v3048
        %3107 = vmatprep.subr.mxu0 0.0
        %3108 = vmatpush2.msra.mxu0 %v3047
        %3109 = vmatprep.subr.mxu0 0.0
        %3110 = vmatpush2.msra.mxu0 %v3046
        %3111 = vmatprep.subr.mxu0 0.0
        %3112 = vmatpush2.msra.mxu0 %v3045
        %3113 = vmatprep.subr.mxu0 0.0
        %3114 = vmatpush2.msra.mxu0 %v3044
        %3115 = vmatprep.subr.mxu0 0.0
        %3116 = vmatpush2.msra.mxu0 %v3043
        %3117 = vmatprep.subr.mxu0 0.0
        %3118 = vmatpush2.msra.mxu0 %v3042
        %3119 = vmatprep.subr.mxu0 0.0
        %3120 = vmatpush2.msra.mxu0 %v3041
        %3121 = vmatprep.mubr.f32.mxu0 %v2994
        %3122 = vmatmul.mubr.f32.gmra.mxu0 %v2993
        %v3123 = vpop.f32.mrf.mxu0
        %v3124 = vadd.f32 0.0, %v3123
        %v3125 = vpop.f32.mrf.mxu0
        %3126 = vmatprep.mubr.f32.mxu0 %v2996
        %3127 = vmatmul.mubr.f32.gmra.mxu0 %v2995
        %v3128 = vpop.f32.mrf.mxu0
        %v3129 = vadd.f32 0.0, %v3128
        %v3130 = vpop.f32.mrf.mxu0
        %3131 = vmatprep.mubr.f32.mxu0 %v2998
        %3132 = vmatmul.mubr.f32.gmra.mxu0 %v2997
        %v3133 = vpop.f32.mrf.mxu0
        %v3134 = vadd.f32 0.0, %v3133
        %v3135 = vpop.f32.mrf.mxu0
        %3136 = vmatprep.mubr.f32.mxu0 %v3000
        %3137 = vmatmul.mubr.f32.gmra.mxu0 %v2999
        %v3138 = vpop.f32.mrf.mxu0
        %v3139 = vadd.f32 0.0, %v3138
        %v3140 = vpop.f32.mrf.mxu0
        %3141 = vmatprep.mubr.f32.mxu0 %v3002
        %3142 = vmatmul.mubr.f32.gmra.mxu0 %v3001
        %v3143 = vpop.f32.mrf.mxu0
        %v3144 = vadd.f32 0.0, %v3143
        %v3145 = vpop.f32.mrf.mxu0
        %3146 = vmatprep.mubr.f32.mxu0 %v3004
        %3147 = vmatmul.mubr.f32.gmra.mxu0 %v3003
        %v3148 = vpop.f32.mrf.mxu0
        %v3149 = vadd.f32 0.0, %v3148
        %v3150 = vpop.f32.mrf.mxu0
        %3151 = vmatprep.mubr.f32.mxu0 %v3006
        %3152 = vmatmul.mubr.f32.gmra.mxu0 %v3005
        %v3153 = vpop.f32.mrf.mxu0
        %v3154 = vadd.f32 0.0, %v3153
        %v3155 = vpop.f32.mrf.mxu0
        %3156 = vmatprep.mubr.f32.mxu0 %v3008
        %3157 = vmatmul.mubr.f32.gmra.mxu0 %v3007
        %v3158 = vpop.f32.mrf.mxu0
        %v3159 = vadd.f32 0.0, %v3158
        %v3160 = vpop.f32.mrf.mxu0
        %3161 = vmatprep.mubr.f32.mxu0 %v3010
        %3162 = vmatmul.mubr.f32.gmra.mxu0 %v3009
        %v3163 = vpop.f32.mrf.mxu0
        %v3164 = vadd.f32 0.0, %v3163
        %v3165 = vpop.f32.mrf.mxu0
        %3166 = vmatprep.mubr.f32.mxu0 %v3012
        %3167 = vmatmul.mubr.f32.gmra.mxu0 %v3011
        %v3168 = vpop.f32.mrf.mxu0
        %v3169 = vadd.f32 0.0, %v3168
        %v3170 = vpop.f32.mrf.mxu0
        %3171 = vmatprep.mubr.f32.mxu0 %v3014
        %3172 = vmatmul.mubr.f32.gmra.mxu0 %v3013
        %v3173 = vpop.f32.mrf.mxu0
        %v3174 = vadd.f32 0.0, %v3173
        %v3175 = vpop.f32.mrf.mxu0
        %3176 = vmatprep.mubr.f32.mxu0 %v3016
        %3177 = vmatmul.mubr.f32.gmra.mxu0 %v3015
        %v3178 = vpop.f32.mrf.mxu0
        %v3179 = vadd.f32 0.0, %v3178
        %v3180 = vpop.f32.mrf.mxu0
        %3181 = vmatprep.mubr.f32.mxu0 %v3018
        %3182 = vmatmul.mubr.f32.gmra.mxu0 %v3017
        %v3183 = vpop.f32.mrf.mxu0
        %v3184 = vadd.f32 0.0, %v3183
        %v3185 = vpop.f32.mrf.mxu0
        %3186 = vmatprep.mubr.f32.mxu0 %v3020
        %3187 = vmatmul.mubr.f32.gmra.mxu0 %v3019
        %v3188 = vpop.f32.mrf.mxu0
        %v3189 = vadd.f32 0.0, %v3188
        %v3190 = vpop.f32.mrf.mxu0
        %3191 = vmatprep.mubr.f32.mxu0 %v3022
        %3192 = vmatmul.mubr.f32.gmra.mxu0 %v3021
        %v3193 = vpop.f32.mrf.mxu0
        %v3194 = vadd.f32 0.0, %v3193
        %v3195 = vpop.f32.mrf.mxu0
        %3196 = vmatprep.mubr.f32.mxu0 %v3024
        %3197 = vmatmul.mubr.f32.gmra.mxu0 %v3023
        %v3198 = vpop.f32.mrf.mxu0
        %v3199 = vadd.f32 0.0, %v3198
        %v3200 = vpop.f32.mrf.mxu0
        %3201 = vdwg.mxu0
        %3202 = vadd.xlane.f32.xlu0 %v3124
        %v3203 = vpop.xlane.xlu0 %3202
        %3204 = vadd.xlane.f32.xlu0 %v3129
        %v3205 = vpop.xlane.xlu0 %3204
        %3206 = vadd.xlane.f32.xlu0 %v3134
        %v3207 = vpop.xlane.xlu0 %3206
        %3208 = vadd.xlane.f32.xlu0 %v3139
        %v3209 = vpop.xlane.xlu0 %3208
        %3210 = vadd.xlane.f32.xlu0 %v3144
        %v3211 = vpop.xlane.xlu0 %3210
        %3212 = vadd.xlane.f32.xlu0 %v3149
        %v3213 = vpop.xlane.xlu0 %3212
        %3214 = vadd.xlane.f32.xlu0 %v3154
        %v3215 = vpop.xlane.xlu0 %3214
        %3216 = vadd.xlane.f32.xlu0 %v3159
        %v3217 = vpop.xlane.xlu0 %3216
        %3218 = vadd.xlane.f32.xlu0 %v3164
        %v3219 = vpop.xlane.xlu0 %3218
        %3220 = vadd.xlane.f32.xlu0 %v3169
        %v3221 = vpop.xlane.xlu0 %3220
        %3222 = vadd.xlane.f32.xlu0 %v3174
        %v3223 = vpop.xlane.xlu0 %3222
        %3224 = vadd.xlane.f32.xlu0 %v3179
        %v3225 = vpop.xlane.xlu0 %3224
        %3226 = vadd.xlane.f32.xlu0 %v3184
        %v3227 = vpop.xlane.xlu0 %3226
        %3228 = vadd.xlane.f32.xlu0 %v3189
        %v3229 = vpop.xlane.xlu0 %3228
        %3230 = vadd.xlane.f32.xlu0 %v3194
        %v3231 = vpop.xlane.xlu0 %3230
        %3232 = vadd.xlane.f32.xlu0 %v3199
        %v3233 = vpop.xlane.xlu0 %3232
        %v3234 = vmul.f32 %v3203, %v2416
        %v3235 = vmul.f32 %v3205, %v2416
        %v3236 = vmul.f32 %v3207, %v2416
        %v3237 = vmul.f32 %v3209, %v2416
        %v3238 = vmul.f32 %v3211, %v2416
        %v3239 = vmul.f32 %v3213, %v2416
        %v3240 = vmul.f32 %v3215, %v2416
        %v3241 = vmul.f32 %v3217, %v2416
        %v3242 = vmul.f32 %v3219, %v2416
        %v3243 = vmul.f32 %v3221, %v2416
        %v3244 = vmul.f32 %v3223, %v2416
        %v3245 = vmul.f32 %v3225, %v2416
        %v3246 = vmul.f32 %v3227, %v2416
        %v3247 = vmul.f32 %v3229, %v2416
        %v3248 = vmul.f32 %v3231, %v2416
        %v3249 = vmul.f32 %v3233, %v2416
        %v3250 = vsub.f32 %v3124, %v3234
        %v3251 = vsub.f32 %v3129, %v3235
        %v3252 = vsub.f32 %v3134, %v3236
        %v3253 = vsub.f32 %v3139, %v3237
        %v3254 = vsub.f32 %v3144, %v3238
        %v3255 = vsub.f32 %v3149, %v3239
        %v3256 = vsub.f32 %v3154, %v3240
        %v3257 = vsub.f32 %v3159, %v3241
        %v3258 = vsub.f32 %v3164, %v3242
        %v3259 = vsub.f32 %v3169, %v3243
        %v3260 = vsub.f32 %v3174, %v3244
        %v3261 = vsub.f32 %v3179, %v3245
        %v3262 = vsub.f32 %v3184, %v3246
        %v3263 = vsub.f32 %v3189, %v3247
        %v3264 = vsub.f32 %v3194, %v3248
        %v3265 = vsub.f32 %v3199, %v3249
        %v3266 = vmul.f32 %v3250, %v3250
        %v3267 = vmul.f32 %v3251, %v3251
        %v3268 = vmul.f32 %v3252, %v3252
        %v3269 = vmul.f32 %v3253, %v3253
        %v3270 = vmul.f32 %v3254, %v3254
        %v3271 = vmul.f32 %v3255, %v3255
        %v3272 = vmul.f32 %v3256, %v3256
        %v3273 = vmul.f32 %v3257, %v3257
        %v3274 = vmul.f32 %v3258, %v3258
        %v3275 = vmul.f32 %v3259, %v3259
        %v3276 = vmul.f32 %v3260, %v3260
        %v3277 = vmul.f32 %v3261, %v3261
        %v3278 = vmul.f32 %v3262, %v3262
        %v3279 = vmul.f32 %v3263, %v3263
        %v3280 = vmul.f32 %v3264, %v3264
        %v3281 = vmul.f32 %v3265, %v3265
        %3282 = vadd.xlane.f32.xlu0 %v3266
        %v3283 = vpop.xlane.xlu0 %3282
        %3284 = vadd.xlane.f32.xlu0 %v3267
        %v3285 = vpop.xlane.xlu0 %3284
        %3286 = vadd.xlane.f32.xlu0 %v3268
        %v3287 = vpop.xlane.xlu0 %3286
        %3288 = vadd.xlane.f32.xlu0 %v3269
        %v3289 = vpop.xlane.xlu0 %3288
        %3290 = vadd.xlane.f32.xlu0 %v3270
        %v3291 = vpop.xlane.xlu0 %3290
        %3292 = vadd.xlane.f32.xlu0 %v3271
        %v3293 = vpop.xlane.xlu0 %3292
        %3294 = vadd.xlane.f32.xlu0 %v3272
        %v3295 = vpop.xlane.xlu0 %3294
        %3296 = vadd.xlane.f32.xlu0 %v3273
        %v3297 = vpop.xlane.xlu0 %3296
        %3298 = vadd.xlane.f32.xlu0 %v3274
        %v3299 = vpop.xlane.xlu0 %3298
        %3300 = vadd.xlane.f32.xlu0 %v3275
        %v3301 = vpop.xlane.xlu0 %3300
        %3302 = vadd.xlane.f32.xlu0 %v3276
        %v3303 = vpop.xlane.xlu0 %3302
        %3304 = vadd.xlane.f32.xlu0 %v3277
        %v3305 = vpop.xlane.xlu0 %3304
        %3306 = vadd.xlane.f32.xlu0 %v3278
        %v3307 = vpop.xlane.xlu0 %3306
        %3308 = vadd.xlane.f32.xlu0 %v3279
        %v3309 = vpop.xlane.xlu0 %3308
        %3310 = vadd.xlane.f32.xlu0 %v3280
        %v3311 = vpop.xlane.xlu0 %3310
        %3312 = vadd.xlane.f32.xlu0 %v3281
        %v3313 = vpop.xlane.xlu0 %3312
        %v3314 = vmul.f32 %v3283, %v2416
        %v3315 = vmul.f32 %v3285, %v2416
        %v3316 = vmul.f32 %v3287, %v2416
        %v3317 = vmul.f32 %v3289, %v2416
        %v3318 = vmul.f32 %v3291, %v2416
        %v3319 = vmul.f32 %v3293, %v2416
        %v3320 = vmul.f32 %v3295, %v2416
        %v3321 = vmul.f32 %v3297, %v2416
        %v3322 = vmul.f32 %v3299, %v2416
        %v3323 = vmul.f32 %v3301, %v2416
        %v3324 = vmul.f32 %v3303, %v2416
        %v3325 = vmul.f32 %v3305, %v2416
        %v3326 = vmul.f32 %v3307, %v2416
        %v3327 = vmul.f32 %v3309, %v2416
        %v3328 = vmul.f32 %v3311, %v2416
        %v3329 = vmul.f32 %v3313, %v2416
        %v3330 = vadd.f32 %v3314, 1e-05
        %v3331 = vadd.f32 %v3315, 1e-05
        %v3332 = vadd.f32 %v3316, 1e-05
        %v3333 = vadd.f32 %v3317, 1e-05
        %v3334 = vadd.f32 %v3318, 1e-05
        %v3335 = vadd.f32 %v3319, 1e-05
        %v3336 = vadd.f32 %v3320, 1e-05
        %v3337 = vadd.f32 %v3321, 1e-05
        %v3338 = vadd.f32 %v3322, 1e-05
        %v3339 = vadd.f32 %v3323, 1e-05
        %v3340 = vadd.f32 %v3324, 1e-05
        %v3341 = vadd.f32 %v3325, 1e-05
        %v3342 = vadd.f32 %v3326, 1e-05
        %v3343 = vadd.f32 %v3327, 1e-05
        %v3344 = vadd.f32 %v3328, 1e-05
        %v3345 = vadd.f32 %v3329, 1e-05
        %v3346 = vrsqrt.pop %v3330
        %v3347 = vrsqrt.pop %v3331
        %v3348 = vrsqrt.pop %v3332
        %v3349 = vrsqrt.pop %v3333
        %v3350 = vrsqrt.pop %v3334
        %v3351 = vrsqrt.pop %v3335
        %v3352 = vrsqrt.pop %v3336
        %v3353 = vrsqrt.pop %v3337
        %v3354 = vrsqrt.pop %v3338
        %v3355 = vrsqrt.pop %v3339
        %v3356 = vrsqrt.pop %v3340
        %v3357 = vrsqrt.pop %v3341
        %v3358 = vrsqrt.pop %v3342
        %v3359 = vrsqrt.pop %v3343
        %v3360 = vrsqrt.pop %v3344
        %v3361 = vrsqrt.pop %v3345
        %v3362 = vmul.f32 %v3250, %v3346
        %v3363 = vmul.f32 %v3251, %v3347
        %v3364 = vmul.f32 %v3252, %v3348
        %v3365 = vmul.f32 %v3253, %v3349
        %v3366 = vmul.f32 %v3254, %v3350
        %v3367 = vmul.f32 %v3255, %v3351
        %v3368 = vmul.f32 %v3256, %v3352
        %v3369 = vmul.f32 %v3257, %v3353
        %v3370 = vmul.f32 %v3258, %v3354
        %v3371 = vmul.f32 %v3259, %v3355
        %v3372 = vmul.f32 %v3260, %v3356
        %v3373 = vmul.f32 %v3261, %v3357
        %v3374 = vmul.f32 %v3262, %v3358
        %v3375 = vmul.f32 %v3263, %v3359
        %v3376 = vmul.f32 %v3264, %v3360
        %v3377 = vmul.f32 %v3265, %v3361
        %v3378 = vld [vmem:[%s12] sm:$0x1]
        %v3380 = vlaneseq
        %v3381 = vshrl.u32 %v3380, 7
        %v3382 = vsub.s32 0, %v3381
        %v3383 = vrot.slane %v3378, %v3382
        %v3385 = vmul.f32 %v3362, %v3383
        %v3386 = vmul.f32 %v3363, %v3383
        %v3387 = vmul.f32 %v3364, %v3383
        %v3388 = vmul.f32 %v3365, %v3383
        %v3389 = vmul.f32 %v3366, %v3383
        %v3390 = vmul.f32 %v3367, %v3383
        %v3391 = vmul.f32 %v3368, %v3383
        %v3392 = vmul.f32 %v3369, %v3383
        %v3393 = vmul.f32 %v3370, %v3383
        %v3394 = vmul.f32 %v3371, %v3383
        %v3395 = vmul.f32 %v3372, %v3383
        %v3396 = vmul.f32 %v3373, %v3383
        %v3397 = vmul.f32 %v3374, %v3383
        %v3398 = vmul.f32 %v3375, %v3383
        %v3399 = vmul.f32 %v3376, %v3383
        %v3400 = vmul.f32 %v3377, %v3383
        %v3401 = vld [vmem:[%s13] sm:$0x1]
        %v3403 = vlaneseq
        %v3404 = vshrl.u32 %v3403, 7
        %v3405 = vsub.s32 0, %v3404
        %v3406 = vrot.slane %v3401, %v3405
        %v3408 = vadd.f32 %v3385, %v3406
        %v3409 = vadd.f32 %v3386, %v3406
        %v3410 = vadd.f32 %v3387, %v3406
        %v3411 = vadd.f32 %v3388, %v3406
        %v3412 = vadd.f32 %v3389, %v3406
        %v3413 = vadd.f32 %v3390, %v3406
        %v3414 = vadd.f32 %v3391, %v3406
        %v3415 = vadd.f32 %v3392, %v3406
        %v3416 = vadd.f32 %v3393, %v3406
        %v3417 = vadd.f32 %v3394, %v3406
        %v3418 = vadd.f32 %v3395, %v3406
        %v3419 = vadd.f32 %v3396, %v3406
        %v3420 = vadd.f32 %v3397, %v3406
        %v3421 = vadd.f32 %v3398, %v3406
        %v3422 = vadd.f32 %v3399, %v3406
        %v3423 = vadd.f32 %v3400, %v3406
        %v3424 = vadd.f32 %v1573, %v3408
        %v3425 = vadd.f32 %v1574, %v3409
        %v3426 = vadd.f32 %v1575, %v3410
        %v3427 = vadd.f32 %v1576, %v3411
        %v3428 = vadd.f32 %v1577, %v3412
        %v3429 = vadd.f32 %v1578, %v3413
        %v3430 = vadd.f32 %v1579, %v3414
        %v3431 = vadd.f32 %v1580, %v3415
        %v3432 = vadd.f32 %v1581, %v3416
        %v3433 = vadd.f32 %v1582, %v3417
        %v3434 = vadd.f32 %v1583, %v3418
        %v3435 = vadd.f32 %v1584, %v3419
        %v3436 = vadd.f32 %v1585, %v3420
        %v3437 = vadd.f32 %v1586, %v3421
        %v3438 = vadd.f32 %v1587, %v3422
        %v3439 = vadd.f32 %v1588, %v3423
        %3440 = vst [vmem:[%s659] sm:$0xff] %v3424
        %3441 = vst [vmem:[%s659 + $0x8] sm:$0xff] %v3425
        %3442 = vst [vmem:[%s659 + $0x10] sm:$0xff] %v3426
        %3443 = vst [vmem:[%s659 + $0x18] sm:$0xff] %v3427
        %3444 = vst [vmem:[%s659 + $0x20] sm:$0xff] %v3428
        %3445 = vst [vmem:[%s659 + $0x28] sm:$0xff] %v3429
        %3446 = vst [vmem:[%s659 + $0x30] sm:$0xff] %v3430
        %3447 = vst [vmem:[%s659 + $0x38] sm:$0xff] %v3431
        %3448 = vst [vmem:[%s659 + $0x40] sm:$0xff] %v3432
        %3449 = vst [vmem:[%s659 + $0x48] sm:$0xff] %v3433
        %3450 = vst [vmem:[%s659 + $0x50] sm:$0xff] %v3434
        %3451 = vst [vmem:[%s659 + $0x58] sm:$0xff] %v3435
        %3452 = vst [vmem:[%s659 + $0x60] sm:$0xff] %v3436
        %3453 = vst [vmem:[%s659 + $0x68] sm:$0xff] %v3437
        %3454 = vst [vmem:[%s659 + $0x70] sm:$0xff] %v3438
        %3455 = vst [vmem:[%s659 + $0x78] sm:$0xff] %v3439
        %s3456 = sand.u32 %s366, 1
        %s3457 = scalar_lea.sflag [#allocation6], %s3456
        %s3458 = sand.u32 %s366, 1
        %s3459 = smul.addr %s3458, 128
        %s3460 = scalar_lea.vmem [#allocation21], %s3459
        // Predicated region
        $region121: #{tpu_custom_call.1} parent=75 // pred_check
          %p3461 = pneg %p376
        $region122: #{tpu_custom_call.1} parent=75 // pred_check_branch
          %3463 = sbr.rel (%p3461) target = $region124
        $region123: #{tpu_custom_call.1} parent=75 // pred_region
          %s3464 = smul.u32 16, %s43
          %s3466 = ssub.s32 2048, 2048
          %3467 = vsyncadd %s3457, %s3466
          %s3468 = smul.addr %s42, 32
          %s3469 = sadd.s32 %s3464, %s3468
          %s3470 = smul.addr %s3469, 128
          %s3471 = scalar_lea.hbm %s14, %s3470
          %s3472 = sshll.u32 %s3460, 4
          %s3473 = int_to_ptr.vmem [resolvable:$true] %s3472
          %3478 = dma.vmem_to_hbm [thread:$0]  %s3473, 2048, %s3471, %s3457, 128, 128, 8
        $region124: #{tpu_custom_call.1} parent=75 // pred_fallthru
          _
      $region76: #{tpu_custom_call.1} parent=5 // pred_fallthru
        _
      %p3479 = scmp.le.s32.totalorder 2, %s33
      // Predicated region
      $region125: #{tpu_custom_call.1} parent=5 // pred_check
        %p3480 = pneg %p3479
      $region126: #{tpu_custom_call.1} parent=5 // pred_check_branch
        %3482 = sbr.rel (%p3480) target = $region128
      $region127: #{tpu_custom_call.1} parent=5 // pred_region
        %s3483 = ssub.s32 %s33, 2
        // Predicated region
        $region129: #{tpu_custom_call.1} parent=127 // pred_check
          %p3484 = pneg %p382
        $region130: #{tpu_custom_call.1} parent=127 // pred_check_branch
          %3486 = sbr.rel (%p3484) target = $region132
        $region131: #{tpu_custom_call.1} parent=127 // pred_region
          %s3487 = sand.u32 %s367, 1
          %s3488 = scalar_lea.sflag [#allocation6], %s3487
          %s3489 = sand.u32 %s367, 1
          %s3490 = smul.addr %s3489, 128
          %s3491 = scalar_lea.vmem [#allocation21], %s3490
          %3492 = dma.done %s3488, 2048
        $region132: #{tpu_custom_call.1} parent=127 // pred_fallthru
          _
      $region128: #{tpu_custom_call.1} parent=5 // pred_fallthru
        _
    $region6: #{tpu_custom_call.1} parent=1 // loop_footer
      %s37 = sadd.s32 1, %s33
    $region7: #{tpu_custom_call.1} parent=1 // loop_footer_branch
      %32 = sbr.rel target = $region3
    $region8: #{tpu_custom_call.1} parent=1 // loop_exit
      _
    %3493 = vsyncpa [#allocation5], 1
    %s3494 = scalar_lea.sflag [#allocation5], 1
    %3495 = vsyncpa %s3494, 1
    %3496 = vsyncpa [#allocation8], 1
    %s3497 = scalar_lea.sflag [#allocation8], 1
    %3498 = vsyncpa %s3497, 1
    %3499 = vsyncpa [#allocation11], 1
    %3500 = vsyncpa [#allocation14], 1
    %3501 = vsyncpa [#allocation17], 1
    %3502 = vsyncpa [#allocation20], 1
    %3503 = vsyncpa [#allocation6], 1
    %s3504 = scalar_lea.sflag [#allocation6], 1
    %3505 = vsyncpa %s3504, 1

</llo_original>
